<compile_context>
chip_gen: v6e
topology: v6e:2x2x1
jax: 0.10.0
libtpu: 0.0.40
codegen_flags: <defaults>
</compile_context>

<pallas_src>
import jax
import jax.numpy as jnp
from jax.experimental import pallas as pl
from jax.experimental.pallas import tpu as pltpu

_LANE = 128     # TPU vreg lane width   (last-dim alignment)
_SUBLANE = 8    # TPU vreg sublane width (second-to-last-dim alignment)


def _round_up(n, m):
    return ((n + m - 1) // m) * m


def _pad_axis(x, axis, target):
    pad = target - x.shape[axis]
    if pad <= 0:
        return x
    widths = [(0, 0)] * x.ndim
    widths[axis] = (0, pad)
    return jnp.pad(x, widths)


# ----------------------------------------------------------------------------
# Fused Pallas kernel: n_layers x LSTM over the full sequence + Linear + Sigmoid
# Single invocation (no grid); all operands are whole-array VMEM blocks.
# ----------------------------------------------------------------------------
def _make_sentiment_kernel(n_layers, seq_len, batch_pad, hidden_pad):
    T, B, H = seq_len, batch_pad, hidden_pad

    def kernel(*refs):
        # ---- unpack refs: inputs, outputs, scratch --------------------------
        emb_ref = refs[0]                       # (T*B, E_pad) time-major flat
        pos = 1
        lstm_refs = []
        for _ in range(n_layers):
            lstm_refs.append((refs[pos], refs[pos + 1], refs[pos + 2]))
            pos += 3
        wfc_ref, bfc_ref, h0_ref, c0_ref = refs[pos:pos + 4]
        pos += 4
        sig_ref, hn_ref, cn_ref = refs[pos:pos + 3]
        pos += 3
        seq_ref = refs[pos]                     # (T*B, H)   previous layer's h
        gates_ref = refs[pos + 1]               # (T*B, 4H)  hoisted input proj

        h_last = None
        for layer in range(n_layers):
            wih_ref, whh_ref, b_ref = lstm_refs[layer]
            layer_in = emb_ref[...] if layer == 0 else seq_ref[...]

            # Hoisted input projection for ALL timesteps: one MXU matmul with
            # M = T*B instead of T tiny M = B matmuls inside the recurrence.
            gates_ref[...] = (
                jnp.dot(layer_in, wih_ref[...],
                        preferred_element_type=jnp.float32)
                + b_ref[...])

            whh = whh_ref[...]                  # hoisted weight load
            write_seq = layer < n_layers - 1    # next layer needs the sequence

            def step(t, carry, whh=whh, write_seq=write_seq):
                h, c = carry
                row = pl.multiple_of(t * B, B)  # sublane-aligned row offset
                g = gates_ref[pl.ds(row, B), :] + jnp.dot(
                    h, whh, preferred_element_type=jnp.float32)
                # PyTorch gate order: input, forget, cell(g), output.
                # H is lane-padded to 128, so every slice is lane-aligned.
                i_g = jax.nn.sigmoid(g[:, 0 * H:1 * H])
                f_g = jax.nn.sigmoid(g[:, 1 * H:2 * H])
                g_g = jnp.tanh(g[:, 2 * H:3 * H])
                o_g = jax.nn.sigmoid(g[:, 3 * H:4 * H])
                c_new = f_g * c + i_g * g_g
                h_new = o_g * jnp.tanh(c_new)
                if write_seq:
                    seq_ref[pl.ds(row, B), :] = h_new
                return h_new, c_new

            h_fin, c_fin = jax.lax.fori_loop(
                0, T, step, (h0_ref[layer], c0_ref[layer]), unroll=True)

            hn_ref[layer] = h_fin               # written once per layer
            cn_ref[layer] = c_fin
            h_last = h_fin

        # Final Linear + Sigmoid fused into the same kernel.
        # TODO(synk): nn.Dropout(p=0.3) and the LSTM inter-layer dropout(0.5)
        # are training-only; identity at inference.
        logits = jnp.dot(h_last, wfc_ref[...],
                         preferred_element_type=jnp.float32) + bfc_ref[...]
        sig_ref[...] = jax.nn.sigmoid(logits)

    return kernel


def _fused_forward_call(emb_flat, lstm_packed, wfc_t, bfc, h0_p, c0_p):
    n_layers, B_pad, H_pad = h0_p.shape
    TB, _ = emb_flat.shape
    T = TB // B_pad
    O_pad = wfc_t.shape[1]

    inputs = [emb_flat]
    for p in lstm_packed:
        inputs += [p["wih_t"], p["whh_t"], p["b"]]
    inputs += [wfc_t, bfc, h0_p, c0_p]

    vmem_spec = pl.BlockSpec(memory_space=pltpu.MemorySpace.VMEM)
    kernel = _make_sentiment_kernel(n_layers, T, B_pad, H_pad)

    return pl.pallas_call(
        kernel,
        out_shape=(
            jax.ShapeDtypeStruct((B_pad, O_pad), jnp.float32),
            jax.ShapeDtypeStruct((n_layers, B_pad, H_pad), jnp.float32),
            jax.ShapeDtypeStruct((n_layers, B_pad, H_pad), jnp.float32),
        ),
        in_specs=[vmem_spec] * len(inputs),
        out_specs=(vmem_spec, vmem_spec, vmem_spec),
        scratch_shapes=[
            pltpu.VMEM((TB, H_pad), jnp.float32),      # inter-layer h sequence
            pltpu.VMEM((TB, 4 * H_pad), jnp.float32),  # hoisted gate pre-acts
        ],
    )(*inputs)


# ----------------------------------------------------------------------------
# Parameters (PyTorch layout) + packing into padded/transposed kernel layout
# ----------------------------------------------------------------------------
def init_params(key, vocab_size, embedding_dim, hidden_dim, n_layers,
                output_size):
    keys = jax.random.split(key, 1 + 4 * n_layers + 2)
    k = 1.0 / float(hidden_dim) ** 0.5
    params = {"embedding": jax.random.normal(
        keys[0], (vocab_size, embedding_dim), jnp.float32)}
    lstm = []
    ki = 1
    for layer in range(n_layers):
        in_dim = embedding_dim if layer == 0 else hidden_dim
        lstm.append({
            "w_ih": jax.random.uniform(keys[ki + 0], (4 * hidden_dim, in_dim),
                                       jnp.float32, -k, k),
            "w_hh": jax.random.uniform(keys[ki + 1],
                                       (4 * hidden_dim, hidden_dim),
                                       jnp.float32, -k, k),
            "b_ih": jax.random.uniform(keys[ki + 2], (4 * hidden_dim,),
                                       jnp.float32, -k, k),
            "b_hh": jax.random.uniform(keys[ki + 3], (4 * hidden_dim,),
                                       jnp.float32, -k, k),
        })
        ki += 4
    params["lstm"] = lstm
    params["fc_w"] = jax.random.uniform(keys[ki], (output_size, hidden_dim),
                                        jnp.float32, -k, k)
    params["fc_b"] = jax.random.uniform(keys[ki + 1], (output_size,),
                                        jnp.float32, -k, k)
    return params


def pack_params(params):
    """Pad (lane=128) and pre-transpose PyTorch-layout weights for the kernel.

    Zero padding of the hidden dimension keeps the padded hidden units
    identically zero through the recurrence (their gate pre-activations are 0),
    so the padded computation is numerically identical to the unpadded one.
    """
    emb = params["embedding"]
    E = emb.shape[1]
    H = params["lstm"][0]["w_hh"].shape[1]
    E_pad = _round_up(E, _LANE)
    H_pad = _round_up(H, _LANE)

    packed = {"embedding": _pad_axis(emb, 1, E_pad)}

    lstm_packed = []
    for layer, p in enumerate(params["lstm"]):
        in_dim = p["w_ih"].shape[1]
        in_pad = E_pad if layer == 0 else H_pad
        w_ih4 = _pad_axis(_pad_axis(p["w_ih"].reshape(4, H, in_dim), 1, H_pad),
                          2, in_pad)
        w_hh4 = _pad_axis(_pad_axis(p["w_hh"].reshape(4, H, H), 1, H_pad),
                          2, H_pad)
        b = _pad_axis((p["b_ih"] + p["b_hh"]).reshape(4, H), 1, H_pad)
        lstm_packed.append({
            "wih_t": w_ih4.reshape(4 * H_pad, in_pad).T,   # (in_pad, 4*H_pad)
            "whh_t": w_hh4.reshape(4 * H_pad, H_pad).T,    # (H_pad, 4*H_pad)
            "b": b.reshape(1, 4 * H_pad),
        })
    packed["lstm"] = lstm_packed

    O = params["fc_w"].shape[0]
    O_pad = _round_up(O, _LANE)
    wfc = _pad_axis(_pad_axis(params["fc_w"], 0, O_pad), 1, H_pad)
    packed["fc_w_t"] = wfc.T                               # (H_pad, O_pad)
    packed["fc_b"] = params["fc_b"].reshape(1, O)          # kept unpadded
    return packed


# ----------------------------------------------------------------------------
# SentimentRNN forward (inference)
# ----------------------------------------------------------------------------
@jax.jit
def sentiment_rnn_forward(packed, x_tokens, hidden):
    """x_tokens: (B, T) int32, hidden: (h0, c0) each (n_layers, B, H).
    Returns (sig_out (B, output_size), (h_n, c_n)) like SentimentRNN.forward."""
    h0, c0 = hidden
    n_layers, B, H = h0.shape
    T = x_tokens.shape[1]
    H_pad = packed["lstm"][0]["whh_t"].shape[0]
    O = packed["fc_b"].shape[1]
    O_pad = packed["fc_w_t"].shape[1]
    B_pad = _round_up(B, _SUBLANE)

    # Embedding lookup (plain-JAX gather glue); table is already lane-padded.
    emb = jnp.take(packed["embedding"], x_tokens, axis=0)   # (B, T, E_pad)
    emb = _pad_axis(emb, 0, B_pad)                          # sublane-pad batch
    # time-major flat layout: timestep t occupies rows [t*B_pad, (t+1)*B_pad)
    emb_flat = jnp.transpose(emb, (1, 0, 2)).reshape(T * B_pad, -1)

    h0_p = _pad_axis(_pad_axis(h0, 1, B_pad), 2, H_pad)
    c0_p = _pad_axis(_pad_axis(c0, 1, B_pad), 2, H_pad)
    bfc_p = _pad_axis(packed["fc_b"], 1, O_pad)

    sig_p, hn_p, cn_p = _fused_forward_call(
        emb_flat, packed["lstm"], packed["fc_w_t"], bfc_p, h0_p, c0_p)

    sig_out = sig_p[:B, :O]
    h_n = hn_p[:, :B, :H]
    c_n = cn_p[:, :B, :H]
    return sig_out, (h_n, c_n)


# ----------------------------------------------------------------------------
# Pure-JAX reference (for correctness cross-check)
# ----------------------------------------------------------------------------
def reference_forward(params, x_tokens, hidden):
    h0, c0 = hidden
    emb = jnp.take(params["embedding"], x_tokens, axis=0)
    layer_in = emb
    hs, cs = [], []
    for layer, p in enumerate(params["lstm"]):
        H = p["w_hh"].shape[1]
        w_ih_t, w_hh_t = p["w_ih"].T, p["w_hh"].T
        b = p["b_ih"] + p["b_hh"]

        def step(carry, x_t, w_ih_t=w_ih_t, w_hh_t=w_hh_t, b=b, H=H):
            h, c = carry
            g = x_t @ w_ih_t + h @ w_hh_t + b
            i = jax.nn.sigmoid(g[:, 0 * H:1 * H])
            f = jax.nn.sigmoid(g[:, 1 * H:2 * H])
            gg = jnp.tanh(g[:, 2 * H:3 * H])
            o = jax.nn.sigmoid(g[:, 3 * H:4 * H])
            c2 = f * c + i * gg
            h2 = o * jnp.tanh(c2)
            return (h2, c2), h2

        (hf, cf), outs = jax.lax.scan(step, (h0[layer], c0[layer]),
                                      jnp.swapaxes(layer_in, 0, 1))
        layer_in = jnp.swapaxes(outs, 0, 1)
        hs.append(hf)
        cs.append(cf)
    last = layer_in[:, -1, :]
    sig = jax.nn.sigmoid(last @ params["fc_w"].T + params["fc_b"])
    return sig, (jnp.stack(hs), jnp.stack(cs))


if __name__ == "__main__":
    # Small shapes consistent with the module's forward.
    vocab_size = 100
    embedding_dim = 32
    hidden_dim = 32
    n_layers = 2
    output_size = 1
    batch = 2
    seq_len = 8

    key = jax.random.PRNGKey(0)
    k_params, k_tokens = jax.random.split(key)

    params = init_params(k_params, vocab_size, embedding_dim, hidden_dim,
                         n_layers, output_size)
    packed = pack_params(params)

    x_tokens = jax.random.randint(k_tokens, (batch, seq_len), 0, vocab_size,
                                  dtype=jnp.int32)
    hidden0 = (jnp.zeros((n_layers, batch, hidden_dim), jnp.float32),
               jnp.zeros((n_layers, batch, hidden_dim), jnp.float32))

    sig_out, (h_n, c_n) = sentiment_rnn_forward(packed, x_tokens, hidden0)
    jax.block_until_ready((sig_out, h_n, c_n))

    assert sig_out.shape == (batch, output_size)
    assert h_n.shape == (n_layers, batch, hidden_dim)
    assert c_n.shape == (n_layers, batch, hidden_dim)
    assert bool(jnp.all((sig_out >= 0.0) & (sig_out <= 1.0)))

    # Cross-check against a pure-JAX reference (loose tol for MXU f32 passes).
    ref_sig, (ref_h, ref_c) = jax.jit(reference_forward)(params, x_tokens,
                                                         hidden0)
    assert bool(jnp.allclose(sig_out, ref_sig, atol=2e-2, rtol=2e-2))
    assert bool(jnp.allclose(h_n, ref_h, atol=2e-2, rtol=2e-2))
    assert bool(jnp.allclose(c_n, ref_c, atol=2e-2, rtol=2e-2))

    print("KERNEL_OK")
</pallas_src>

<mosaic_0001>
module attributes {stable_mosaic.version = 11 : i64} {
  func.func @kernel(%arg0: memref<64x128xf32, #tpu.memory_space<vmem>>, %arg1: memref<128x512xf32, #tpu.memory_space<vmem>>, %arg2: memref<128x512xf32, #tpu.memory_space<vmem>>, %arg3: memref<1x512xf32, #tpu.memory_space<vmem>>, %arg4: memref<128x512xf32, #tpu.memory_space<vmem>>, %arg5: memref<128x512xf32, #tpu.memory_space<vmem>>, %arg6: memref<1x512xf32, #tpu.memory_space<vmem>>, %arg7: memref<128x128xf32, #tpu.memory_space<vmem>>, %arg8: memref<1x128xf32, #tpu.memory_space<vmem>>, %arg9: memref<2x8x128xf32, #tpu.memory_space<vmem>>, %arg10: memref<2x8x128xf32, #tpu.memory_space<vmem>>, %arg11: memref<8x128xf32, #tpu.memory_space<vmem>>, %arg12: memref<2x8x128xf32, #tpu.memory_space<vmem>>, %arg13: memref<2x8x128xf32, #tpu.memory_space<vmem>>, %arg14: memref<64x128xf32, #tpu.memory_space<vmem>>, %arg15: memref<64x512xf32, #tpu.memory_space<vmem>>) attributes {dimension_semantics = [], scalar_prefetch = 0 : i64, scratch_operands = 2 : i64, tpu.core_type = #tpu.core_type<tc>} {
    %c0 = arith.constant 0 : index
    %c0_0 = arith.constant 0 : index
    %0 = vector.load %arg0[%c0, %c0_0] : memref<64x128xf32, #tpu.memory_space<vmem>>, vector<64x128xf32>
    %c0_1 = arith.constant 0 : index
    %c0_2 = arith.constant 0 : index
    %1 = vector.load %arg1[%c0_1, %c0_2] : memref<128x512xf32, #tpu.memory_space<vmem>>, vector<128x512xf32>
    %cst = arith.constant dense<0.000000e+00> : vector<64x512xf32>
    %2 = tpu.matmul %0, %1, %cst {dimension_numbers = #tpu.dot_dimension_numbers<[1], [0], [0], [1], [0, 0, 1, 1], [], []>} : vector<64x128xf32>, vector<128x512xf32>, vector<64x512xf32> -> vector<64x512xf32>
    %c0_3 = arith.constant 0 : index
    %c0_4 = arith.constant 0 : index
    %3 = vector.load %arg3[%c0_3, %c0_4] : memref<1x512xf32, #tpu.memory_space<vmem>>, vector<1x512xf32>
    %4 = vector.broadcast %3 : vector<1x512xf32> to vector<64x512xf32>
    %5 = arith.addf %2, %4 : vector<64x512xf32>
    %c0_5 = arith.constant 0 : index
    %c0_6 = arith.constant 0 : index
    %6 = vector.load %arg15[%c0_5, %c0_6] : memref<64x512xf32, #tpu.memory_space<vmem>>, vector<64x512xf32>
    tpu.vector_store %arg15[%c0_5, %c0_6], %5 {strides = array<i32>} : memref<64x512xf32, #tpu.memory_space<vmem>>, vector<64x512xf32>,
    %c0_7 = arith.constant 0 : index
    %c0_8 = arith.constant 0 : index
    %7 = vector.load %arg2[%c0_7, %c0_8] : memref<128x512xf32, #tpu.memory_space<vmem>>, vector<128x512xf32>
    %c0_9 = arith.constant 0 : index
    %c0_10 = arith.constant 0 : index
    %c0_11 = arith.constant 0 : index
    %8 = vector.load %arg9[%c0_9, %c0_10, %c0_11] : memref<2x8x128xf32, #tpu.memory_space<vmem>>, vector<1x8x128xf32>
    %9 = vector.shape_cast %8 : vector<1x8x128xf32> to vector<8x128xf32>
    %c0_12 = arith.constant 0 : index
    %c0_13 = arith.constant 0 : index
    %c0_14 = arith.constant 0 : index
    %10 = vector.load %arg10[%c0_12, %c0_13, %c0_14] : memref<2x8x128xf32, #tpu.memory_space<vmem>>, vector<1x8x128xf32>
    %11 = vector.shape_cast %10 : vector<1x8x128xf32> to vector<8x128xf32>
    %c0_i32 = arith.constant 0 : i32
    %c8_i32 = arith.constant 8 : i32
    %12 = arith.muli %c0_i32, %c8_i32 : i32
    %13 = tpu.assume_multiple %12, 8 : i32
    %14 = arith.index_cast %13 : i32 to index
    %c0_15 = arith.constant 0 : index
    %15 = vector.load %arg15[%14, %c0_15] : memref<64x512xf32, #tpu.memory_space<vmem>>, vector<8x512xf32>
    %cst_16 = arith.constant dense<0.000000e+00> : vector<8x512xf32>
    %16 = tpu.matmul %9, %7, %cst_16 {dimension_numbers = #tpu.dot_dimension_numbers<[1], [0], [0], [1], [0, 0, 1, 1], [], []>} : vector<8x128xf32>, vector<128x512xf32>, vector<8x512xf32> -> vector<8x512xf32>
    %17 = arith.addf %15, %16 : vector<8x512xf32>
    %18 = vector.extract_strided_slice %17 {offsets = [0, 0], sizes = [8, 128], strides = [1, 1]} : vector<8x512xf32> to vector<8x128xf32>
    %19 = arith.negf %18 : vector<8x128xf32>
    %20 = math.exp %19 : vector<8x128xf32>
    %cst_17 = arith.constant 1.000000e+00 : f32
    %21 = vector.broadcast %cst_17 : f32 to vector<8x128xf32>
    %22 = arith.addf %21, %20 : vector<8x128xf32>
    %23 = arith.divf %21, %22 : vector<8x128xf32>
    %24 = vector.extract_strided_slice %17 {offsets = [0, 128], sizes = [8, 128], strides = [1, 1]} : vector<8x512xf32> to vector<8x128xf32>
    %25 = arith.negf %24 : vector<8x128xf32>
    %26 = math.exp %25 : vector<8x128xf32>
    %cst_18 = arith.constant 1.000000e+00 : f32
    %27 = vector.broadcast %cst_18 : f32 to vector<8x128xf32>
    %28 = arith.addf %27, %26 : vector<8x128xf32>
    %29 = arith.divf %27, %28 : vector<8x128xf32>
    %30 = vector.extract_strided_slice %17 {offsets = [0, 256], sizes = [8, 128], strides = [1, 1]} : vector<8x512xf32> to vector<8x128xf32>
    %31 = math.tanh %30 : vector<8x128xf32>
    %32 = vector.extract_strided_slice %17 {offsets = [0, 384], sizes = [8, 128], strides = [1, 1]} : vector<8x512xf32> to vector<8x128xf32>
    %33 = arith.negf %32 : vector<8x128xf32>
    %34 = math.exp %33 : vector<8x128xf32>
    %cst_19 = arith.constant 1.000000e+00 : f32
    %35 = vector.broadcast %cst_19 : f32 to vector<8x128xf32>
    %36 = arith.addf %35, %34 : vector<8x128xf32>
    %37 = arith.divf %35, %36 : vector<8x128xf32>
    %38 = arith.mulf %29, %11 : vector<8x128xf32>
    %39 = arith.mulf %23, %31 : vector<8x128xf32>
    %40 = arith.addf %38, %39 : vector<8x128xf32>
    %41 = math.tanh %40 : vector<8x128xf32>
    %42 = arith.mulf %37, %41 : vector<8x128xf32>
    %43 = arith.index_cast %13 : i32 to index
    %c0_20 = arith.constant 0 : index
    %44 = vector.load %arg14[%43, %c0_20] : memref<64x128xf32, #tpu.memory_space<vmem>>, vector<8x128xf32>
    tpu.vector_store %arg14[%43, %c0_20], %42 {strides = array<i32>} : memref<64x128xf32, #tpu.memory_space<vmem>>, vector<8x128xf32>,
    %c1_i32 = arith.constant 1 : i32
    %c8_i32_21 = arith.constant 8 : i32
    %45 = arith.muli %c1_i32, %c8_i32_21 : i32
    %46 = tpu.assume_multiple %45, 8 : i32
    %47 = arith.index_cast %46 : i32 to index
    %c0_22 = arith.constant 0 : index
    %48 = vector.load %arg15[%47, %c0_22] : memref<64x512xf32, #tpu.memory_space<vmem>>, vector<8x512xf32>
    %cst_23 = arith.constant dense<0.000000e+00> : vector<8x512xf32>
    %49 = tpu.matmul %42, %7, %cst_23 {dimension_numbers = #tpu.dot_dimension_numbers<[1], [0], [0], [1], [0, 0, 1, 1], [], []>} : vector<8x128xf32>, vector<128x512xf32>, vector<8x512xf32> -> vector<8x512xf32>
    %50 = arith.addf %48, %49 : vector<8x512xf32>
    %51 = vector.extract_strided_slice %50 {offsets = [0, 0], sizes = [8, 128], strides = [1, 1]} : vector<8x512xf32> to vector<8x128xf32>
    %52 = arith.negf %51 : vector<8x128xf32>
    %53 = math.exp %52 : vector<8x128xf32>
    %cst_24 = arith.constant 1.000000e+00 : f32
    %54 = vector.broadcast %cst_24 : f32 to vector<8x128xf32>
    %55 = arith.addf %54, %53 : vector<8x128xf32>
    %56 = arith.divf %54, %55 : vector<8x128xf32>
    %57 = vector.extract_strided_slice %50 {offsets = [0, 128], sizes = [8, 128], strides = [1, 1]} : vector<8x512xf32> to vector<8x128xf32>
    %58 = arith.negf %57 : vector<8x128xf32>
    %59 = math.exp %58 : vector<8x128xf32>
    %cst_25 = arith.constant 1.000000e+00 : f32
    %60 = vector.broadcast %cst_25 : f32 to vector<8x128xf32>
    %61 = arith.addf %60, %59 : vector<8x128xf32>
    %62 = arith.divf %60, %61 : vector<8x128xf32>
    %63 = vector.extract_strided_slice %50 {offsets = [0, 256], sizes = [8, 128], strides = [1, 1]} : vector<8x512xf32> to vector<8x128xf32>
    %64 = math.tanh %63 : vector<8x128xf32>
    %65 = vector.extract_strided_slice %50 {offsets = [0, 384], sizes = [8, 128], strides = [1, 1]} : vector<8x512xf32> to vector<8x128xf32>
    %66 = arith.negf %65 : vector<8x128xf32>
    %67 = math.exp %66 : vector<8x128xf32>
    %cst_26 = arith.constant 1.000000e+00 : f32
    %68 = vector.broadcast %cst_26 : f32 to vector<8x128xf32>
    %69 = arith.addf %68, %67 : vector<8x128xf32>
    %70 = arith.divf %68, %69 : vector<8x128xf32>
    %71 = arith.mulf %62, %40 : vector<8x128xf32>
    %72 = arith.mulf %56, %64 : vector<8x128xf32>
    %73 = arith.addf %71, %72 : vector<8x128xf32>
    %74 = math.tanh %73 : vector<8x128xf32>
    %75 = arith.mulf %70, %74 : vector<8x128xf32>
    %76 = arith.index_cast %46 : i32 to index
    %c0_27 = arith.constant 0 : index
    %77 = vector.load %arg14[%76, %c0_27] : memref<64x128xf32, #tpu.memory_space<vmem>>, vector<8x128xf32>
    tpu.vector_store %arg14[%76, %c0_27], %75 {strides = array<i32>} : memref<64x128xf32, #tpu.memory_space<vmem>>, vector<8x128xf32>,
    %c2_i32 = arith.constant 2 : i32
    %c8_i32_28 = arith.constant 8 : i32
    %78 = arith.muli %c2_i32, %c8_i32_28 : i32
    %79 = tpu.assume_multiple %78, 8 : i32
    %80 = arith.index_cast %79 : i32 to index
    %c0_29 = arith.constant 0 : index
    %81 = vector.load %arg15[%80, %c0_29] : memref<64x512xf32, #tpu.memory_space<vmem>>, vector<8x512xf32>
    %cst_30 = arith.constant dense<0.000000e+00> : vector<8x512xf32>
    %82 = tpu.matmul %75, %7, %cst_30 {dimension_numbers = #tpu.dot_dimension_numbers<[1], [0], [0], [1], [0, 0, 1, 1], [], []>} : vector<8x128xf32>, vector<128x512xf32>, vector<8x512xf32> -> vector<8x512xf32>
    %83 = arith.addf %81, %82 : vector<8x512xf32>
    %84 = vector.extract_strided_slice %83 {offsets = [0, 0], sizes = [8, 128], strides = [1, 1]} : vector<8x512xf32> to vector<8x128xf32>
    %85 = arith.negf %84 : vector<8x128xf32>
    %86 = math.exp %85 : vector<8x128xf32>
    %cst_31 = arith.constant 1.000000e+00 : f32
    %87 = vector.broadcast %cst_31 : f32 to vector<8x128xf32>
    %88 = arith.addf %87, %86 : vector<8x128xf32>
    %89 = arith.divf %87, %88 : vector<8x128xf32>
    %90 = vector.extract_strided_slice %83 {offsets = [0, 128], sizes = [8, 128], strides = [1, 1]} : vector<8x512xf32> to vector<8x128xf32>
    %91 = arith.negf %90 : vector<8x128xf32>
    %92 = math.exp %91 : vector<8x128xf32>
    %cst_32 = arith.constant 1.000000e+00 : f32
    %93 = vector.broadcast %cst_32 : f32 to vector<8x128xf32>
    %94 = arith.addf %93, %92 : vector<8x128xf32>
    %95 = arith.divf %93, %94 : vector<8x128xf32>
    %96 = vector.extract_strided_slice %83 {offsets = [0, 256], sizes = [8, 128], strides = [1, 1]} : vector<8x512xf32> to vector<8x128xf32>
    %97 = math.tanh %96 : vector<8x128xf32>
    %98 = vector.extract_strided_slice %83 {offsets = [0, 384], sizes = [8, 128], strides = [1, 1]} : vector<8x512xf32> to vector<8x128xf32>
    %99 = arith.negf %98 : vector<8x128xf32>
    %100 = math.exp %99 : vector<8x128xf32>
    %cst_33 = arith.constant 1.000000e+00 : f32
    %101 = vector.broadcast %cst_33 : f32 to vector<8x128xf32>
    %102 = arith.addf %101, %100 : vector<8x128xf32>
    %103 = arith.divf %101, %102 : vector<8x128xf32>
    %104 = arith.mulf %95, %73 : vector<8x128xf32>
    %105 = arith.mulf %89, %97 : vector<8x128xf32>
    %106 = arith.addf %104, %105 : vector<8x128xf32>
    %107 = math.tanh %106 : vector<8x128xf32>
    %108 = arith.mulf %103, %107 : vector<8x128xf32>
    %109 = arith.index_cast %79 : i32 to index
    %c0_34 = arith.constant 0 : index
    %110 = vector.load %arg14[%109, %c0_34] : memref<64x128xf32, #tpu.memory_space<vmem>>, vector<8x128xf32>
    tpu.vector_store %arg14[%109, %c0_34], %108 {strides = array<i32>} : memref<64x128xf32, #tpu.memory_space<vmem>>, vector<8x128xf32>,
    %c3_i32 = arith.constant 3 : i32
    %c8_i32_35 = arith.constant 8 : i32
    %111 = arith.muli %c3_i32, %c8_i32_35 : i32
    %112 = tpu.assume_multiple %111, 8 : i32
    %113 = arith.index_cast %112 : i32 to index
    %c0_36 = arith.constant 0 : index
    %114 = vector.load %arg15[%113, %c0_36] : memref<64x512xf32, #tpu.memory_space<vmem>>, vector<8x512xf32>
    %cst_37 = arith.constant dense<0.000000e+00> : vector<8x512xf32>
    %115 = tpu.matmul %108, %7, %cst_37 {dimension_numbers = #tpu.dot_dimension_numbers<[1], [0], [0], [1], [0, 0, 1, 1], [], []>} : vector<8x128xf32>, vector<128x512xf32>, vector<8x512xf32> -> vector<8x512xf32>
    %116 = arith.addf %114, %115 : vector<8x512xf32>
    %117 = vector.extract_strided_slice %116 {offsets = [0, 0], sizes = [8, 128], strides = [1, 1]} : vector<8x512xf32> to vector<8x128xf32>
    %118 = arith.negf %117 : vector<8x128xf32>
    %119 = math.exp %118 : vector<8x128xf32>
    %cst_38 = arith.constant 1.000000e+00 : f32
    %120 = vector.broadcast %cst_38 : f32 to vector<8x128xf32>
    %121 = arith.addf %120, %119 : vector<8x128xf32>
    %122 = arith.divf %120, %121 : vector<8x128xf32>
    %123 = vector.extract_strided_slice %116 {offsets = [0, 128], sizes = [8, 128], strides = [1, 1]} : vector<8x512xf32> to vector<8x128xf32>
    %124 = arith.negf %123 : vector<8x128xf32>
    %125 = math.exp %124 : vector<8x128xf32>
    %cst_39 = arith.constant 1.000000e+00 : f32
    %126 = vector.broadcast %cst_39 : f32 to vector<8x128xf32>
    %127 = arith.addf %126, %125 : vector<8x128xf32>
    %128 = arith.divf %126, %127 : vector<8x128xf32>
    %129 = vector.extract_strided_slice %116 {offsets = [0, 256], sizes = [8, 128], strides = [1, 1]} : vector<8x512xf32> to vector<8x128xf32>
    %130 = math.tanh %129 : vector<8x128xf32>
    %131 = vector.extract_strided_slice %116 {offsets = [0, 384], sizes = [8, 128], strides = [1, 1]} : vector<8x512xf32> to vector<8x128xf32>
    %132 = arith.negf %131 : vector<8x128xf32>
    %133 = math.exp %132 : vector<8x128xf32>
    %cst_40 = arith.constant 1.000000e+00 : f32
    %134 = vector.broadcast %cst_40 : f32 to vector<8x128xf32>
    %135 = arith.addf %134, %133 : vector<8x128xf32>
    %136 = arith.divf %134, %135 : vector<8x128xf32>
    %137 = arith.mulf %128, %106 : vector<8x128xf32>
    %138 = arith.mulf %122, %130 : vector<8x128xf32>
    %139 = arith.addf %137, %138 : vector<8x128xf32>
    %140 = math.tanh %139 : vector<8x128xf32>
    %141 = arith.mulf %136, %140 : vector<8x128xf32>
    %142 = arith.index_cast %112 : i32 to index
    %c0_41 = arith.constant 0 : index
    %143 = vector.load %arg14[%142, %c0_41] : memref<64x128xf32, #tpu.memory_space<vmem>>, vector<8x128xf32>
    tpu.vector_store %arg14[%142, %c0_41], %141 {strides = array<i32>} : memref<64x128xf32, #tpu.memory_space<vmem>>, vector<8x128xf32>,
    %c4_i32 = arith.constant 4 : i32
    %c8_i32_42 = arith.constant 8 : i32
    %144 = arith.muli %c4_i32, %c8_i32_42 : i32
    %145 = tpu.assume_multiple %144, 8 : i32
    %146 = arith.index_cast %145 : i32 to index
    %c0_43 = arith.constant 0 : index
    %147 = vector.load %arg15[%146, %c0_43] : memref<64x512xf32, #tpu.memory_space<vmem>>, vector<8x512xf32>
    %cst_44 = arith.constant dense<0.000000e+00> : vector<8x512xf32>
    %148 = tpu.matmul %141, %7, %cst_44 {dimension_numbers = #tpu.dot_dimension_numbers<[1], [0], [0], [1], [0, 0, 1, 1], [], []>} : vector<8x128xf32>, vector<128x512xf32>, vector<8x512xf32> -> vector<8x512xf32>
    %149 = arith.addf %147, %148 : vector<8x512xf32>
    %150 = vector.extract_strided_slice %149 {offsets = [0, 0], sizes = [8, 128], strides = [1, 1]} : vector<8x512xf32> to vector<8x128xf32>
    %151 = arith.negf %150 : vector<8x128xf32>
    %152 = math.exp %151 : vector<8x128xf32>
    %cst_45 = arith.constant 1.000000e+00 : f32
    %153 = vector.broadcast %cst_45 : f32 to vector<8x128xf32>
    %154 = arith.addf %153, %152 : vector<8x128xf32>
    %155 = arith.divf %153, %154 : vector<8x128xf32>
    %156 = vector.extract_strided_slice %149 {offsets = [0, 128], sizes = [8, 128], strides = [1, 1]} : vector<8x512xf32> to vector<8x128xf32>
    %157 = arith.negf %156 : vector<8x128xf32>
    %158 = math.exp %157 : vector<8x128xf32>
    %cst_46 = arith.constant 1.000000e+00 : f32
    %159 = vector.broadcast %cst_46 : f32 to vector<8x128xf32>
    %160 = arith.addf %159, %158 : vector<8x128xf32>
    %161 = arith.divf %159, %160 : vector<8x128xf32>
    %162 = vector.extract_strided_slice %149 {offsets = [0, 256], sizes = [8, 128], strides = [1, 1]} : vector<8x512xf32> to vector<8x128xf32>
    %163 = math.tanh %162 : vector<8x128xf32>
    %164 = vector.extract_strided_slice %149 {offsets = [0, 384], sizes = [8, 128], strides = [1, 1]} : vector<8x512xf32> to vector<8x128xf32>
    %165 = arith.negf %164 : vector<8x128xf32>
    %166 = math.exp %165 : vector<8x128xf32>
    %cst_47 = arith.constant 1.000000e+00 : f32
    %167 = vector.broadcast %cst_47 : f32 to vector<8x128xf32>
    %168 = arith.addf %167, %166 : vector<8x128xf32>
    %169 = arith.divf %167, %168 : vector<8x128xf32>
    %170 = arith.mulf %161, %139 : vector<8x128xf32>
    %171 = arith.mulf %155, %163 : vector<8x128xf32>
    %172 = arith.addf %170, %171 : vector<8x128xf32>
    %173 = math.tanh %172 : vector<8x128xf32>
    %174 = arith.mulf %169, %173 : vector<8x128xf32>
    %175 = arith.index_cast %145 : i32 to index
    %c0_48 = arith.constant 0 : index
    %176 = vector.load %arg14[%175, %c0_48] : memref<64x128xf32, #tpu.memory_space<vmem>>, vector<8x128xf32>
    tpu.vector_store %arg14[%175, %c0_48], %174 {strides = array<i32>} : memref<64x128xf32, #tpu.memory_space<vmem>>, vector<8x128xf32>,
    %c5_i32 = arith.constant 5 : i32
    %c8_i32_49 = arith.constant 8 : i32
    %177 = arith.muli %c5_i32, %c8_i32_49 : i32
    %178 = tpu.assume_multiple %177, 8 : i32
    %179 = arith.index_cast %178 : i32 to index
    %c0_50 = arith.constant 0 : index
    %180 = vector.load %arg15[%179, %c0_50] : memref<64x512xf32, #tpu.memory_space<vmem>>, vector<8x512xf32>
    %cst_51 = arith.constant dense<0.000000e+00> : vector<8x512xf32>
    %181 = tpu.matmul %174, %7, %cst_51 {dimension_numbers = #tpu.dot_dimension_numbers<[1], [0], [0], [1], [0, 0, 1, 1], [], []>} : vector<8x128xf32>, vector<128x512xf32>, vector<8x512xf32> -> vector<8x512xf32>
    %182 = arith.addf %180, %181 : vector<8x512xf32>
    %183 = vector.extract_strided_slice %182 {offsets = [0, 0], sizes = [8, 128], strides = [1, 1]} : vector<8x512xf32> to vector<8x128xf32>
    %184 = arith.negf %183 : vector<8x128xf32>
    %185 = math.exp %184 : vector<8x128xf32>
    %cst_52 = arith.constant 1.000000e+00 : f32
    %186 = vector.broadcast %cst_52 : f32 to vector<8x128xf32>
    %187 = arith.addf %186, %185 : vector<8x128xf32>
    %188 = arith.divf %186, %187 : vector<8x128xf32>
    %189 = vector.extract_strided_slice %182 {offsets = [0, 128], sizes = [8, 128], strides = [1, 1]} : vector<8x512xf32> to vector<8x128xf32>
    %190 = arith.negf %189 : vector<8x128xf32>
    %191 = math.exp %190 : vector<8x128xf32>
    %cst_53 = arith.constant 1.000000e+00 : f32
    %192 = vector.broadcast %cst_53 : f32 to vector<8x128xf32>
    %193 = arith.addf %192, %191 : vector<8x128xf32>
    %194 = arith.divf %192, %193 : vector<8x128xf32>
    %195 = vector.extract_strided_slice %182 {offsets = [0, 256], sizes = [8, 128], strides = [1, 1]} : vector<8x512xf32> to vector<8x128xf32>
    %196 = math.tanh %195 : vector<8x128xf32>
    %197 = vector.extract_strided_slice %182 {offsets = [0, 384], sizes = [8, 128], strides = [1, 1]} : vector<8x512xf32> to vector<8x128xf32>
    %198 = arith.negf %197 : vector<8x128xf32>
    %199 = math.exp %198 : vector<8x128xf32>
    %cst_54 = arith.constant 1.000000e+00 : f32
    %200 = vector.broadcast %cst_54 : f32 to vector<8x128xf32>
    %201 = arith.addf %200, %199 : vector<8x128xf32>
    %202 = arith.divf %200, %201 : vector<8x128xf32>
    %203 = arith.mulf %194, %172 : vector<8x128xf32>
    %204 = arith.mulf %188, %196 : vector<8x128xf32>
    %205 = arith.addf %203, %204 : vector<8x128xf32>
    %206 = math.tanh %205 : vector<8x128xf32>
    %207 = arith.mulf %202, %206 : vector<8x128xf32>
    %208 = arith.index_cast %178 : i32 to index
    %c0_55 = arith.constant 0 : index
    %209 = vector.load %arg14[%208, %c0_55] : memref<64x128xf32, #tpu.memory_space<vmem>>, vector<8x128xf32>
    tpu.vector_store %arg14[%208, %c0_55], %207 {strides = array<i32>} : memref<64x128xf32, #tpu.memory_space<vmem>>, vector<8x128xf32>,
    %c6_i32 = arith.constant 6 : i32
    %c8_i32_56 = arith.constant 8 : i32
    %210 = arith.muli %c6_i32, %c8_i32_56 : i32
    %211 = tpu.assume_multiple %210, 8 : i32
    %212 = arith.index_cast %211 : i32 to index
    %c0_57 = arith.constant 0 : index
    %213 = vector.load %arg15[%212, %c0_57] : memref<64x512xf32, #tpu.memory_space<vmem>>, vector<8x512xf32>
    %cst_58 = arith.constant dense<0.000000e+00> : vector<8x512xf32>
    %214 = tpu.matmul %207, %7, %cst_58 {dimension_numbers = #tpu.dot_dimension_numbers<[1], [0], [0], [1], [0, 0, 1, 1], [], []>} : vector<8x128xf32>, vector<128x512xf32>, vector<8x512xf32> -> vector<8x512xf32>
    %215 = arith.addf %213, %214 : vector<8x512xf32>
    %216 = vector.extract_strided_slice %215 {offsets = [0, 0], sizes = [8, 128], strides = [1, 1]} : vector<8x512xf32> to vector<8x128xf32>
    %217 = arith.negf %216 : vector<8x128xf32>
    %218 = math.exp %217 : vector<8x128xf32>
    %cst_59 = arith.constant 1.000000e+00 : f32
    %219 = vector.broadcast %cst_59 : f32 to vector<8x128xf32>
    %220 = arith.addf %219, %218 : vector<8x128xf32>
    %221 = arith.divf %219, %220 : vector<8x128xf32>
    %222 = vector.extract_strided_slice %215 {offsets = [0, 128], sizes = [8, 128], strides = [1, 1]} : vector<8x512xf32> to vector<8x128xf32>
    %223 = arith.negf %222 : vector<8x128xf32>
    %224 = math.exp %223 : vector<8x128xf32>
    %cst_60 = arith.constant 1.000000e+00 : f32
    %225 = vector.broadcast %cst_60 : f32 to vector<8x128xf32>
    %226 = arith.addf %225, %224 : vector<8x128xf32>
    %227 = arith.divf %225, %226 : vector<8x128xf32>
    %228 = vector.extract_strided_slice %215 {offsets = [0, 256], sizes = [8, 128], strides = [1, 1]} : vector<8x512xf32> to vector<8x128xf32>
    %229 = math.tanh %228 : vector<8x128xf32>
    %230 = vector.extract_strided_slice %215 {offsets = [0, 384], sizes = [8, 128], strides = [1, 1]} : vector<8x512xf32> to vector<8x128xf32>
    %231 = arith.negf %230 : vector<8x128xf32>
    %232 = math.exp %231 : vector<8x128xf32>
    %cst_61 = arith.constant 1.000000e+00 : f32
    %233 = vector.broadcast %cst_61 : f32 to vector<8x128xf32>
    %234 = arith.addf %233, %232 : vector<8x128xf32>
    %235 = arith.divf %233, %234 : vector<8x128xf32>
    %236 = arith.mulf %227, %205 : vector<8x128xf32>
    %237 = arith.mulf %221, %229 : vector<8x128xf32>
    %238 = arith.addf %236, %237 : vector<8x128xf32>
    %239 = math.tanh %238 : vector<8x128xf32>
    %240 = arith.mulf %235, %239 : vector<8x128xf32>
    %241 = arith.index_cast %211 : i32 to index
    %c0_62 = arith.constant 0 : index
    %242 = vector.load %arg14[%241, %c0_62] : memref<64x128xf32, #tpu.memory_space<vmem>>, vector<8x128xf32>
    tpu.vector_store %arg14[%241, %c0_62], %240 {strides = array<i32>} : memref<64x128xf32, #tpu.memory_space<vmem>>, vector<8x128xf32>,
    %c7_i32 = arith.constant 7 : i32
    %c8_i32_63 = arith.constant 8 : i32
    %243 = arith.muli %c7_i32, %c8_i32_63 : i32
    %244 = tpu.assume_multiple %243, 8 : i32
    %245 = arith.index_cast %244 : i32 to index
    %c0_64 = arith.constant 0 : index
    %246 = vector.load %arg15[%245, %c0_64] : memref<64x512xf32, #tpu.memory_space<vmem>>, vector<8x512xf32>
    %cst_65 = arith.constant dense<0.000000e+00> : vector<8x512xf32>
    %247 = tpu.matmul %240, %7, %cst_65 {dimension_numbers = #tpu.dot_dimension_numbers<[1], [0], [0], [1], [0, 0, 1, 1], [], []>} : vector<8x128xf32>, vector<128x512xf32>, vector<8x512xf32> -> vector<8x512xf32>
    %248 = arith.addf %246, %247 : vector<8x512xf32>
    %249 = vector.extract_strided_slice %248 {offsets = [0, 0], sizes = [8, 128], strides = [1, 1]} : vector<8x512xf32> to vector<8x128xf32>
    %250 = arith.negf %249 : vector<8x128xf32>
    %251 = math.exp %250 : vector<8x128xf32>
    %cst_66 = arith.constant 1.000000e+00 : f32
    %252 = vector.broadcast %cst_66 : f32 to vector<8x128xf32>
    %253 = arith.addf %252, %251 : vector<8x128xf32>
    %254 = arith.divf %252, %253 : vector<8x128xf32>
    %255 = vector.extract_strided_slice %248 {offsets = [0, 128], sizes = [8, 128], strides = [1, 1]} : vector<8x512xf32> to vector<8x128xf32>
    %256 = arith.negf %255 : vector<8x128xf32>
    %257 = math.exp %256 : vector<8x128xf32>
    %cst_67 = arith.constant 1.000000e+00 : f32
    %258 = vector.broadcast %cst_67 : f32 to vector<8x128xf32>
    %259 = arith.addf %258, %257 : vector<8x128xf32>
    %260 = arith.divf %258, %259 : vector<8x128xf32>
    %261 = vector.extract_strided_slice %248 {offsets = [0, 256], sizes = [8, 128], strides = [1, 1]} : vector<8x512xf32> to vector<8x128xf32>
    %262 = math.tanh %261 : vector<8x128xf32>
    %263 = vector.extract_strided_slice %248 {offsets = [0, 384], sizes = [8, 128], strides = [1, 1]} : vector<8x512xf32> to vector<8x128xf32>
    %264 = arith.negf %263 : vector<8x128xf32>
    %265 = math.exp %264 : vector<8x128xf32>
    %cst_68 = arith.constant 1.000000e+00 : f32
    %266 = vector.broadcast %cst_68 : f32 to vector<8x128xf32>
    %267 = arith.addf %266, %265 : vector<8x128xf32>
    %268 = arith.divf %266, %267 : vector<8x128xf32>
    %269 = arith.mulf %260, %238 : vector<8x128xf32>
    %270 = arith.mulf %254, %262 : vector<8x128xf32>
    %271 = arith.addf %269, %270 : vector<8x128xf32>
    %272 = math.tanh %271 : vector<8x128xf32>
    %273 = arith.mulf %268, %272 : vector<8x128xf32>
    %274 = arith.index_cast %244 : i32 to index
    %c0_69 = arith.constant 0 : index
    %275 = vector.load %arg14[%274, %c0_69] : memref<64x128xf32, #tpu.memory_space<vmem>>, vector<8x128xf32>
    tpu.vector_store %arg14[%274, %c0_69], %273 {strides = array<i32>} : memref<64x128xf32, #tpu.memory_space<vmem>>, vector<8x128xf32>,
    %c8_i32_70 = arith.constant 8 : i32
    %c0_71 = arith.constant 0 : index
    %c0_72 = arith.constant 0 : index
    %c0_73 = arith.constant 0 : index
    %276 = vector.load %arg12[%c0_71, %c0_72, %c0_73] : memref<2x8x128xf32, #tpu.memory_space<vmem>>, vector<1x8x128xf32>
    %277 = vector.shape_cast %276 : vector<1x8x128xf32> to vector<8x128xf32>
    %278 = vector.shape_cast %273 : vector<8x128xf32> to vector<1x8x128xf32>
    tpu.vector_store %arg12[%c0_71, %c0_72, %c0_73], %278 {strides = array<i32>} : memref<2x8x128xf32, #tpu.memory_space<vmem>>, vector<1x8x128xf32>,
    %c0_74 = arith.constant 0 : index
    %c0_75 = arith.constant 0 : index
    %c0_76 = arith.constant 0 : index
    %279 = vector.load %arg13[%c0_74, %c0_75, %c0_76] : memref<2x8x128xf32, #tpu.memory_space<vmem>>, vector<1x8x128xf32>
    %280 = vector.shape_cast %279 : vector<1x8x128xf32> to vector<8x128xf32>
    %281 = vector.shape_cast %271 : vector<8x128xf32> to vector<1x8x128xf32>
    tpu.vector_store %arg13[%c0_74, %c0_75, %c0_76], %281 {strides = array<i32>} : memref<2x8x128xf32, #tpu.memory_space<vmem>>, vector<1x8x128xf32>,
    %c0_77 = arith.constant 0 : index
    %c0_78 = arith.constant 0 : index
    %282 = vector.load %arg14[%c0_77, %c0_78] : memref<64x128xf32, #tpu.memory_space<vmem>>, vector<64x128xf32>
    %c0_79 = arith.constant 0 : index
    %c0_80 = arith.constant 0 : index
    %283 = vector.load %arg4[%c0_79, %c0_80] : memref<128x512xf32, #tpu.memory_space<vmem>>, vector<128x512xf32>
    %cst_81 = arith.constant dense<0.000000e+00> : vector<64x512xf32>
    %284 = tpu.matmul %282, %283, %cst_81 {dimension_numbers = #tpu.dot_dimension_numbers<[1], [0], [0], [1], [0, 0, 1, 1], [], []>} : vector<64x128xf32>, vector<128x512xf32>, vector<64x512xf32> -> vector<64x512xf32>
    %c0_82 = arith.constant 0 : index
    %c0_83 = arith.constant 0 : index
    %285 = vector.load %arg6[%c0_82, %c0_83] : memref<1x512xf32, #tpu.memory_space<vmem>>, vector<1x512xf32>
    %286 = vector.broadcast %285 : vector<1x512xf32> to vector<64x512xf32>
    %287 = arith.addf %284, %286 : vector<64x512xf32>
    %c0_84 = arith.constant 0 : index
    %c0_85 = arith.constant 0 : index
    %288 = vector.load %arg15[%c0_84, %c0_85] : memref<64x512xf32, #tpu.memory_space<vmem>>, vector<64x512xf32>
    tpu.vector_store %arg15[%c0_84, %c0_85], %287 {strides = array<i32>} : memref<64x512xf32, #tpu.memory_space<vmem>>, vector<64x512xf32>,
    %c0_86 = arith.constant 0 : index
    %c0_87 = arith.constant 0 : index
    %289 = vector.load %arg5[%c0_86, %c0_87] : memref<128x512xf32, #tpu.memory_space<vmem>>, vector<128x512xf32>
    %c1 = arith.constant 1 : index
    %c0_88 = arith.constant 0 : index
    %c0_89 = arith.constant 0 : index
    %290 = vector.load %arg9[%c1, %c0_88, %c0_89] : memref<2x8x128xf32, #tpu.memory_space<vmem>>, vector<1x8x128xf32>
    %291 = vector.shape_cast %290 : vector<1x8x128xf32> to vector<8x128xf32>
    %c1_90 = arith.constant 1 : index
    %c0_91 = arith.constant 0 : index
    %c0_92 = arith.constant 0 : index
    %292 = vector.load %arg10[%c1_90, %c0_91, %c0_92] : memref<2x8x128xf32, #tpu.memory_space<vmem>>, vector<1x8x128xf32>
    %293 = vector.shape_cast %292 : vector<1x8x128xf32> to vector<8x128xf32>
    %c0_i32_93 = arith.constant 0 : i32
    %c8_i32_94 = arith.constant 8 : i32
    %294 = arith.muli %c0_i32_93, %c8_i32_94 : i32
    %295 = tpu.assume_multiple %294, 8 : i32
    %296 = arith.index_cast %295 : i32 to index
    %c0_95 = arith.constant 0 : index
    %297 = vector.load %arg15[%296, %c0_95] : memref<64x512xf32, #tpu.memory_space<vmem>>, vector<8x512xf32>
    %cst_96 = arith.constant dense<0.000000e+00> : vector<8x512xf32>
    %298 = tpu.matmul %291, %289, %cst_96 {dimension_numbers = #tpu.dot_dimension_numbers<[1], [0], [0], [1], [0, 0, 1, 1], [], []>} : vector<8x128xf32>, vector<128x512xf32>, vector<8x512xf32> -> vector<8x512xf32>
    %299 = arith.addf %297, %298 : vector<8x512xf32>
    %300 = vector.extract_strided_slice %299 {offsets = [0, 0], sizes = [8, 128], strides = [1, 1]} : vector<8x512xf32> to vector<8x128xf32>
    %301 = arith.negf %300 : vector<8x128xf32>
    %302 = math.exp %301 : vector<8x128xf32>
    %cst_97 = arith.constant 1.000000e+00 : f32
    %303 = vector.broadcast %cst_97 : f32 to vector<8x128xf32>
    %304 = arith.addf %303, %302 : vector<8x128xf32>
    %305 = arith.divf %303, %304 : vector<8x128xf32>
    %306 = vector.extract_strided_slice %299 {offsets = [0, 128], sizes = [8, 128], strides = [1, 1]} : vector<8x512xf32> to vector<8x128xf32>
    %307 = arith.negf %306 : vector<8x128xf32>
    %308 = math.exp %307 : vector<8x128xf32>
    %cst_98 = arith.constant 1.000000e+00 : f32
    %309 = vector.broadcast %cst_98 : f32 to vector<8x128xf32>
    %310 = arith.addf %309, %308 : vector<8x128xf32>
    %311 = arith.divf %309, %310 : vector<8x128xf32>
    %312 = vector.extract_strided_slice %299 {offsets = [0, 256], sizes = [8, 128], strides = [1, 1]} : vector<8x512xf32> to vector<8x128xf32>
    %313 = math.tanh %312 : vector<8x128xf32>
    %314 = vector.extract_strided_slice %299 {offsets = [0, 384], sizes = [8, 128], strides = [1, 1]} : vector<8x512xf32> to vector<8x128xf32>
    %315 = arith.negf %314 : vector<8x128xf32>
    %316 = math.exp %315 : vector<8x128xf32>
    %cst_99 = arith.constant 1.000000e+00 : f32
    %317 = vector.broadcast %cst_99 : f32 to vector<8x128xf32>
    %318 = arith.addf %317, %316 : vector<8x128xf32>
    %319 = arith.divf %317, %318 : vector<8x128xf32>
    %320 = arith.mulf %311, %293 : vector<8x128xf32>
    %321 = arith.mulf %305, %313 : vector<8x128xf32>
    %322 = arith.addf %320, %321 : vector<8x128xf32>
    %323 = math.tanh %322 : vector<8x128xf32>
    %324 = arith.mulf %319, %323 : vector<8x128xf32>
    %c1_i32_100 = arith.constant 1 : i32
    %c8_i32_101 = arith.constant 8 : i32
    %325 = arith.muli %c1_i32_100, %c8_i32_101 : i32
    %326 = tpu.assume_multiple %325, 8 : i32
    %327 = arith.index_cast %326 : i32 to index
    %c0_102 = arith.constant 0 : index
    %328 = vector.load %arg15[%327, %c0_102] : memref<64x512xf32, #tpu.memory_space<vmem>>, vector<8x512xf32>
    %cst_103 = arith.constant dense<0.000000e+00> : vector<8x512xf32>
    %329 = tpu.matmul %324, %289, %cst_103 {dimension_numbers = #tpu.dot_dimension_numbers<[1], [0], [0], [1], [0, 0, 1, 1], [], []>} : vector<8x128xf32>, vector<128x512xf32>, vector<8x512xf32> -> vector<8x512xf32>
    %330 = arith.addf %328, %329 : vector<8x512xf32>
    %331 = vector.extract_strided_slice %330 {offsets = [0, 0], sizes = [8, 128], strides = [1, 1]} : vector<8x512xf32> to vector<8x128xf32>
    %332 = arith.negf %331 : vector<8x128xf32>
    %333 = math.exp %332 : vector<8x128xf32>
    %cst_104 = arith.constant 1.000000e+00 : f32
    %334 = vector.broadcast %cst_104 : f32 to vector<8x128xf32>
    %335 = arith.addf %334, %333 : vector<8x128xf32>
    %336 = arith.divf %334, %335 : vector<8x128xf32>
    %337 = vector.extract_strided_slice %330 {offsets = [0, 128], sizes = [8, 128], strides = [1, 1]} : vector<8x512xf32> to vector<8x128xf32>
    %338 = arith.negf %337 : vector<8x128xf32>
    %339 = math.exp %338 : vector<8x128xf32>
    %cst_105 = arith.constant 1.000000e+00 : f32
    %340 = vector.broadcast %cst_105 : f32 to vector<8x128xf32>
    %341 = arith.addf %340, %339 : vector<8x128xf32>
    %342 = arith.divf %340, %341 : vector<8x128xf32>
    %343 = vector.extract_strided_slice %330 {offsets = [0, 256], sizes = [8, 128], strides = [1, 1]} : vector<8x512xf32> to vector<8x128xf32>
    %344 = math.tanh %343 : vector<8x128xf32>
    %345 = vector.extract_strided_slice %330 {offsets = [0, 384], sizes = [8, 128], strides = [1, 1]} : vector<8x512xf32> to vector<8x128xf32>
    %346 = arith.negf %345 : vector<8x128xf32>
    %347 = math.exp %346 : vector<8x128xf32>
    %cst_106 = arith.constant 1.000000e+00 : f32
    %348 = vector.broadcast %cst_106 : f32 to vector<8x128xf32>
    %349 = arith.addf %348, %347 : vector<8x128xf32>
    %350 = arith.divf %348, %349 : vector<8x128xf32>
    %351 = arith.mulf %342, %322 : vector<8x128xf32>
    %352 = arith.mulf %336, %344 : vector<8x128xf32>
    %353 = arith.addf %351, %352 : vector<8x128xf32>
    %354 = math.tanh %353 : vector<8x128xf32>
    %355 = arith.mulf %350, %354 : vector<8x128xf32>
    %c2_i32_107 = arith.constant 2 : i32
    %c8_i32_108 = arith.constant 8 : i32
    %356 = arith.muli %c2_i32_107, %c8_i32_108 : i32
    %357 = tpu.assume_multiple %356, 8 : i32
    %358 = arith.index_cast %357 : i32 to index
    %c0_109 = arith.constant 0 : index
    %359 = vector.load %arg15[%358, %c0_109] : memref<64x512xf32, #tpu.memory_space<vmem>>, vector<8x512xf32>
    %cst_110 = arith.constant dense<0.000000e+00> : vector<8x512xf32>
    %360 = tpu.matmul %355, %289, %cst_110 {dimension_numbers = #tpu.dot_dimension_numbers<[1], [0], [0], [1], [0, 0, 1, 1], [], []>} : vector<8x128xf32>, vector<128x512xf32>, vector<8x512xf32> -> vector<8x512xf32>
    %361 = arith.addf %359, %360 : vector<8x512xf32>
    %362 = vector.extract_strided_slice %361 {offsets = [0, 0], sizes = [8, 128], strides = [1, 1]} : vector<8x512xf32> to vector<8x128xf32>
    %363 = arith.negf %362 : vector<8x128xf32>
    %364 = math.exp %363 : vector<8x128xf32>
    %cst_111 = arith.constant 1.000000e+00 : f32
    %365 = vector.broadcast %cst_111 : f32 to vector<8x128xf32>
    %366 = arith.addf %365, %364 : vector<8x128xf32>
    %367 = arith.divf %365, %366 : vector<8x128xf32>
    %368 = vector.extract_strided_slice %361 {offsets = [0, 128], sizes = [8, 128], strides = [1, 1]} : vector<8x512xf32> to vector<8x128xf32>
    %369 = arith.negf %368 : vector<8x128xf32>
    %370 = math.exp %369 : vector<8x128xf32>
    %cst_112 = arith.constant 1.000000e+00 : f32
    %371 = vector.broadcast %cst_112 : f32 to vector<8x128xf32>
    %372 = arith.addf %371, %370 : vector<8x128xf32>
    %373 = arith.divf %371, %372 : vector<8x128xf32>
    %374 = vector.extract_strided_slice %361 {offsets = [0, 256], sizes = [8, 128], strides = [1, 1]} : vector<8x512xf32> to vector<8x128xf32>
    %375 = math.tanh %374 : vector<8x128xf32>
    %376 = vector.extract_strided_slice %361 {offsets = [0, 384], sizes = [8, 128], strides = [1, 1]} : vector<8x512xf32> to vector<8x128xf32>
    %377 = arith.negf %376 : vector<8x128xf32>
    %378 = math.exp %377 : vector<8x128xf32>
    %cst_113 = arith.constant 1.000000e+00 : f32
    %379 = vector.broadcast %cst_113 : f32 to vector<8x128xf32>
    %380 = arith.addf %379, %378 : vector<8x128xf32>
    %381 = arith.divf %379, %380 : vector<8x128xf32>
    %382 = arith.mulf %373, %353 : vector<8x128xf32>
    %383 = arith.mulf %367, %375 : vector<8x128xf32>
    %384 = arith.addf %382, %383 : vector<8x128xf32>
    %385 = math.tanh %384 : vector<8x128xf32>
    %386 = arith.mulf %381, %385 : vector<8x128xf32>
    %c3_i32_114 = arith.constant 3 : i32
    %c8_i32_115 = arith.constant 8 : i32
    %387 = arith.muli %c3_i32_114, %c8_i32_115 : i32
    %388 = tpu.assume_multiple %387, 8 : i32
    %389 = arith.index_cast %388 : i32 to index
    %c0_116 = arith.constant 0 : index
    %390 = vector.load %arg15[%389, %c0_116] : memref<64x512xf32, #tpu.memory_space<vmem>>, vector<8x512xf32>
    %cst_117 = arith.constant dense<0.000000e+00> : vector<8x512xf32>
    %391 = tpu.matmul %386, %289, %cst_117 {dimension_numbers = #tpu.dot_dimension_numbers<[1], [0], [0], [1], [0, 0, 1, 1], [], []>} : vector<8x128xf32>, vector<128x512xf32>, vector<8x512xf32> -> vector<8x512xf32>
    %392 = arith.addf %390, %391 : vector<8x512xf32>
    %393 = vector.extract_strided_slice %392 {offsets = [0, 0], sizes = [8, 128], strides = [1, 1]} : vector<8x512xf32> to vector<8x128xf32>
    %394 = arith.negf %393 : vector<8x128xf32>
    %395 = math.exp %394 : vector<8x128xf32>
    %cst_118 = arith.constant 1.000000e+00 : f32
    %396 = vector.broadcast %cst_118 : f32 to vector<8x128xf32>
    %397 = arith.addf %396, %395 : vector<8x128xf32>
    %398 = arith.divf %396, %397 : vector<8x128xf32>
    %399 = vector.extract_strided_slice %392 {offsets = [0, 128], sizes = [8, 128], strides = [1, 1]} : vector<8x512xf32> to vector<8x128xf32>
    %400 = arith.negf %399 : vector<8x128xf32>
    %401 = math.exp %400 : vector<8x128xf32>
    %cst_119 = arith.constant 1.000000e+00 : f32
    %402 = vector.broadcast %cst_119 : f32 to vector<8x128xf32>
    %403 = arith.addf %402, %401 : vector<8x128xf32>
    %404 = arith.divf %402, %403 : vector<8x128xf32>
    %405 = vector.extract_strided_slice %392 {offsets = [0, 256], sizes = [8, 128], strides = [1, 1]} : vector<8x512xf32> to vector<8x128xf32>
    %406 = math.tanh %405 : vector<8x128xf32>
    %407 = vector.extract_strided_slice %392 {offsets = [0, 384], sizes = [8, 128], strides = [1, 1]} : vector<8x512xf32> to vector<8x128xf32>
    %408 = arith.negf %407 : vector<8x128xf32>
    %409 = math.exp %408 : vector<8x128xf32>
    %cst_120 = arith.constant 1.000000e+00 : f32
    %410 = vector.broadcast %cst_120 : f32 to vector<8x128xf32>
    %411 = arith.addf %410, %409 : vector<8x128xf32>
    %412 = arith.divf %410, %411 : vector<8x128xf32>
    %413 = arith.mulf %404, %384 : vector<8x128xf32>
    %414 = arith.mulf %398, %406 : vector<8x128xf32>
    %415 = arith.addf %413, %414 : vector<8x128xf32>
    %416 = math.tanh %415 : vector<8x128xf32>
    %417 = arith.mulf %412, %416 : vector<8x128xf32>
    %c4_i32_121 = arith.constant 4 : i32
    %c8_i32_122 = arith.constant 8 : i32
    %418 = arith.muli %c4_i32_121, %c8_i32_122 : i32
    %419 = tpu.assume_multiple %418, 8 : i32
    %420 = arith.index_cast %419 : i32 to index
    %c0_123 = arith.constant 0 : index
    %421 = vector.load %arg15[%420, %c0_123] : memref<64x512xf32, #tpu.memory_space<vmem>>, vector<8x512xf32>
    %cst_124 = arith.constant dense<0.000000e+00> : vector<8x512xf32>
    %422 = tpu.matmul %417, %289, %cst_124 {dimension_numbers = #tpu.dot_dimension_numbers<[1], [0], [0], [1], [0, 0, 1, 1], [], []>} : vector<8x128xf32>, vector<128x512xf32>, vector<8x512xf32> -> vector<8x512xf32>
    %423 = arith.addf %421, %422 : vector<8x512xf32>
    %424 = vector.extract_strided_slice %423 {offsets = [0, 0], sizes = [8, 128], strides = [1, 1]} : vector<8x512xf32> to vector<8x128xf32>
    %425 = arith.negf %424 : vector<8x128xf32>
    %426 = math.exp %425 : vector<8x128xf32>
    %cst_125 = arith.constant 1.000000e+00 : f32
    %427 = vector.broadcast %cst_125 : f32 to vector<8x128xf32>
    %428 = arith.addf %427, %426 : vector<8x128xf32>
    %429 = arith.divf %427, %428 : vector<8x128xf32>
    %430 = vector.extract_strided_slice %423 {offsets = [0, 128], sizes = [8, 128], strides = [1, 1]} : vector<8x512xf32> to vector<8x128xf32>
    %431 = arith.negf %430 : vector<8x128xf32>
    %432 = math.exp %431 : vector<8x128xf32>
    %cst_126 = arith.constant 1.000000e+00 : f32
    %433 = vector.broadcast %cst_126 : f32 to vector<8x128xf32>
    %434 = arith.addf %433, %432 : vector<8x128xf32>
    %435 = arith.divf %433, %434 : vector<8x128xf32>
    %436 = vector.extract_strided_slice %423 {offsets = [0, 256], sizes = [8, 128], strides = [1, 1]} : vector<8x512xf32> to vector<8x128xf32>
    %437 = math.tanh %436 : vector<8x128xf32>
    %438 = vector.extract_strided_slice %423 {offsets = [0, 384], sizes = [8, 128], strides = [1, 1]} : vector<8x512xf32> to vector<8x128xf32>
    %439 = arith.negf %438 : vector<8x128xf32>
    %440 = math.exp %439 : vector<8x128xf32>
    %cst_127 = arith.constant 1.000000e+00 : f32
    %441 = vector.broadcast %cst_127 : f32 to vector<8x128xf32>
    %442 = arith.addf %441, %440 : vector<8x128xf32>
    %443 = arith.divf %441, %442 : vector<8x128xf32>
    %444 = arith.mulf %435, %415 : vector<8x128xf32>
    %445 = arith.mulf %429, %437 : vector<8x128xf32>
    %446 = arith.addf %444, %445 : vector<8x128xf32>
    %447 = math.tanh %446 : vector<8x128xf32>
    %448 = arith.mulf %443, %447 : vector<8x128xf32>
    %c5_i32_128 = arith.constant 5 : i32
    %c8_i32_129 = arith.constant 8 : i32
    %449 = arith.muli %c5_i32_128, %c8_i32_129 : i32
    %450 = tpu.assume_multiple %449, 8 : i32
    %451 = arith.index_cast %450 : i32 to index
    %c0_130 = arith.constant 0 : index
    %452 = vector.load %arg15[%451, %c0_130] : memref<64x512xf32, #tpu.memory_space<vmem>>, vector<8x512xf32>
    %cst_131 = arith.constant dense<0.000000e+00> : vector<8x512xf32>
    %453 = tpu.matmul %448, %289, %cst_131 {dimension_numbers = #tpu.dot_dimension_numbers<[1], [0], [0], [1], [0, 0, 1, 1], [], []>} : vector<8x128xf32>, vector<128x512xf32>, vector<8x512xf32> -> vector<8x512xf32>
    %454 = arith.addf %452, %453 : vector<8x512xf32>
    %455 = vector.extract_strided_slice %454 {offsets = [0, 0], sizes = [8, 128], strides = [1, 1]} : vector<8x512xf32> to vector<8x128xf32>
    %456 = arith.negf %455 : vector<8x128xf32>
    %457 = math.exp %456 : vector<8x128xf32>
    %cst_132 = arith.constant 1.000000e+00 : f32
    %458 = vector.broadcast %cst_132 : f32 to vector<8x128xf32>
    %459 = arith.addf %458, %457 : vector<8x128xf32>
    %460 = arith.divf %458, %459 : vector<8x128xf32>
    %461 = vector.extract_strided_slice %454 {offsets = [0, 128], sizes = [8, 128], strides = [1, 1]} : vector<8x512xf32> to vector<8x128xf32>
    %462 = arith.negf %461 : vector<8x128xf32>
    %463 = math.exp %462 : vector<8x128xf32>
    %cst_133 = arith.constant 1.000000e+00 : f32
    %464 = vector.broadcast %cst_133 : f32 to vector<8x128xf32>
    %465 = arith.addf %464, %463 : vector<8x128xf32>
    %466 = arith.divf %464, %465 : vector<8x128xf32>
    %467 = vector.extract_strided_slice %454 {offsets = [0, 256], sizes = [8, 128], strides = [1, 1]} : vector<8x512xf32> to vector<8x128xf32>
    %468 = math.tanh %467 : vector<8x128xf32>
    %469 = vector.extract_strided_slice %454 {offsets = [0, 384], sizes = [8, 128], strides = [1, 1]} : vector<8x512xf32> to vector<8x128xf32>
    %470 = arith.negf %469 : vector<8x128xf32>
    %471 = math.exp %470 : vector<8x128xf32>
    %cst_134 = arith.constant 1.000000e+00 : f32
    %472 = vector.broadcast %cst_134 : f32 to vector<8x128xf32>
    %473 = arith.addf %472, %471 : vector<8x128xf32>
    %474 = arith.divf %472, %473 : vector<8x128xf32>
    %475 = arith.mulf %466, %446 : vector<8x128xf32>
    %476 = arith.mulf %460, %468 : vector<8x128xf32>
    %477 = arith.addf %475, %476 : vector<8x128xf32>
    %478 = math.tanh %477 : vector<8x128xf32>
    %479 = arith.mulf %474, %478 : vector<8x128xf32>
    %c6_i32_135 = arith.constant 6 : i32
    %c8_i32_136 = arith.constant 8 : i32
    %480 = arith.muli %c6_i32_135, %c8_i32_136 : i32
    %481 = tpu.assume_multiple %480, 8 : i32
    %482 = arith.index_cast %481 : i32 to index
    %c0_137 = arith.constant 0 : index
    %483 = vector.load %arg15[%482, %c0_137] : memref<64x512xf32, #tpu.memory_space<vmem>>, vector<8x512xf32>
    %cst_138 = arith.constant dense<0.000000e+00> : vector<8x512xf32>
    %484 = tpu.matmul %479, %289, %cst_138 {dimension_numbers = #tpu.dot_dimension_numbers<[1], [0], [0], [1], [0, 0, 1, 1], [], []>} : vector<8x128xf32>, vector<128x512xf32>, vector<8x512xf32> -> vector<8x512xf32>
    %485 = arith.addf %483, %484 : vector<8x512xf32>
    %486 = vector.extract_strided_slice %485 {offsets = [0, 0], sizes = [8, 128], strides = [1, 1]} : vector<8x512xf32> to vector<8x128xf32>
    %487 = arith.negf %486 : vector<8x128xf32>
    %488 = math.exp %487 : vector<8x128xf32>
    %cst_139 = arith.constant 1.000000e+00 : f32
    %489 = vector.broadcast %cst_139 : f32 to vector<8x128xf32>
    %490 = arith.addf %489, %488 : vector<8x128xf32>
    %491 = arith.divf %489, %490 : vector<8x128xf32>
    %492 = vector.extract_strided_slice %485 {offsets = [0, 128], sizes = [8, 128], strides = [1, 1]} : vector<8x512xf32> to vector<8x128xf32>
    %493 = arith.negf %492 : vector<8x128xf32>
    %494 = math.exp %493 : vector<8x128xf32>
    %cst_140 = arith.constant 1.000000e+00 : f32
    %495 = vector.broadcast %cst_140 : f32 to vector<8x128xf32>
    %496 = arith.addf %495, %494 : vector<8x128xf32>
    %497 = arith.divf %495, %496 : vector<8x128xf32>
    %498 = vector.extract_strided_slice %485 {offsets = [0, 256], sizes = [8, 128], strides = [1, 1]} : vector<8x512xf32> to vector<8x128xf32>
    %499 = math.tanh %498 : vector<8x128xf32>
    %500 = vector.extract_strided_slice %485 {offsets = [0, 384], sizes = [8, 128], strides = [1, 1]} : vector<8x512xf32> to vector<8x128xf32>
    %501 = arith.negf %500 : vector<8x128xf32>
    %502 = math.exp %501 : vector<8x128xf32>
    %cst_141 = arith.constant 1.000000e+00 : f32
    %503 = vector.broadcast %cst_141 : f32 to vector<8x128xf32>
    %504 = arith.addf %503, %502 : vector<8x128xf32>
    %505 = arith.divf %503, %504 : vector<8x128xf32>
    %506 = arith.mulf %497, %477 : vector<8x128xf32>
    %507 = arith.mulf %491, %499 : vector<8x128xf32>
    %508 = arith.addf %506, %507 : vector<8x128xf32>
    %509 = math.tanh %508 : vector<8x128xf32>
    %510 = arith.mulf %505, %509 : vector<8x128xf32>
    %c7_i32_142 = arith.constant 7 : i32
    %c8_i32_143 = arith.constant 8 : i32
    %511 = arith.muli %c7_i32_142, %c8_i32_143 : i32
    %512 = tpu.assume_multiple %511, 8 : i32
    %513 = arith.index_cast %512 : i32 to index
    %c0_144 = arith.constant 0 : index
    %514 = vector.load %arg15[%513, %c0_144] : memref<64x512xf32, #tpu.memory_space<vmem>>, vector<8x512xf32>
    %cst_145 = arith.constant dense<0.000000e+00> : vector<8x512xf32>
    %515 = tpu.matmul %510, %289, %cst_145 {dimension_numbers = #tpu.dot_dimension_numbers<[1], [0], [0], [1], [0, 0, 1, 1], [], []>} : vector<8x128xf32>, vector<128x512xf32>, vector<8x512xf32> -> vector<8x512xf32>
    %516 = arith.addf %514, %515 : vector<8x512xf32>
    %517 = vector.extract_strided_slice %516 {offsets = [0, 0], sizes = [8, 128], strides = [1, 1]} : vector<8x512xf32> to vector<8x128xf32>
    %518 = arith.negf %517 : vector<8x128xf32>
    %519 = math.exp %518 : vector<8x128xf32>
    %cst_146 = arith.constant 1.000000e+00 : f32
    %520 = vector.broadcast %cst_146 : f32 to vector<8x128xf32>
    %521 = arith.addf %520, %519 : vector<8x128xf32>
    %522 = arith.divf %520, %521 : vector<8x128xf32>
    %523 = vector.extract_strided_slice %516 {offsets = [0, 128], sizes = [8, 128], strides = [1, 1]} : vector<8x512xf32> to vector<8x128xf32>
    %524 = arith.negf %523 : vector<8x128xf32>
    %525 = math.exp %524 : vector<8x128xf32>
    %cst_147 = arith.constant 1.000000e+00 : f32
    %526 = vector.broadcast %cst_147 : f32 to vector<8x128xf32>
    %527 = arith.addf %526, %525 : vector<8x128xf32>
    %528 = arith.divf %526, %527 : vector<8x128xf32>
    %529 = vector.extract_strided_slice %516 {offsets = [0, 256], sizes = [8, 128], strides = [1, 1]} : vector<8x512xf32> to vector<8x128xf32>
    %530 = math.tanh %529 : vector<8x128xf32>
    %531 = vector.extract_strided_slice %516 {offsets = [0, 384], sizes = [8, 128], strides = [1, 1]} : vector<8x512xf32> to vector<8x128xf32>
    %532 = arith.negf %531 : vector<8x128xf32>
    %533 = math.exp %532 : vector<8x128xf32>
    %cst_148 = arith.constant 1.000000e+00 : f32
    %534 = vector.broadcast %cst_148 : f32 to vector<8x128xf32>
    %535 = arith.addf %534, %533 : vector<8x128xf32>
    %536 = arith.divf %534, %535 : vector<8x128xf32>
    %537 = arith.mulf %528, %508 : vector<8x128xf32>
    %538 = arith.mulf %522, %530 : vector<8x128xf32>
    %539 = arith.addf %537, %538 : vector<8x128xf32>
    %540 = math.tanh %539 : vector<8x128xf32>
    %541 = arith.mulf %536, %540 : vector<8x128xf32>
    %c8_i32_149 = arith.constant 8 : i32
    %c1_150 = arith.constant 1 : index
    %c0_151 = arith.constant 0 : index
    %c0_152 = arith.constant 0 : index
    %542 = vector.load %arg12[%c1_150, %c0_151, %c0_152] : memref<2x8x128xf32, #tpu.memory_space<vmem>>, vector<1x8x128xf32>
    %543 = vector.shape_cast %542 : vector<1x8x128xf32> to vector<8x128xf32>
    %544 = vector.shape_cast %541 : vector<8x128xf32> to vector<1x8x128xf32>
    tpu.vector_store %arg12[%c1_150, %c0_151, %c0_152], %544 {strides = array<i32>} : memref<2x8x128xf32, #tpu.memory_space<vmem>>, vector<1x8x128xf32>,
    %c1_153 = arith.constant 1 : index
    %c0_154 = arith.constant 0 : index
    %c0_155 = arith.constant 0 : index
    %545 = vector.load %arg13[%c1_153, %c0_154, %c0_155] : memref<2x8x128xf32, #tpu.memory_space<vmem>>, vector<1x8x128xf32>
    %546 = vector.shape_cast %545 : vector<1x8x128xf32> to vector<8x128xf32>
    %547 = vector.shape_cast %539 : vector<8x128xf32> to vector<1x8x128xf32>
    tpu.vector_store %arg13[%c1_153, %c0_154, %c0_155], %547 {strides = array<i32>} : memref<2x8x128xf32, #tpu.memory_space<vmem>>, vector<1x8x128xf32>,
    %c0_156 = arith.constant 0 : index
    %c0_157 = arith.constant 0 : index
    %548 = vector.load %arg7[%c0_156, %c0_157] : memref<128x128xf32, #tpu.memory_space<vmem>>, vector<128x128xf32>
    %cst_158 = arith.constant dense<0.000000e+00> : vector<8x128xf32>
    %549 = tpu.matmul %541, %548, %cst_158 {dimension_numbers = #tpu.dot_dimension_numbers<[1], [0], [0], [1], [0, 0, 1, 1], [], []>} : vector<8x128xf32>, vector<128x128xf32>, vector<8x128xf32> -> vector<8x128xf32>
    %c0_159 = arith.constant 0 : index
    %c0_160 = arith.constant 0 : index
    %550 = vector.load %arg8[%c0_159, %c0_160] : memref<1x128xf32, #tpu.memory_space<vmem>>, vector<1x128xf32>
    %551 = vector.broadcast %550 : vector<1x128xf32> to vector<8x128xf32>
    %552 = arith.addf %549, %551 : vector<8x128xf32>
    %553 = arith.negf %552 : vector<8x128xf32>
    %554 = math.exp %553 : vector<8x128xf32>
    %cst_161 = arith.constant 1.000000e+00 : f32
    %555 = vector.broadcast %cst_161 : f32 to vector<8x128xf32>
    %556 = arith.addf %555, %554 : vector<8x128xf32>
    %557 = arith.divf %555, %556 : vector<8x128xf32>
    %c0_162 = arith.constant 0 : index
    %c0_163 = arith.constant 0 : index
    %558 = vector.load %arg11[%c0_162, %c0_163] : memref<8x128xf32, #tpu.memory_space<vmem>>, vector<8x128xf32>
    tpu.vector_store %arg11[%c0_162, %c0_163], %557 {strides = array<i32>} : memref<8x128xf32, #tpu.memory_space<vmem>>, vector<8x128xf32>,
    return
  }
}

</mosaic_0001>

<llo_original>
// kernel: sentiment_rnn_forward.1
$region0: #{sentiment_rnn_forward.1}
  #allocation0 [shape = 'u32[]', space=smem, size = 0x4, offset = 0x4, fixed_abs, tag = 'smem constant byte address 0x4 - core index']
  #allocation1 [shape = 'u32[144,128]{1,0:T(1,128)}', space=vmem, size = 0x12000, scoped, tag = 'internal scratch']
  #allocation2 [shape = 'f32[64,128]{1,0:T(8,128)}', space=vmem, size = 0x8000, scoped, tag = 'scratch operand']
  #allocation3 [shape = 'f32[64,512]{1,0:T(8,128)}', space=vmem, size = 0x20000, scoped, tag = 'scratch operand']
  %s0 = inlined_call_operand.vmem [shape: f32[64,128], index: 0, kind: input, shape index: {}]
  %s1 = inlined_call_operand.hbm [shape: f32[128,512], index: 1, kind: input, shape index: {}]
  %s2 = inlined_call_operand.hbm [shape: f32[128,512], index: 2, kind: input, shape index: {}]
  %s3 = inlined_call_operand.vmem [shape: f32[1,512], index: 3, kind: input, shape index: {}]
  %s4 = inlined_call_operand.hbm [shape: f32[128,512], index: 4, kind: input, shape index: {}]
  %s5 = inlined_call_operand.hbm [shape: f32[128,512], index: 5, kind: input, shape index: {}]
  %s6 = inlined_call_operand.vmem [shape: f32[1,512], index: 6, kind: input, shape index: {}]
  %s7 = inlined_call_operand.vmem [shape: f32[128,128], index: 7, kind: input, shape index: {}]
  %s8 = inlined_call_operand.vmem [shape: f32[1,128], index: 8, kind: input, shape index: {}]
  %s9 = inlined_call_operand.vmem [shape: f32[2,8,128], index: 9, kind: input, shape index: {}]
  %s10 = inlined_call_operand.vmem [shape: f32[2,8,128], index: 10, kind: input, shape index: {}]
  %s11 = inlined_call_operand.vmem [shape: f32[8,128], index: 11, kind: output, shape index: {0}]
  %s12 = inlined_call_operand.vmem [shape: f32[2,8,128], index: 12, kind: output, shape index: {1}]
  %s13 = inlined_call_operand.vmem [shape: f32[2,8,128], index: 13, kind: output, shape index: {2}]
  %14 = xla_tuple %s11, %s12, %s13
  %s15 = sld [smem:[#allocation0]]
  $region86: #{sentiment_rnn_forward.1} parent=0
    _
  %s17 = ssub.s32 1, %s15
  %s18 = scalar_select 0, %s17, %s15
  $region1: #{sentiment_rnn_forward.1} parent=0
    #allocation4 [shape = 'u8[262144]{0}', space=vmem, size = 0x40000, scoped, tag = 'input window, operand 1, single buffered']
    #allocation5 [shape = 's32[1]{0}', space=sflag, size = 0x4, scoped, tag = 'scoped memory for sentiment_rnn_forward.1']
    #allocation6 [shape = 'u8[262144]{0}', space=vmem, size = 0x40000, scoped, tag = 'input window, operand 2, single buffered']
    #allocation7 [shape = 's32[1]{0}', space=sflag, size = 0x4, scoped, tag = 'scoped memory for sentiment_rnn_forward.1']
    #allocation8 [shape = 'u8[262144]{0}', space=vmem, size = 0x40000, scoped, tag = 'input window, operand 4, single buffered']
    #allocation9 [shape = 'u8[262144]{0}', space=vmem, size = 0x40000, scoped, tag = 'input window, operand 5, single buffered']
    #allocation10 [shape = 's32[1]{0}', space=sflag, size = 0x4, scoped, tag = 'scoped memory for sentiment_rnn_forward.1']
    %19 = vsyncpa [#allocation5], 0
    %20 = vsyncpa [#allocation7], 0
    %21 = vsyncpa [#allocation10], 0
    // Predicated region
    $region2: #{sentiment_rnn_forward.1} parent=1 // pred_check
      _
    $region3: #{sentiment_rnn_forward.1} parent=1 // pred_check_branch
      %23 = sbr.rel (0) target = $region5
    $region4: #{sentiment_rnn_forward.1} parent=1 // pred_region
      _
    $region5: #{sentiment_rnn_forward.1} parent=1 // pred_fallthru
      _
    // Predicated region
    $region6: #{sentiment_rnn_forward.1} parent=1 // pred_check
      _
    $region7: #{sentiment_rnn_forward.1} parent=1 // pred_check_branch
      %25 = sbr.rel (0) target = $region9
    $region8: #{sentiment_rnn_forward.1} parent=1 // pred_region
      %s27 = ssub.s32 8192, 8192
      %28 = vsyncadd [#allocation5], %s27
      %s29 = sshll.u32 [#allocation4], 4
      %s30 = int_to_ptr.vmem [resolvable:$true] %s29
      %35 = dma.hbm_to_vmem [thread:$0]  %s1, 8192, %s30, [#allocation5], 512, 512, 32
    $region9: #{sentiment_rnn_forward.1} parent=1 // pred_fallthru
      _
    // Predicated region
    $region10: #{sentiment_rnn_forward.1} parent=1 // pred_check
      _
    $region11: #{sentiment_rnn_forward.1} parent=1 // pred_check_branch
      %37 = sbr.rel (0) target = $region13
    $region12: #{sentiment_rnn_forward.1} parent=1 // pred_region
      %s39 = ssub.s32 8192, 8192
      %40 = vsyncadd [#allocation7], %s39
      %s41 = sshll.u32 [#allocation6], 4
      %s42 = int_to_ptr.vmem [resolvable:$true] %s41
      %47 = dma.hbm_to_vmem [thread:$0]  %s2, 8192, %s42, [#allocation7], 512, 512, 32
    $region13: #{sentiment_rnn_forward.1} parent=1 // pred_fallthru
      _
    // Predicated region
    $region14: #{sentiment_rnn_forward.1} parent=1 // pred_check
      _
    $region15: #{sentiment_rnn_forward.1} parent=1 // pred_check_branch
      %49 = sbr.rel (0) target = $region17
    $region16: #{sentiment_rnn_forward.1} parent=1 // pred_region
      _
    $region17: #{sentiment_rnn_forward.1} parent=1 // pred_fallthru
      _
    // Predicated region
    $region18: #{sentiment_rnn_forward.1} parent=1 // pred_check
      _
    $region19: #{sentiment_rnn_forward.1} parent=1 // pred_check_branch
      %51 = sbr.rel (0) target = $region21
    $region20: #{sentiment_rnn_forward.1} parent=1 // pred_region
      %s53 = ssub.s32 8192, 8192
      %54 = vsyncadd [#allocation7], %s53
      %s55 = sshll.u32 [#allocation8], 4
      %s56 = int_to_ptr.vmem [resolvable:$true] %s55
      %61 = dma.hbm_to_vmem [thread:$0]  %s4, 8192, %s56, [#allocation7], 512, 512, 32
    $region21: #{sentiment_rnn_forward.1} parent=1 // pred_fallthru
      _
    // Predicated region
    $region22: #{sentiment_rnn_forward.1} parent=1 // pred_check
      _
    $region23: #{sentiment_rnn_forward.1} parent=1 // pred_check_branch
      %63 = sbr.rel (0) target = $region25
    $region24: #{sentiment_rnn_forward.1} parent=1 // pred_region
      %s65 = ssub.s32 8192, 8192
      %66 = vsyncadd [#allocation10], %s65
      %s67 = sshll.u32 [#allocation9], 4
      %s68 = int_to_ptr.vmem [resolvable:$true] %s67
      %73 = dma.hbm_to_vmem [thread:$0]  %s5, 8192, %s68, [#allocation10], 512, 512, 32
    $region25: #{sentiment_rnn_forward.1} parent=1 // pred_fallthru
      _
    // Predicated region
    $region26: #{sentiment_rnn_forward.1} parent=1 // pred_check
      _
    $region27: #{sentiment_rnn_forward.1} parent=1 // pred_check_branch
      %75 = sbr.rel (0) target = $region29
    $region28: #{sentiment_rnn_forward.1} parent=1 // pred_region
      _
    $region29: #{sentiment_rnn_forward.1} parent=1 // pred_fallthru
      _
    // Predicated region
    $region30: #{sentiment_rnn_forward.1} parent=1 // pred_check
      _
    $region31: #{sentiment_rnn_forward.1} parent=1 // pred_check_branch
      %77 = sbr.rel (0) target = $region33
    $region32: #{sentiment_rnn_forward.1} parent=1 // pred_region
      _
    $region33: #{sentiment_rnn_forward.1} parent=1 // pred_fallthru
      _
    // Predicated region
    $region34: #{sentiment_rnn_forward.1} parent=1 // pred_check
      _
    $region35: #{sentiment_rnn_forward.1} parent=1 // pred_check_branch
      %79 = sbr.rel (0) target = $region37
    $region36: #{sentiment_rnn_forward.1} parent=1 // pred_region
      _
    $region37: #{sentiment_rnn_forward.1} parent=1 // pred_fallthru
      _
    // Predicated region
    $region38: #{sentiment_rnn_forward.1} parent=1 // pred_check
      _
    $region39: #{sentiment_rnn_forward.1} parent=1 // pred_check_branch
      %81 = sbr.rel (0) target = $region41
    $region40: #{sentiment_rnn_forward.1} parent=1 // pred_region
      _
    $region41: #{sentiment_rnn_forward.1} parent=1 // pred_fallthru
      _
    // Predicated region
    $region42: #{sentiment_rnn_forward.1} parent=1 // pred_check
      _
    $region43: #{sentiment_rnn_forward.1} parent=1 // pred_check_branch
      %83 = sbr.rel (0) target = $region45
    $region44: #{sentiment_rnn_forward.1} parent=1 // pred_region
      _
    $region45: #{sentiment_rnn_forward.1} parent=1 // pred_fallthru
      _
    // Predicated region
    $region46: #{sentiment_rnn_forward.1} parent=1 // pred_check
      _
    $region47: #{sentiment_rnn_forward.1} parent=1 // pred_check_branch
      %85 = sbr.rel (0) target = $region49
    $region48: #{sentiment_rnn_forward.1} parent=1 // pred_region
      %86 = dma.done [#allocation5], 8192
    $region49: #{sentiment_rnn_forward.1} parent=1 // pred_fallthru
      _
    // Predicated region
    $region50: #{sentiment_rnn_forward.1} parent=1 // pred_check
      _
    $region51: #{sentiment_rnn_forward.1} parent=1 // pred_check_branch
      %88 = sbr.rel (0) target = $region53
    $region52: #{sentiment_rnn_forward.1} parent=1 // pred_region
      %89 = dma.done [#allocation7], 8192
    $region53: #{sentiment_rnn_forward.1} parent=1 // pred_fallthru
      _
    // Predicated region
    $region54: #{sentiment_rnn_forward.1} parent=1 // pred_check
      _
    $region55: #{sentiment_rnn_forward.1} parent=1 // pred_check_branch
      %91 = sbr.rel (0) target = $region57
    $region56: #{sentiment_rnn_forward.1} parent=1 // pred_region
      %92 = dma.done [#allocation7], 8192
    $region57: #{sentiment_rnn_forward.1} parent=1 // pred_fallthru
      _
    // Predicated region
    $region58: #{sentiment_rnn_forward.1} parent=1 // pred_check
      _
    $region59: #{sentiment_rnn_forward.1} parent=1 // pred_check_branch
      %94 = sbr.rel (0) target = $region61
    $region60: #{sentiment_rnn_forward.1} parent=1 // pred_region
      %95 = dma.done [#allocation10], 8192
    $region61: #{sentiment_rnn_forward.1} parent=1 // pred_fallthru
      _
    %v96 = vld [vmem:[%s0] sm:$0xff]
    %v97 = vld [vmem:[%s0 + $0x8] sm:$0xff]
    %v98 = vld [vmem:[%s0 + $0x10] sm:$0xff]
    %v99 = vld [vmem:[%s0 + $0x18] sm:$0xff]
    %v100 = vld [vmem:[%s0 + $0x20] sm:$0xff]
    %v101 = vld [vmem:[%s0 + $0x28] sm:$0xff]
    %v102 = vld [vmem:[%s0 + $0x30] sm:$0xff]
    %v103 = vld [vmem:[%s0 + $0x38] sm:$0xff]
    %v104 = vld [vmem:[#allocation4] sm:$0xff]
    %v105 = vld [vmem:[#allocation4 + $0x8] sm:$0xff]
    %v106 = vld [vmem:[#allocation4 + $0x10] sm:$0xff]
    %v107 = vld [vmem:[#allocation4 + $0x18] sm:$0xff]
    %v108 = vld [vmem:[#allocation4 + $0x20] sm:$0xff]
    %v109 = vld [vmem:[#allocation4 + $0x28] sm:$0xff]
    %v110 = vld [vmem:[#allocation4 + $0x30] sm:$0xff]
    %v111 = vld [vmem:[#allocation4 + $0x38] sm:$0xff]
    %v112 = vld [vmem:[#allocation4 + $0x40] sm:$0xff]
    %v113 = vld [vmem:[#allocation4 + $0x48] sm:$0xff]
    %v114 = vld [vmem:[#allocation4 + $0x50] sm:$0xff]
    %v115 = vld [vmem:[#allocation4 + $0x58] sm:$0xff]
    %v116 = vld [vmem:[#allocation4 + $0x60] sm:$0xff]
    %v117 = vld [vmem:[#allocation4 + $0x68] sm:$0xff]
    %v118 = vld [vmem:[#allocation4 + $0x70] sm:$0xff]
    %v119 = vld [vmem:[#allocation4 + $0x78] sm:$0xff]
    %v120 = vld [vmem:[#allocation4 + $0x80] sm:$0xff]
    %v121 = vld [vmem:[#allocation4 + $0x88] sm:$0xff]
    %v122 = vld [vmem:[#allocation4 + $0x90] sm:$0xff]
    %v123 = vld [vmem:[#allocation4 + $0x98] sm:$0xff]
    %v124 = vld [vmem:[#allocation4 + $0xa0] sm:$0xff]
    %v125 = vld [vmem:[#allocation4 + $0xa8] sm:$0xff]
    %v126 = vld [vmem:[#allocation4 + $0xb0] sm:$0xff]
    %v127 = vld [vmem:[#allocation4 + $0xb8] sm:$0xff]
    %v128 = vld [vmem:[#allocation4 + $0xc0] sm:$0xff]
    %v129 = vld [vmem:[#allocation4 + $0xc8] sm:$0xff]
    %v130 = vld [vmem:[#allocation4 + $0xd0] sm:$0xff]
    %v131 = vld [vmem:[#allocation4 + $0xd8] sm:$0xff]
    %v132 = vld [vmem:[#allocation4 + $0xe0] sm:$0xff]
    %v133 = vld [vmem:[#allocation4 + $0xe8] sm:$0xff]
    %v134 = vld [vmem:[#allocation4 + $0xf0] sm:$0xff]
    %v135 = vld [vmem:[#allocation4 + $0xf8] sm:$0xff]
    %v136 = vld [vmem:[#allocation4 + $0x100] sm:$0xff]
    %v137 = vld [vmem:[#allocation4 + $0x108] sm:$0xff]
    %v138 = vld [vmem:[#allocation4 + $0x110] sm:$0xff]
    %v139 = vld [vmem:[#allocation4 + $0x118] sm:$0xff]
    %v140 = vld [vmem:[#allocation4 + $0x120] sm:$0xff]
    %v141 = vld [vmem:[#allocation4 + $0x128] sm:$0xff]
    %v142 = vld [vmem:[#allocation4 + $0x130] sm:$0xff]
    %v143 = vld [vmem:[#allocation4 + $0x138] sm:$0xff]
    %v144 = vld [vmem:[#allocation4 + $0x140] sm:$0xff]
    %v145 = vld [vmem:[#allocation4 + $0x148] sm:$0xff]
    %v146 = vld [vmem:[#allocation4 + $0x150] sm:$0xff]
    %v147 = vld [vmem:[#allocation4 + $0x158] sm:$0xff]
    %v148 = vld [vmem:[#allocation4 + $0x160] sm:$0xff]
    %v149 = vld [vmem:[#allocation4 + $0x168] sm:$0xff]
    %v150 = vld [vmem:[#allocation4 + $0x170] sm:$0xff]
    %v151 = vld [vmem:[#allocation4 + $0x178] sm:$0xff]
    %v152 = vld [vmem:[#allocation4 + $0x180] sm:$0xff]
    %v153 = vld [vmem:[#allocation4 + $0x188] sm:$0xff]
    %v154 = vld [vmem:[#allocation4 + $0x190] sm:$0xff]
    %v155 = vld [vmem:[#allocation4 + $0x198] sm:$0xff]
    %v156 = vld [vmem:[#allocation4 + $0x1a0] sm:$0xff]
    %v157 = vld [vmem:[#allocation4 + $0x1a8] sm:$0xff]
    %v158 = vld [vmem:[#allocation4 + $0x1b0] sm:$0xff]
    %v159 = vld [vmem:[#allocation4 + $0x1b8] sm:$0xff]
    %v160 = vld [vmem:[#allocation4 + $0x1c0] sm:$0xff]
    %v161 = vld [vmem:[#allocation4 + $0x1c8] sm:$0xff]
    %v162 = vld [vmem:[#allocation4 + $0x1d0] sm:$0xff]
    %v163 = vld [vmem:[#allocation4 + $0x1d8] sm:$0xff]
    %v164 = vld [vmem:[#allocation4 + $0x1e0] sm:$0xff]
    %v165 = vld [vmem:[#allocation4 + $0x1e8] sm:$0xff]
    %v166 = vld [vmem:[#allocation4 + $0x1f0] sm:$0xff]
    %v167 = vld [vmem:[#allocation4 + $0x1f8] sm:$0xff]
    %v168 = vld [vmem:[%s3] sm:$0xf]
    %v170 = vlaneseq
    %v171 = vshrl.u32 %v170, 7
    %v172 = vsub.s32 0, %v171
    %v173 = vrot.slane %v168, %v172
    %v174 = vlaneseq
    %v175 = vshrl.u32 %v174, 7
    %v176 = vsub.s32 1, %v175
    %v177 = vrot.slane %v168, %v176
    %v178 = vlaneseq
    %v179 = vshrl.u32 %v178, 7
    %v180 = vsub.s32 2, %v179
    %v181 = vrot.slane %v168, %v180
    %v182 = vlaneseq
    %v183 = vshrl.u32 %v182, 7
    %v184 = vsub.s32 3, %v183
    %v185 = vrot.slane %v168, %v184
    %190 = vmatprep.subr.mxu0 %v165
    %191 = vmatpush1.msra.mxu0 %v164
    %192 = vmatprep.subr.mxu0 %v161
    %193 = vmatpush1.msra.mxu0 %v160
    %194 = vmatprep.subr.mxu0 %v157
    %195 = vmatpush1.msra.mxu0 %v156
    %196 = vmatprep.subr.mxu0 %v153
    %197 = vmatpush1.msra.mxu0 %v152
    %198 = vmatprep.subr.mxu0 %v149
    %199 = vmatpush1.msra.mxu0 %v148
    %200 = vmatprep.subr.mxu0 %v145
    %201 = vmatpush1.msra.mxu0 %v144
    %202 = vmatprep.subr.mxu0 %v141
    %203 = vmatpush1.msra.mxu0 %v140
    %204 = vmatprep.subr.mxu0 %v137
    %205 = vmatpush1.msra.mxu0 %v136
    %206 = vmatprep.subr.mxu0 %v133
    %207 = vmatpush1.msra.mxu0 %v132
    %208 = vmatprep.subr.mxu0 %v129
    %209 = vmatpush1.msra.mxu0 %v128
    %210 = vmatprep.subr.mxu0 %v125
    %211 = vmatpush1.msra.mxu0 %v124
    %212 = vmatprep.subr.mxu0 %v121
    %213 = vmatpush1.msra.mxu0 %v120
    %214 = vmatprep.subr.mxu0 %v117
    %215 = vmatpush1.msra.mxu0 %v116
    %216 = vmatprep.subr.mxu0 %v113
    %217 = vmatpush1.msra.mxu0 %v112
    %218 = vmatprep.subr.mxu0 %v109
    %219 = vmatpush1.msra.mxu0 %v108
    %220 = vmatprep.subr.mxu0 %v105
    %221 = vmatpush1.msra.mxu0 %v104
    %222 = vmatprep.subr.mxu0 0.0
    %223 = vmatpush2.msra.mxu0 0.0
    %224 = vmatprep.subr.mxu0 0.0
    %225 = vmatpush2.msra.mxu0 0.0
    %226 = vmatprep.subr.mxu0 0.0
    %227 = vmatpush2.msra.mxu0 0.0
    %228 = vmatprep.subr.mxu0 0.0
    %229 = vmatpush2.msra.mxu0 0.0
    %230 = vmatprep.subr.mxu0 0.0
    %231 = vmatpush2.msra.mxu0 0.0
    %232 = vmatprep.subr.mxu0 0.0
    %233 = vmatpush2.msra.mxu0 0.0
    %234 = vmatprep.subr.mxu0 0.0
    %235 = vmatpush2.msra.mxu0 0.0
    %236 = vmatprep.subr.mxu0 0.0
    %237 = vmatpush2.msra.mxu0 0.0
    %238 = vmatprep.subr.mxu0 0.0
    %239 = vmatpush2.msra.mxu0 0.0
    %240 = vmatprep.subr.mxu0 0.0
    %241 = vmatpush2.msra.mxu0 0.0
    %242 = vmatprep.subr.mxu0 0.0
    %243 = vmatpush2.msra.mxu0 0.0
    %244 = vmatprep.subr.mxu0 0.0
    %245 = vmatpush2.msra.mxu0 0.0
    %246 = vmatprep.subr.mxu0 0.0
    %247 = vmatpush2.msra.mxu0 0.0
    %248 = vmatprep.subr.mxu0 0.0
    %249 = vmatpush2.msra.mxu0 0.0
    %250 = vmatprep.subr.mxu0 0.0
    %251 = vmatpush2.msra.mxu0 0.0
    %252 = vmatprep.subr.mxu0 0.0
    %253 = vmatpush2.msra.mxu0 0.0
    %254 = vmatprep.mubr.f32.mxu0 0.0
    %255 = vmatmul.mubr.f32.gmra.mxu0 %v96
    %v256 = vpop.f32.mrf.mxu0
    %v257 = vadd.f32 %v173, %v256
    %v258 = vpop.f32.mrf.mxu0
    %v259 = vadd.f32 %v177, %v258
    %260 = vmatprep.mubr.f32.mxu0 0.0
    %261 = vmatmul.mubr.f32.gmra.mxu0 %v97
    %v262 = vpop.f32.mrf.mxu0
    %v263 = vadd.f32 %v173, %v262
    %v264 = vpop.f32.mrf.mxu0
    %v265 = vadd.f32 %v177, %v264
    %266 = vmatprep.mubr.f32.mxu0 0.0
    %267 = vmatmul.mubr.f32.gmra.mxu0 %v98
    %v268 = vpop.f32.mrf.mxu0
    %v269 = vadd.f32 %v173, %v268
    %v270 = vpop.f32.mrf.mxu0
    %v271 = vadd.f32 %v177, %v270
    %272 = vmatprep.mubr.f32.mxu0 0.0
    %273 = vmatmul.mubr.f32.gmra.mxu0 %v99
    %v274 = vpop.f32.mrf.mxu0
    %v275 = vadd.f32 %v173, %v274
    %v276 = vpop.f32.mrf.mxu0
    %v277 = vadd.f32 %v177, %v276
    %278 = vmatprep.mubr.f32.mxu0 0.0
    %279 = vmatmul.mubr.f32.gmra.mxu0 %v100
    %v280 = vpop.f32.mrf.mxu0
    %v281 = vadd.f32 %v173, %v280
    %v282 = vpop.f32.mrf.mxu0
    %v283 = vadd.f32 %v177, %v282
    %284 = vmatprep.mubr.f32.mxu0 0.0
    %285 = vmatmul.mubr.f32.gmra.mxu0 %v101
    %v286 = vpop.f32.mrf.mxu0
    %v287 = vadd.f32 %v173, %v286
    %v288 = vpop.f32.mrf.mxu0
    %v289 = vadd.f32 %v177, %v288
    %290 = vmatprep.mubr.f32.mxu0 0.0
    %291 = vmatmul.mubr.f32.gmra.mxu0 %v102
    %v292 = vpop.f32.mrf.mxu0
    %v293 = vadd.f32 %v173, %v292
    %v294 = vpop.f32.mrf.mxu0
    %v295 = vadd.f32 %v177, %v294
    %296 = vmatprep.mubr.f32.mxu0 0.0
    %297 = vmatmul.mubr.f32.gmra.mxu0 %v103
    %v298 = vpop.f32.mrf.mxu0
    %v299 = vadd.f32 %v173, %v298
    %v300 = vpop.f32.mrf.mxu0
    %v301 = vadd.f32 %v177, %v300
    %302 = vdwg.mxu0
    %303 = vmatprep.subr.mxu0 %v167
    %304 = vmatpush1.msra.mxu0 %v166
    %305 = vmatprep.subr.mxu0 %v163
    %306 = vmatpush1.msra.mxu0 %v162
    %307 = vmatprep.subr.mxu0 %v159
    %308 = vmatpush1.msra.mxu0 %v158
    %309 = vmatprep.subr.mxu0 %v155
    %310 = vmatpush1.msra.mxu0 %v154
    %311 = vmatprep.subr.mxu0 %v151
    %312 = vmatpush1.msra.mxu0 %v150
    %313 = vmatprep.subr.mxu0 %v147
    %314 = vmatpush1.msra.mxu0 %v146
    %315 = vmatprep.subr.mxu0 %v143
    %316 = vmatpush1.msra.mxu0 %v142
    %317 = vmatprep.subr.mxu0 %v139
    %318 = vmatpush1.msra.mxu0 %v138
    %319 = vmatprep.subr.mxu0 %v135
    %320 = vmatpush1.msra.mxu0 %v134
    %321 = vmatprep.subr.mxu0 %v131
    %322 = vmatpush1.msra.mxu0 %v130
    %323 = vmatprep.subr.mxu0 %v127
    %324 = vmatpush1.msra.mxu0 %v126
    %325 = vmatprep.subr.mxu0 %v123
    %326 = vmatpush1.msra.mxu0 %v122
    %327 = vmatprep.subr.mxu0 %v119
    %328 = vmatpush1.msra.mxu0 %v118
    %329 = vmatprep.subr.mxu0 %v115
    %330 = vmatpush1.msra.mxu0 %v114
    %331 = vmatprep.subr.mxu0 %v111
    %332 = vmatpush1.msra.mxu0 %v110
    %333 = vmatprep.subr.mxu0 %v107
    %334 = vmatpush1.msra.mxu0 %v106
    %335 = vmatprep.subr.mxu0 0.0
    %336 = vmatpush2.msra.mxu0 0.0
    %337 = vmatprep.subr.mxu0 0.0
    %338 = vmatpush2.msra.mxu0 0.0
    %339 = vmatprep.subr.mxu0 0.0
    %340 = vmatpush2.msra.mxu0 0.0
    %341 = vmatprep.subr.mxu0 0.0
    %342 = vmatpush2.msra.mxu0 0.0
    %343 = vmatprep.subr.mxu0 0.0
    %344 = vmatpush2.msra.mxu0 0.0
    %345 = vmatprep.subr.mxu0 0.0
    %346 = vmatpush2.msra.mxu0 0.0
    %347 = vmatprep.subr.mxu0 0.0
    %348 = vmatpush2.msra.mxu0 0.0
    %349 = vmatprep.subr.mxu0 0.0
    %350 = vmatpush2.msra.mxu0 0.0
    %351 = vmatprep.subr.mxu0 0.0
    %352 = vmatpush2.msra.mxu0 0.0
    %353 = vmatprep.subr.mxu0 0.0
    %354 = vmatpush2.msra.mxu0 0.0
    %355 = vmatprep.subr.mxu0 0.0
    %356 = vmatpush2.msra.mxu0 0.0
    %357 = vmatprep.subr.mxu0 0.0
    %358 = vmatpush2.msra.mxu0 0.0
    %359 = vmatprep.subr.mxu0 0.0
    %360 = vmatpush2.msra.mxu0 0.0
    %361 = vmatprep.subr.mxu0 0.0
    %362 = vmatpush2.msra.mxu0 0.0
    %363 = vmatprep.subr.mxu0 0.0
    %364 = vmatpush2.msra.mxu0 0.0
    %365 = vmatprep.subr.mxu0 0.0
    %366 = vmatpush2.msra.mxu0 0.0
    %367 = vmatprep.mubr.f32.mxu0 0.0
    %368 = vmatmul.mubr.f32.gmra.mxu0 %v96
    %v369 = vpop.f32.mrf.mxu0
    %v370 = vadd.f32 %v181, %v369
    %v371 = vpop.f32.mrf.mxu0
    %v372 = vadd.f32 %v185, %v371
    %373 = vmatprep.mubr.f32.mxu0 0.0
    %374 = vmatmul.mubr.f32.gmra.mxu0 %v97
    %v375 = vpop.f32.mrf.mxu0
    %v376 = vadd.f32 %v181, %v375
    %v377 = vpop.f32.mrf.mxu0
    %v378 = vadd.f32 %v185, %v377
    %379 = vmatprep.mubr.f32.mxu0 0.0
    %380 = vmatmul.mubr.f32.gmra.mxu0 %v98
    %v381 = vpop.f32.mrf.mxu0
    %v382 = vadd.f32 %v181, %v381
    %v383 = vpop.f32.mrf.mxu0
    %v384 = vadd.f32 %v185, %v383
    %385 = vmatprep.mubr.f32.mxu0 0.0
    %386 = vmatmul.mubr.f32.gmra.mxu0 %v99
    %v387 = vpop.f32.mrf.mxu0
    %v388 = vadd.f32 %v181, %v387
    %v389 = vpop.f32.mrf.mxu0
    %v390 = vadd.f32 %v185, %v389
    %391 = vmatprep.mubr.f32.mxu0 0.0
    %392 = vmatmul.mubr.f32.gmra.mxu0 %v100
    %v393 = vpop.f32.mrf.mxu0
    %v394 = vadd.f32 %v181, %v393
    %v395 = vpop.f32.mrf.mxu0
    %v396 = vadd.f32 %v185, %v395
    %397 = vmatprep.mubr.f32.mxu0 0.0
    %398 = vmatmul.mubr.f32.gmra.mxu0 %v101
    %v399 = vpop.f32.mrf.mxu0
    %v400 = vadd.f32 %v181, %v399
    %v401 = vpop.f32.mrf.mxu0
    %v402 = vadd.f32 %v185, %v401
    %403 = vmatprep.mubr.f32.mxu0 0.0
    %404 = vmatmul.mubr.f32.gmra.mxu0 %v102
    %v405 = vpop.f32.mrf.mxu0
    %v406 = vadd.f32 %v181, %v405
    %v407 = vpop.f32.mrf.mxu0
    %v408 = vadd.f32 %v185, %v407
    %409 = vmatprep.mubr.f32.mxu0 0.0
    %410 = vmatmul.mubr.f32.gmra.mxu0 %v103
    %v411 = vpop.f32.mrf.mxu0
    %v412 = vadd.f32 %v181, %v411
    %v413 = vpop.f32.mrf.mxu0
    %v414 = vadd.f32 %v185, %v413
    %415 = vdwg.mxu0
    %416 = vst [vmem:[#allocation3] sm:$0xff] %v257
    %417 = vst [vmem:[#allocation3 + $0x8] sm:$0xff] %v259
    %418 = vst [vmem:[#allocation3 + $0x10] sm:$0xff] %v370
    %419 = vst [vmem:[#allocation3 + $0x18] sm:$0xff] %v372
    %420 = vst [vmem:[#allocation3 + $0x20] sm:$0xff] %v263
    %421 = vst [vmem:[#allocation3 + $0x28] sm:$0xff] %v265
    %422 = vst [vmem:[#allocation3 + $0x30] sm:$0xff] %v376
    %423 = vst [vmem:[#allocation3 + $0x38] sm:$0xff] %v378
    %424 = vst [vmem:[#allocation3 + $0x40] sm:$0xff] %v269
    %425 = vst [vmem:[#allocation3 + $0x48] sm:$0xff] %v271
    %426 = vst [vmem:[#allocation3 + $0x50] sm:$0xff] %v382
    %427 = vst [vmem:[#allocation3 + $0x58] sm:$0xff] %v384
    %428 = vst [vmem:[#allocation3 + $0x60] sm:$0xff] %v275
    %429 = vst [vmem:[#allocation3 + $0x68] sm:$0xff] %v277
    %430 = vst [vmem:[#allocation3 + $0x70] sm:$0xff] %v388
    %431 = vst [vmem:[#allocation3 + $0x78] sm:$0xff] %v390
    %432 = vst [vmem:[#allocation3 + $0x80] sm:$0xff] %v281
    %433 = vst [vmem:[#allocation3 + $0x88] sm:$0xff] %v283
    %434 = vst [vmem:[#allocation3 + $0x90] sm:$0xff] %v394
    %435 = vst [vmem:[#allocation3 + $0x98] sm:$0xff] %v396
    %436 = vst [vmem:[#allocation3 + $0xa0] sm:$0xff] %v287
    %437 = vst [vmem:[#allocation3 + $0xa8] sm:$0xff] %v289
    %438 = vst [vmem:[#allocation3 + $0xb0] sm:$0xff] %v400
    %439 = vst [vmem:[#allocation3 + $0xb8] sm:$0xff] %v402
    %440 = vst [vmem:[#allocation3 + $0xc0] sm:$0xff] %v293
    %441 = vst [vmem:[#allocation3 + $0xc8] sm:$0xff] %v295
    %442 = vst [vmem:[#allocation3 + $0xd0] sm:$0xff] %v406
    %443 = vst [vmem:[#allocation3 + $0xd8] sm:$0xff] %v408
    %444 = vst [vmem:[#allocation3 + $0xe0] sm:$0xff] %v299
    %445 = vst [vmem:[#allocation3 + $0xe8] sm:$0xff] %v301
    %446 = vst [vmem:[#allocation3 + $0xf0] sm:$0xff] %v412
    %447 = vst [vmem:[#allocation3 + $0xf8] sm:$0xff] %v414
    %v448 = vld [vmem:[#allocation6] sm:$0xff]
    %v449 = vld [vmem:[#allocation6 + $0x8] sm:$0xff]
    %v450 = vld [vmem:[#allocation6 + $0x10] sm:$0xff]
    %v451 = vld [vmem:[#allocation6 + $0x18] sm:$0xff]
    %v452 = vld [vmem:[#allocation6 + $0x20] sm:$0xff]
    %v453 = vld [vmem:[#allocation6 + $0x28] sm:$0xff]
    %v454 = vld [vmem:[#allocation6 + $0x30] sm:$0xff]
    %v455 = vld [vmem:[#allocation6 + $0x38] sm:$0xff]
    %v456 = vld [vmem:[#allocation6 + $0x40] sm:$0xff]
    %v457 = vld [vmem:[#allocation6 + $0x48] sm:$0xff]
    %v458 = vld [vmem:[#allocation6 + $0x50] sm:$0xff]
    %v459 = vld [vmem:[#allocation6 + $0x58] sm:$0xff]
    %v460 = vld [vmem:[#allocation6 + $0x60] sm:$0xff]
    %v461 = vld [vmem:[#allocation6 + $0x68] sm:$0xff]
    %v462 = vld [vmem:[#allocation6 + $0x70] sm:$0xff]
    %v463 = vld [vmem:[#allocation6 + $0x78] sm:$0xff]
    %v464 = vld [vmem:[#allocation6 + $0x80] sm:$0xff]
    %v465 = vld [vmem:[#allocation6 + $0x88] sm:$0xff]
    %v466 = vld [vmem:[#allocation6 + $0x90] sm:$0xff]
    %v467 = vld [vmem:[#allocation6 + $0x98] sm:$0xff]
    %v468 = vld [vmem:[#allocation6 + $0xa0] sm:$0xff]
    %v469 = vld [vmem:[#allocation6 + $0xa8] sm:$0xff]
    %v470 = vld [vmem:[#allocation6 + $0xb0] sm:$0xff]
    %v471 = vld [vmem:[#allocation6 + $0xb8] sm:$0xff]
    %v472 = vld [vmem:[#allocation6 + $0xc0] sm:$0xff]
    %v473 = vld [vmem:[#allocation6 + $0xc8] sm:$0xff]
    %v474 = vld [vmem:[#allocation6 + $0xd0] sm:$0xff]
    %v475 = vld [vmem:[#allocation6 + $0xd8] sm:$0xff]
    %v476 = vld [vmem:[#allocation6 + $0xe0] sm:$0xff]
    %v477 = vld [vmem:[#allocation6 + $0xe8] sm:$0xff]
    %v478 = vld [vmem:[#allocation6 + $0xf0] sm:$0xff]
    %v479 = vld [vmem:[#allocation6 + $0xf8] sm:$0xff]
    %v480 = vld [vmem:[#allocation6 + $0x100] sm:$0xff]
    %v481 = vld [vmem:[#allocation6 + $0x108] sm:$0xff]
    %v482 = vld [vmem:[#allocation6 + $0x110] sm:$0xff]
    %v483 = vld [vmem:[#allocation6 + $0x118] sm:$0xff]
    %v484 = vld [vmem:[#allocation6 + $0x120] sm:$0xff]
    %v485 = vld [vmem:[#allocation6 + $0x128] sm:$0xff]
    %v486 = vld [vmem:[#allocation6 + $0x130] sm:$0xff]
    %v487 = vld [vmem:[#allocation6 + $0x138] sm:$0xff]
    %v488 = vld [vmem:[#allocation6 + $0x140] sm:$0xff]
    %v489 = vld [vmem:[#allocation6 + $0x148] sm:$0xff]
    %v490 = vld [vmem:[#allocation6 + $0x150] sm:$0xff]
    %v491 = vld [vmem:[#allocation6 + $0x158] sm:$0xff]
    %v492 = vld [vmem:[#allocation6 + $0x160] sm:$0xff]
    %v493 = vld [vmem:[#allocation6 + $0x168] sm:$0xff]
    %v494 = vld [vmem:[#allocation6 + $0x170] sm:$0xff]
    %v495 = vld [vmem:[#allocation6 + $0x178] sm:$0xff]
    %v496 = vld [vmem:[#allocation6 + $0x180] sm:$0xff]
    %v497 = vld [vmem:[#allocation6 + $0x188] sm:$0xff]
    %v498 = vld [vmem:[#allocation6 + $0x190] sm:$0xff]
    %v499 = vld [vmem:[#allocation6 + $0x198] sm:$0xff]
    %v500 = vld [vmem:[#allocation6 + $0x1a0] sm:$0xff]
    %v501 = vld [vmem:[#allocation6 + $0x1a8] sm:$0xff]
    %v502 = vld [vmem:[#allocation6 + $0x1b0] sm:$0xff]
    %v503 = vld [vmem:[#allocation6 + $0x1b8] sm:$0xff]
    %v504 = vld [vmem:[#allocation6 + $0x1c0] sm:$0xff]
    %v505 = vld [vmem:[#allocation6 + $0x1c8] sm:$0xff]
    %v506 = vld [vmem:[#allocation6 + $0x1d0] sm:$0xff]
    %v507 = vld [vmem:[#allocation6 + $0x1d8] sm:$0xff]
    %v508 = vld [vmem:[#allocation6 + $0x1e0] sm:$0xff]
    %v509 = vld [vmem:[#allocation6 + $0x1e8] sm:$0xff]
    %v510 = vld [vmem:[#allocation6 + $0x1f0] sm:$0xff]
    %v511 = vld [vmem:[#allocation6 + $0x1f8] sm:$0xff]
    %v512 = vld [vmem:[%s9] sm:$0xff]
    %v513 = vld [vmem:[%s10] sm:$0xff]
    %s514 = smul.u32 0, 4
    %s515 = smul.addr %s514, 8
    %s516 = scalar_lea.vmem [#allocation3], %s515
    %v517 = vld [vmem:[%s516] sm:$0xff]
    %v518 = vld [vmem:[%s516 + $0x8] sm:$0xff]
    %v519 = vld [vmem:[%s516 + $0x10] sm:$0xff]
    %v520 = vld [vmem:[%s516 + $0x18] sm:$0xff]
    %521 = vmatprep.subr.mxu0 %v509
    %522 = vmatpush1.msra.mxu0 %v508
    %523 = vmatprep.subr.mxu0 %v505
    %524 = vmatpush1.msra.mxu0 %v504
    %525 = vmatprep.subr.mxu0 %v501
    %526 = vmatpush1.msra.mxu0 %v500
    %527 = vmatprep.subr.mxu0 %v497
    %528 = vmatpush1.msra.mxu0 %v496
    %529 = vmatprep.subr.mxu0 %v493
    %530 = vmatpush1.msra.mxu0 %v492
    %531 = vmatprep.subr.mxu0 %v489
    %532 = vmatpush1.msra.mxu0 %v488
    %533 = vmatprep.subr.mxu0 %v485
    %534 = vmatpush1.msra.mxu0 %v484
    %535 = vmatprep.subr.mxu0 %v481
    %536 = vmatpush1.msra.mxu0 %v480
    %537 = vmatprep.subr.mxu0 %v477
    %538 = vmatpush1.msra.mxu0 %v476
    %539 = vmatprep.subr.mxu0 %v473
    %540 = vmatpush1.msra.mxu0 %v472
    %541 = vmatprep.subr.mxu0 %v469
    %542 = vmatpush1.msra.mxu0 %v468
    %543 = vmatprep.subr.mxu0 %v465
    %544 = vmatpush1.msra.mxu0 %v464
    %545 = vmatprep.subr.mxu0 %v461
    %546 = vmatpush1.msra.mxu0 %v460
    %547 = vmatprep.subr.mxu0 %v457
    %548 = vmatpush1.msra.mxu0 %v456
    %549 = vmatprep.subr.mxu0 %v453
    %550 = vmatpush1.msra.mxu0 %v452
    %551 = vmatprep.subr.mxu0 %v449
    %552 = vmatpush1.msra.mxu0 %v448
    %553 = vmatprep.subr.mxu0 0.0
    %554 = vmatpush2.msra.mxu0 0.0
    %555 = vmatprep.subr.mxu0 0.0
    %556 = vmatpush2.msra.mxu0 0.0
    %557 = vmatprep.subr.mxu0 0.0
    %558 = vmatpush2.msra.mxu0 0.0
    %559 = vmatprep.subr.mxu0 0.0
    %560 = vmatpush2.msra.mxu0 0.0
    %561 = vmatprep.subr.mxu0 0.0
    %562 = vmatpush2.msra.mxu0 0.0
    %563 = vmatprep.subr.mxu0 0.0
    %564 = vmatpush2.msra.mxu0 0.0
    %565 = vmatprep.subr.mxu0 0.0
    %566 = vmatpush2.msra.mxu0 0.0
    %567 = vmatprep.subr.mxu0 0.0
    %568 = vmatpush2.msra.mxu0 0.0
    %569 = vmatprep.subr.mxu0 0.0
    %570 = vmatpush2.msra.mxu0 0.0
    %571 = vmatprep.subr.mxu0 0.0
    %572 = vmatpush2.msra.mxu0 0.0
    %573 = vmatprep.subr.mxu0 0.0
    %574 = vmatpush2.msra.mxu0 0.0
    %575 = vmatprep.subr.mxu0 0.0
    %576 = vmatpush2.msra.mxu0 0.0
    %577 = vmatprep.subr.mxu0 0.0
    %578 = vmatpush2.msra.mxu0 0.0
    %579 = vmatprep.subr.mxu0 0.0
    %580 = vmatpush2.msra.mxu0 0.0
    %581 = vmatprep.subr.mxu0 0.0
    %582 = vmatpush2.msra.mxu0 0.0
    %583 = vmatprep.subr.mxu0 0.0
    %584 = vmatpush2.msra.mxu0 0.0
    %585 = vmatprep.mubr.f32.mxu0 0.0
    %586 = vmatmul.mubr.f32.gmra.mxu0 %v512
    %v587 = vpop.f32.mrf.mxu0
    %v588 = vadd.f32 0.0, %v587
    %v589 = vpop.f32.mrf.mxu0
    %v590 = vadd.f32 0.0, %v589
    %591 = vdwg.mxu0
    %592 = vmatprep.subr.mxu0 %v511
    %593 = vmatpush1.msra.mxu0 %v510
    %594 = vmatprep.subr.mxu0 %v507
    %595 = vmatpush1.msra.mxu0 %v506
    %596 = vmatprep.subr.mxu0 %v503
    %597 = vmatpush1.msra.mxu0 %v502
    %598 = vmatprep.subr.mxu0 %v499
    %599 = vmatpush1.msra.mxu0 %v498
    %600 = vmatprep.subr.mxu0 %v495
    %601 = vmatpush1.msra.mxu0 %v494
    %602 = vmatprep.subr.mxu0 %v491
    %603 = vmatpush1.msra.mxu0 %v490
    %604 = vmatprep.subr.mxu0 %v487
    %605 = vmatpush1.msra.mxu0 %v486
    %606 = vmatprep.subr.mxu0 %v483
    %607 = vmatpush1.msra.mxu0 %v482
    %608 = vmatprep.subr.mxu0 %v479
    %609 = vmatpush1.msra.mxu0 %v478
    %610 = vmatprep.subr.mxu0 %v475
    %611 = vmatpush1.msra.mxu0 %v474
    %612 = vmatprep.subr.mxu0 %v471
    %613 = vmatpush1.msra.mxu0 %v470
    %614 = vmatprep.subr.mxu0 %v467
    %615 = vmatpush1.msra.mxu0 %v466
    %616 = vmatprep.subr.mxu0 %v463
    %617 = vmatpush1.msra.mxu0 %v462
    %618 = vmatprep.subr.mxu0 %v459
    %619 = vmatpush1.msra.mxu0 %v458
    %620 = vmatprep.subr.mxu0 %v455
    %621 = vmatpush1.msra.mxu0 %v454
    %622 = vmatprep.subr.mxu0 %v451
    %623 = vmatpush1.msra.mxu0 %v450
    %624 = vmatprep.subr.mxu0 0.0
    %625 = vmatpush2.msra.mxu0 0.0
    %626 = vmatprep.subr.mxu0 0.0
    %627 = vmatpush2.msra.mxu0 0.0
    %628 = vmatprep.subr.mxu0 0.0
    %629 = vmatpush2.msra.mxu0 0.0
    %630 = vmatprep.subr.mxu0 0.0
    %631 = vmatpush2.msra.mxu0 0.0
    %632 = vmatprep.subr.mxu0 0.0
    %633 = vmatpush2.msra.mxu0 0.0
    %634 = vmatprep.subr.mxu0 0.0
    %635 = vmatpush2.msra.mxu0 0.0
    %636 = vmatprep.subr.mxu0 0.0
    %637 = vmatpush2.msra.mxu0 0.0
    %638 = vmatprep.subr.mxu0 0.0
    %639 = vmatpush2.msra.mxu0 0.0
    %640 = vmatprep.subr.mxu0 0.0
    %641 = vmatpush2.msra.mxu0 0.0
    %642 = vmatprep.subr.mxu0 0.0
    %643 = vmatpush2.msra.mxu0 0.0
    %644 = vmatprep.subr.mxu0 0.0
    %645 = vmatpush2.msra.mxu0 0.0
    %646 = vmatprep.subr.mxu0 0.0
    %647 = vmatpush2.msra.mxu0 0.0
    %648 = vmatprep.subr.mxu0 0.0
    %649 = vmatpush2.msra.mxu0 0.0
    %650 = vmatprep.subr.mxu0 0.0
    %651 = vmatpush2.msra.mxu0 0.0
    %652 = vmatprep.subr.mxu0 0.0
    %653 = vmatpush2.msra.mxu0 0.0
    %654 = vmatprep.subr.mxu0 0.0
    %655 = vmatpush2.msra.mxu0 0.0
    %656 = vmatprep.mubr.f32.mxu0 0.0
    %657 = vmatmul.mubr.f32.gmra.mxu0 %v512
    %v658 = vpop.f32.mrf.mxu0
    %v659 = vadd.f32 0.0, %v658
    %v660 = vpop.f32.mrf.mxu0
    %v661 = vadd.f32 0.0, %v660
    %662 = vdwg.mxu0
    %v663 = vadd.f32 %v517, %v588
    %v664 = vadd.f32 %v518, %v590
    %v665 = vadd.f32 %v519, %v659
    %v666 = vadd.f32 %v520, %v661
    %v667 = vxor.u32 %v663, 2147483648
    %v668 = vmul.f32 %v667, 1.442695
    %v669 = vpow.pop %v668
    %v670 = vadd.f32 %v669, 1.0
    %v671 = vrcp.pop %v670
    %v672 = vmul.f32 1.0, %v671
    %v673 = vxor.u32 %v664, 2147483648
    %v674 = vmul.f32 %v673, 1.442695
    %v675 = vpow.pop %v674
    %v676 = vadd.f32 %v675, 1.0
    %v677 = vrcp.pop %v676
    %v678 = vmul.f32 1.0, %v677
    %v679 = vtanh.pop %v665
    %v680 = vxor.u32 %v666, 2147483648
    %v681 = vmul.f32 %v680, 1.442695
    %v682 = vpow.pop %v681
    %v683 = vadd.f32 %v682, 1.0
    %v684 = vrcp.pop %v683
    %v685 = vmul.f32 1.0, %v684
    %v686 = vmul.f32 %v678, %v513
    %v687 = vmul.f32 %v672, %v679
    %v688 = vadd.f32 %v686, %v687
    %v689 = vtanh.pop %v688
    %v690 = vmul.f32 %v685, %v689
    %691 = vst [vmem:[#allocation2] sm:$0xff] %v690
    %s692 = smul.u32 1, 4
    %s693 = smul.addr %s692, 8
    %s694 = scalar_lea.vmem [#allocation3], %s693
    %v695 = vld [vmem:[%s694] sm:$0xff]
    %v696 = vld [vmem:[%s694 + $0x8] sm:$0xff]
    %v697 = vld [vmem:[%s694 + $0x10] sm:$0xff]
    %v698 = vld [vmem:[%s694 + $0x18] sm:$0xff]
    %699 = vmatprep.subr.mxu0 %v509
    %700 = vmatpush1.msra.mxu0 %v508
    %701 = vmatprep.subr.mxu0 %v505
    %702 = vmatpush1.msra.mxu0 %v504
    %703 = vmatprep.subr.mxu0 %v501
    %704 = vmatpush1.msra.mxu0 %v500
    %705 = vmatprep.subr.mxu0 %v497
    %706 = vmatpush1.msra.mxu0 %v496
    %707 = vmatprep.subr.mxu0 %v493
    %708 = vmatpush1.msra.mxu0 %v492
    %709 = vmatprep.subr.mxu0 %v489
    %710 = vmatpush1.msra.mxu0 %v488
    %711 = vmatprep.subr.mxu0 %v485
    %712 = vmatpush1.msra.mxu0 %v484
    %713 = vmatprep.subr.mxu0 %v481
    %714 = vmatpush1.msra.mxu0 %v480
    %715 = vmatprep.subr.mxu0 %v477
    %716 = vmatpush1.msra.mxu0 %v476
    %717 = vmatprep.subr.mxu0 %v473
    %718 = vmatpush1.msra.mxu0 %v472
    %719 = vmatprep.subr.mxu0 %v469
    %720 = vmatpush1.msra.mxu0 %v468
    %721 = vmatprep.subr.mxu0 %v465
    %722 = vmatpush1.msra.mxu0 %v464
    %723 = vmatprep.subr.mxu0 %v461
    %724 = vmatpush1.msra.mxu0 %v460
    %725 = vmatprep.subr.mxu0 %v457
    %726 = vmatpush1.msra.mxu0 %v456
    %727 = vmatprep.subr.mxu0 %v453
    %728 = vmatpush1.msra.mxu0 %v452
    %729 = vmatprep.subr.mxu0 %v449
    %730 = vmatpush1.msra.mxu0 %v448
    %731 = vmatprep.subr.mxu0 0.0
    %732 = vmatpush2.msra.mxu0 0.0
    %733 = vmatprep.subr.mxu0 0.0
    %734 = vmatpush2.msra.mxu0 0.0
    %735 = vmatprep.subr.mxu0 0.0
    %736 = vmatpush2.msra.mxu0 0.0
    %737 = vmatprep.subr.mxu0 0.0
    %738 = vmatpush2.msra.mxu0 0.0
    %739 = vmatprep.subr.mxu0 0.0
    %740 = vmatpush2.msra.mxu0 0.0
    %741 = vmatprep.subr.mxu0 0.0
    %742 = vmatpush2.msra.mxu0 0.0
    %743 = vmatprep.subr.mxu0 0.0
    %744 = vmatpush2.msra.mxu0 0.0
    %745 = vmatprep.subr.mxu0 0.0
    %746 = vmatpush2.msra.mxu0 0.0
    %747 = vmatprep.subr.mxu0 0.0
    %748 = vmatpush2.msra.mxu0 0.0
    %749 = vmatprep.subr.mxu0 0.0
    %750 = vmatpush2.msra.mxu0 0.0
    %751 = vmatprep.subr.mxu0 0.0
    %752 = vmatpush2.msra.mxu0 0.0
    %753 = vmatprep.subr.mxu0 0.0
    %754 = vmatpush2.msra.mxu0 0.0
    %755 = vmatprep.subr.mxu0 0.0
    %756 = vmatpush2.msra.mxu0 0.0
    %757 = vmatprep.subr.mxu0 0.0
    %758 = vmatpush2.msra.mxu0 0.0
    %759 = vmatprep.subr.mxu0 0.0
    %760 = vmatpush2.msra.mxu0 0.0
    %761 = vmatprep.subr.mxu0 0.0
    %762 = vmatpush2.msra.mxu0 0.0
    %763 = vmatprep.mubr.f32.mxu0 0.0
    %764 = vmatmul.mubr.f32.gmra.mxu0 %v690
    %v765 = vpop.f32.mrf.mxu0
    %v766 = vadd.f32 0.0, %v765
    %v767 = vpop.f32.mrf.mxu0
    %v768 = vadd.f32 0.0, %v767
    %769 = vdwg.mxu0
    %770 = vmatprep.subr.mxu0 %v511
    %771 = vmatpush1.msra.mxu0 %v510
    %772 = vmatprep.subr.mxu0 %v507
    %773 = vmatpush1.msra.mxu0 %v506
    %774 = vmatprep.subr.mxu0 %v503
    %775 = vmatpush1.msra.mxu0 %v502
    %776 = vmatprep.subr.mxu0 %v499
    %777 = vmatpush1.msra.mxu0 %v498
    %778 = vmatprep.subr.mxu0 %v495
    %779 = vmatpush1.msra.mxu0 %v494
    %780 = vmatprep.subr.mxu0 %v491
    %781 = vmatpush1.msra.mxu0 %v490
    %782 = vmatprep.subr.mxu0 %v487
    %783 = vmatpush1.msra.mxu0 %v486
    %784 = vmatprep.subr.mxu0 %v483
    %785 = vmatpush1.msra.mxu0 %v482
    %786 = vmatprep.subr.mxu0 %v479
    %787 = vmatpush1.msra.mxu0 %v478
    %788 = vmatprep.subr.mxu0 %v475
    %789 = vmatpush1.msra.mxu0 %v474
    %790 = vmatprep.subr.mxu0 %v471
    %791 = vmatpush1.msra.mxu0 %v470
    %792 = vmatprep.subr.mxu0 %v467
    %793 = vmatpush1.msra.mxu0 %v466
    %794 = vmatprep.subr.mxu0 %v463
    %795 = vmatpush1.msra.mxu0 %v462
    %796 = vmatprep.subr.mxu0 %v459
    %797 = vmatpush1.msra.mxu0 %v458
    %798 = vmatprep.subr.mxu0 %v455
    %799 = vmatpush1.msra.mxu0 %v454
    %800 = vmatprep.subr.mxu0 %v451
    %801 = vmatpush1.msra.mxu0 %v450
    %802 = vmatprep.subr.mxu0 0.0
    %803 = vmatpush2.msra.mxu0 0.0
    %804 = vmatprep.subr.mxu0 0.0
    %805 = vmatpush2.msra.mxu0 0.0
    %806 = vmatprep.subr.mxu0 0.0
    %807 = vmatpush2.msra.mxu0 0.0
    %808 = vmatprep.subr.mxu0 0.0
    %809 = vmatpush2.msra.mxu0 0.0
    %810 = vmatprep.subr.mxu0 0.0
    %811 = vmatpush2.msra.mxu0 0.0
    %812 = vmatprep.subr.mxu0 0.0
    %813 = vmatpush2.msra.mxu0 0.0
    %814 = vmatprep.subr.mxu0 0.0
    %815 = vmatpush2.msra.mxu0 0.0
    %816 = vmatprep.subr.mxu0 0.0
    %817 = vmatpush2.msra.mxu0 0.0
    %818 = vmatprep.subr.mxu0 0.0
    %819 = vmatpush2.msra.mxu0 0.0
    %820 = vmatprep.subr.mxu0 0.0
    %821 = vmatpush2.msra.mxu0 0.0
    %822 = vmatprep.subr.mxu0 0.0
    %823 = vmatpush2.msra.mxu0 0.0
    %824 = vmatprep.subr.mxu0 0.0
    %825 = vmatpush2.msra.mxu0 0.0
    %826 = vmatprep.subr.mxu0 0.0
    %827 = vmatpush2.msra.mxu0 0.0
    %828 = vmatprep.subr.mxu0 0.0
    %829 = vmatpush2.msra.mxu0 0.0
    %830 = vmatprep.subr.mxu0 0.0
    %831 = vmatpush2.msra.mxu0 0.0
    %832 = vmatprep.subr.mxu0 0.0
    %833 = vmatpush2.msra.mxu0 0.0
    %834 = vmatprep.mubr.f32.mxu0 0.0
    %835 = vmatmul.mubr.f32.gmra.mxu0 %v690
    %v836 = vpop.f32.mrf.mxu0
    %v837 = vadd.f32 0.0, %v836
    %v838 = vpop.f32.mrf.mxu0
    %v839 = vadd.f32 0.0, %v838
    %840 = vdwg.mxu0
    %v841 = vadd.f32 %v695, %v766
    %v842 = vadd.f32 %v696, %v768
    %v843 = vadd.f32 %v697, %v837
    %v844 = vadd.f32 %v698, %v839
    %v845 = vxor.u32 %v841, 2147483648
    %v846 = vmul.f32 %v845, 1.442695
    %v847 = vpow.pop %v846
    %v848 = vadd.f32 %v847, 1.0
    %v849 = vrcp.pop %v848
    %v850 = vmul.f32 1.0, %v849
    %v851 = vxor.u32 %v842, 2147483648
    %v852 = vmul.f32 %v851, 1.442695
    %v853 = vpow.pop %v852
    %v854 = vadd.f32 %v853, 1.0
    %v855 = vrcp.pop %v854
    %v856 = vmul.f32 1.0, %v855
    %v857 = vtanh.pop %v843
    %v858 = vxor.u32 %v844, 2147483648
    %v859 = vmul.f32 %v858, 1.442695
    %v860 = vpow.pop %v859
    %v861 = vadd.f32 %v860, 1.0
    %v862 = vrcp.pop %v861
    %v863 = vmul.f32 1.0, %v862
    %v864 = vmul.f32 %v856, %v688
    %v865 = vmul.f32 %v850, %v857
    %v866 = vadd.f32 %v864, %v865
    %v867 = vtanh.pop %v866
    %v868 = vmul.f32 %v863, %v867
    %s869 = scalar_lea.vmem [#allocation2], 8
    %870 = vst [vmem:[%s869] sm:$0xff] %v868
    %s871 = smul.u32 2, 4
    %s872 = smul.addr %s871, 8
    %s873 = scalar_lea.vmem [#allocation3], %s872
    %v874 = vld [vmem:[%s873] sm:$0xff]
    %v875 = vld [vmem:[%s873 + $0x8] sm:$0xff]
    %v876 = vld [vmem:[%s873 + $0x10] sm:$0xff]
    %v877 = vld [vmem:[%s873 + $0x18] sm:$0xff]
    %878 = vmatprep.subr.mxu0 %v509
    %879 = vmatpush1.msra.mxu0 %v508
    %880 = vmatprep.subr.mxu0 %v505
    %881 = vmatpush1.msra.mxu0 %v504
    %882 = vmatprep.subr.mxu0 %v501
    %883 = vmatpush1.msra.mxu0 %v500
    %884 = vmatprep.subr.mxu0 %v497
    %885 = vmatpush1.msra.mxu0 %v496
    %886 = vmatprep.subr.mxu0 %v493
    %887 = vmatpush1.msra.mxu0 %v492
    %888 = vmatprep.subr.mxu0 %v489
    %889 = vmatpush1.msra.mxu0 %v488
    %890 = vmatprep.subr.mxu0 %v485
    %891 = vmatpush1.msra.mxu0 %v484
    %892 = vmatprep.subr.mxu0 %v481
    %893 = vmatpush1.msra.mxu0 %v480
    %894 = vmatprep.subr.mxu0 %v477
    %895 = vmatpush1.msra.mxu0 %v476
    %896 = vmatprep.subr.mxu0 %v473
    %897 = vmatpush1.msra.mxu0 %v472
    %898 = vmatprep.subr.mxu0 %v469
    %899 = vmatpush1.msra.mxu0 %v468
    %900 = vmatprep.subr.mxu0 %v465
    %901 = vmatpush1.msra.mxu0 %v464
    %902 = vmatprep.subr.mxu0 %v461
    %903 = vmatpush1.msra.mxu0 %v460
    %904 = vmatprep.subr.mxu0 %v457
    %905 = vmatpush1.msra.mxu0 %v456
    %906 = vmatprep.subr.mxu0 %v453
    %907 = vmatpush1.msra.mxu0 %v452
    %908 = vmatprep.subr.mxu0 %v449
    %909 = vmatpush1.msra.mxu0 %v448
    %910 = vmatprep.subr.mxu0 0.0
    %911 = vmatpush2.msra.mxu0 0.0
    %912 = vmatprep.subr.mxu0 0.0
    %913 = vmatpush2.msra.mxu0 0.0
    %914 = vmatprep.subr.mxu0 0.0
    %915 = vmatpush2.msra.mxu0 0.0
    %916 = vmatprep.subr.mxu0 0.0
    %917 = vmatpush2.msra.mxu0 0.0
    %918 = vmatprep.subr.mxu0 0.0
    %919 = vmatpush2.msra.mxu0 0.0
    %920 = vmatprep.subr.mxu0 0.0
    %921 = vmatpush2.msra.mxu0 0.0
    %922 = vmatprep.subr.mxu0 0.0
    %923 = vmatpush2.msra.mxu0 0.0
    %924 = vmatprep.subr.mxu0 0.0
    %925 = vmatpush2.msra.mxu0 0.0
    %926 = vmatprep.subr.mxu0 0.0
    %927 = vmatpush2.msra.mxu0 0.0
    %928 = vmatprep.subr.mxu0 0.0
    %929 = vmatpush2.msra.mxu0 0.0
    %930 = vmatprep.subr.mxu0 0.0
    %931 = vmatpush2.msra.mxu0 0.0
    %932 = vmatprep.subr.mxu0 0.0
    %933 = vmatpush2.msra.mxu0 0.0
    %934 = vmatprep.subr.mxu0 0.0
    %935 = vmatpush2.msra.mxu0 0.0
    %936 = vmatprep.subr.mxu0 0.0
    %937 = vmatpush2.msra.mxu0 0.0
    %938 = vmatprep.subr.mxu0 0.0
    %939 = vmatpush2.msra.mxu0 0.0
    %940 = vmatprep.subr.mxu0 0.0
    %941 = vmatpush2.msra.mxu0 0.0
    %942 = vmatprep.mubr.f32.mxu0 0.0
    %943 = vmatmul.mubr.f32.gmra.mxu0 %v868
    %v944 = vpop.f32.mrf.mxu0
    %v945 = vadd.f32 0.0, %v944
    %v946 = vpop.f32.mrf.mxu0
    %v947 = vadd.f32 0.0, %v946
    %948 = vdwg.mxu0
    %949 = vmatprep.subr.mxu0 %v511
    %950 = vmatpush1.msra.mxu0 %v510
    %951 = vmatprep.subr.mxu0 %v507
    %952 = vmatpush1.msra.mxu0 %v506
    %953 = vmatprep.subr.mxu0 %v503
    %954 = vmatpush1.msra.mxu0 %v502
    %955 = vmatprep.subr.mxu0 %v499
    %956 = vmatpush1.msra.mxu0 %v498
    %957 = vmatprep.subr.mxu0 %v495
    %958 = vmatpush1.msra.mxu0 %v494
    %959 = vmatprep.subr.mxu0 %v491
    %960 = vmatpush1.msra.mxu0 %v490
    %961 = vmatprep.subr.mxu0 %v487
    %962 = vmatpush1.msra.mxu0 %v486
    %963 = vmatprep.subr.mxu0 %v483
    %964 = vmatpush1.msra.mxu0 %v482
    %965 = vmatprep.subr.mxu0 %v479
    %966 = vmatpush1.msra.mxu0 %v478
    %967 = vmatprep.subr.mxu0 %v475
    %968 = vmatpush1.msra.mxu0 %v474
    %969 = vmatprep.subr.mxu0 %v471
    %970 = vmatpush1.msra.mxu0 %v470
    %971 = vmatprep.subr.mxu0 %v467
    %972 = vmatpush1.msra.mxu0 %v466
    %973 = vmatprep.subr.mxu0 %v463
    %974 = vmatpush1.msra.mxu0 %v462
    %975 = vmatprep.subr.mxu0 %v459
    %976 = vmatpush1.msra.mxu0 %v458
    %977 = vmatprep.subr.mxu0 %v455
    %978 = vmatpush1.msra.mxu0 %v454
    %979 = vmatprep.subr.mxu0 %v451
    %980 = vmatpush1.msra.mxu0 %v450
    %981 = vmatprep.subr.mxu0 0.0
    %982 = vmatpush2.msra.mxu0 0.0
    %983 = vmatprep.subr.mxu0 0.0
    %984 = vmatpush2.msra.mxu0 0.0
    %985 = vmatprep.subr.mxu0 0.0
    %986 = vmatpush2.msra.mxu0 0.0
    %987 = vmatprep.subr.mxu0 0.0
    %988 = vmatpush2.msra.mxu0 0.0
    %989 = vmatprep.subr.mxu0 0.0
    %990 = vmatpush2.msra.mxu0 0.0
    %991 = vmatprep.subr.mxu0 0.0
    %992 = vmatpush2.msra.mxu0 0.0
    %993 = vmatprep.subr.mxu0 0.0
    %994 = vmatpush2.msra.mxu0 0.0
    %995 = vmatprep.subr.mxu0 0.0
    %996 = vmatpush2.msra.mxu0 0.0
    %997 = vmatprep.subr.mxu0 0.0
    %998 = vmatpush2.msra.mxu0 0.0
    %999 = vmatprep.subr.mxu0 0.0
    %1000 = vmatpush2.msra.mxu0 0.0
    %1001 = vmatprep.subr.mxu0 0.0
    %1002 = vmatpush2.msra.mxu0 0.0
    %1003 = vmatprep.subr.mxu0 0.0
    %1004 = vmatpush2.msra.mxu0 0.0
    %1005 = vmatprep.subr.mxu0 0.0
    %1006 = vmatpush2.msra.mxu0 0.0
    %1007 = vmatprep.subr.mxu0 0.0
    %1008 = vmatpush2.msra.mxu0 0.0
    %1009 = vmatprep.subr.mxu0 0.0
    %1010 = vmatpush2.msra.mxu0 0.0
    %1011 = vmatprep.subr.mxu0 0.0
    %1012 = vmatpush2.msra.mxu0 0.0
    %1013 = vmatprep.mubr.f32.mxu0 0.0
    %1014 = vmatmul.mubr.f32.gmra.mxu0 %v868
    %v1015 = vpop.f32.mrf.mxu0
    %v1016 = vadd.f32 0.0, %v1015
    %v1017 = vpop.f32.mrf.mxu0
    %v1018 = vadd.f32 0.0, %v1017
    %1019 = vdwg.mxu0
    %v1020 = vadd.f32 %v874, %v945
    %v1021 = vadd.f32 %v875, %v947
    %v1022 = vadd.f32 %v876, %v1016
    %v1023 = vadd.f32 %v877, %v1018
    %v1024 = vxor.u32 %v1020, 2147483648
    %v1025 = vmul.f32 %v1024, 1.442695
    %v1026 = vpow.pop %v1025
    %v1027 = vadd.f32 %v1026, 1.0
    %v1028 = vrcp.pop %v1027
    %v1029 = vmul.f32 1.0, %v1028
    %v1030 = vxor.u32 %v1021, 2147483648
    %v1031 = vmul.f32 %v1030, 1.442695
    %v1032 = vpow.pop %v1031
    %v1033 = vadd.f32 %v1032, 1.0
    %v1034 = vrcp.pop %v1033
    %v1035 = vmul.f32 1.0, %v1034
    %v1036 = vtanh.pop %v1022
    %v1037 = vxor.u32 %v1023, 2147483648
    %v1038 = vmul.f32 %v1037, 1.442695
    %v1039 = vpow.pop %v1038
    %v1040 = vadd.f32 %v1039, 1.0
    %v1041 = vrcp.pop %v1040
    %v1042 = vmul.f32 1.0, %v1041
    %v1043 = vmul.f32 %v1035, %v866
    %v1044 = vmul.f32 %v1029, %v1036
    %v1045 = vadd.f32 %v1043, %v1044
    %v1046 = vtanh.pop %v1045
    %v1047 = vmul.f32 %v1042, %v1046
    %s1048 = scalar_lea.vmem [#allocation2], 16
    %1049 = vst [vmem:[%s1048] sm:$0xff] %v1047
    %s1050 = smul.u32 3, 4
    %s1051 = smul.addr %s1050, 8
    %s1052 = scalar_lea.vmem [#allocation3], %s1051
    %v1053 = vld [vmem:[%s1052] sm:$0xff]
    %v1054 = vld [vmem:[%s1052 + $0x8] sm:$0xff]
    %v1055 = vld [vmem:[%s1052 + $0x10] sm:$0xff]
    %v1056 = vld [vmem:[%s1052 + $0x18] sm:$0xff]
    %1057 = vmatprep.subr.mxu0 %v509
    %1058 = vmatpush1.msra.mxu0 %v508
    %1059 = vmatprep.subr.mxu0 %v505
    %1060 = vmatpush1.msra.mxu0 %v504
    %1061 = vmatprep.subr.mxu0 %v501
    %1062 = vmatpush1.msra.mxu0 %v500
    %1063 = vmatprep.subr.mxu0 %v497
    %1064 = vmatpush1.msra.mxu0 %v496
    %1065 = vmatprep.subr.mxu0 %v493
    %1066 = vmatpush1.msra.mxu0 %v492
    %1067 = vmatprep.subr.mxu0 %v489
    %1068 = vmatpush1.msra.mxu0 %v488
    %1069 = vmatprep.subr.mxu0 %v485
    %1070 = vmatpush1.msra.mxu0 %v484
    %1071 = vmatprep.subr.mxu0 %v481
    %1072 = vmatpush1.msra.mxu0 %v480
    %1073 = vmatprep.subr.mxu0 %v477
    %1074 = vmatpush1.msra.mxu0 %v476
    %1075 = vmatprep.subr.mxu0 %v473
    %1076 = vmatpush1.msra.mxu0 %v472
    %1077 = vmatprep.subr.mxu0 %v469
    %1078 = vmatpush1.msra.mxu0 %v468
    %1079 = vmatprep.subr.mxu0 %v465
    %1080 = vmatpush1.msra.mxu0 %v464
    %1081 = vmatprep.subr.mxu0 %v461
    %1082 = vmatpush1.msra.mxu0 %v460
    %1083 = vmatprep.subr.mxu0 %v457
    %1084 = vmatpush1.msra.mxu0 %v456
    %1085 = vmatprep.subr.mxu0 %v453
    %1086 = vmatpush1.msra.mxu0 %v452
    %1087 = vmatprep.subr.mxu0 %v449
    %1088 = vmatpush1.msra.mxu0 %v448
    %1089 = vmatprep.subr.mxu0 0.0
    %1090 = vmatpush2.msra.mxu0 0.0
    %1091 = vmatprep.subr.mxu0 0.0
    %1092 = vmatpush2.msra.mxu0 0.0
    %1093 = vmatprep.subr.mxu0 0.0
    %1094 = vmatpush2.msra.mxu0 0.0
    %1095 = vmatprep.subr.mxu0 0.0
    %1096 = vmatpush2.msra.mxu0 0.0
    %1097 = vmatprep.subr.mxu0 0.0
    %1098 = vmatpush2.msra.mxu0 0.0
    %1099 = vmatprep.subr.mxu0 0.0
    %1100 = vmatpush2.msra.mxu0 0.0
    %1101 = vmatprep.subr.mxu0 0.0
    %1102 = vmatpush2.msra.mxu0 0.0
    %1103 = vmatprep.subr.mxu0 0.0
    %1104 = vmatpush2.msra.mxu0 0.0
    %1105 = vmatprep.subr.mxu0 0.0
    %1106 = vmatpush2.msra.mxu0 0.0
    %1107 = vmatprep.subr.mxu0 0.0
    %1108 = vmatpush2.msra.mxu0 0.0
    %1109 = vmatprep.subr.mxu0 0.0
    %1110 = vmatpush2.msra.mxu0 0.0
    %1111 = vmatprep.subr.mxu0 0.0
    %1112 = vmatpush2.msra.mxu0 0.0
    %1113 = vmatprep.subr.mxu0 0.0
    %1114 = vmatpush2.msra.mxu0 0.0
    %1115 = vmatprep.subr.mxu0 0.0
    %1116 = vmatpush2.msra.mxu0 0.0
    %1117 = vmatprep.subr.mxu0 0.0
    %1118 = vmatpush2.msra.mxu0 0.0
    %1119 = vmatprep.subr.mxu0 0.0
    %1120 = vmatpush2.msra.mxu0 0.0
    %1121 = vmatprep.mubr.f32.mxu0 0.0
    %1122 = vmatmul.mubr.f32.gmra.mxu0 %v1047
    %v1123 = vpop.f32.mrf.mxu0
    %v1124 = vadd.f32 0.0, %v1123
    %v1125 = vpop.f32.mrf.mxu0
    %v1126 = vadd.f32 0.0, %v1125
    %1127 = vdwg.mxu0
    %1128 = vmatprep.subr.mxu0 %v511
    %1129 = vmatpush1.msra.mxu0 %v510
    %1130 = vmatprep.subr.mxu0 %v507
    %1131 = vmatpush1.msra.mxu0 %v506
    %1132 = vmatprep.subr.mxu0 %v503
    %1133 = vmatpush1.msra.mxu0 %v502
    %1134 = vmatprep.subr.mxu0 %v499
    %1135 = vmatpush1.msra.mxu0 %v498
    %1136 = vmatprep.subr.mxu0 %v495
    %1137 = vmatpush1.msra.mxu0 %v494
    %1138 = vmatprep.subr.mxu0 %v491
    %1139 = vmatpush1.msra.mxu0 %v490
    %1140 = vmatprep.subr.mxu0 %v487
    %1141 = vmatpush1.msra.mxu0 %v486
    %1142 = vmatprep.subr.mxu0 %v483
    %1143 = vmatpush1.msra.mxu0 %v482
    %1144 = vmatprep.subr.mxu0 %v479
    %1145 = vmatpush1.msra.mxu0 %v478
    %1146 = vmatprep.subr.mxu0 %v475
    %1147 = vmatpush1.msra.mxu0 %v474
    %1148 = vmatprep.subr.mxu0 %v471
    %1149 = vmatpush1.msra.mxu0 %v470
    %1150 = vmatprep.subr.mxu0 %v467
    %1151 = vmatpush1.msra.mxu0 %v466
    %1152 = vmatprep.subr.mxu0 %v463
    %1153 = vmatpush1.msra.mxu0 %v462
    %1154 = vmatprep.subr.mxu0 %v459
    %1155 = vmatpush1.msra.mxu0 %v458
    %1156 = vmatprep.subr.mxu0 %v455
    %1157 = vmatpush1.msra.mxu0 %v454
    %1158 = vmatprep.subr.mxu0 %v451
    %1159 = vmatpush1.msra.mxu0 %v450
    %1160 = vmatprep.subr.mxu0 0.0
    %1161 = vmatpush2.msra.mxu0 0.0
    %1162 = vmatprep.subr.mxu0 0.0
    %1163 = vmatpush2.msra.mxu0 0.0
    %1164 = vmatprep.subr.mxu0 0.0
    %1165 = vmatpush2.msra.mxu0 0.0
    %1166 = vmatprep.subr.mxu0 0.0
    %1167 = vmatpush2.msra.mxu0 0.0
    %1168 = vmatprep.subr.mxu0 0.0
    %1169 = vmatpush2.msra.mxu0 0.0
    %1170 = vmatprep.subr.mxu0 0.0
    %1171 = vmatpush2.msra.mxu0 0.0
    %1172 = vmatprep.subr.mxu0 0.0
    %1173 = vmatpush2.msra.mxu0 0.0
    %1174 = vmatprep.subr.mxu0 0.0
    %1175 = vmatpush2.msra.mxu0 0.0
    %1176 = vmatprep.subr.mxu0 0.0
    %1177 = vmatpush2.msra.mxu0 0.0
    %1178 = vmatprep.subr.mxu0 0.0
    %1179 = vmatpush2.msra.mxu0 0.0
    %1180 = vmatprep.subr.mxu0 0.0
    %1181 = vmatpush2.msra.mxu0 0.0
    %1182 = vmatprep.subr.mxu0 0.0
    %1183 = vmatpush2.msra.mxu0 0.0
    %1184 = vmatprep.subr.mxu0 0.0
    %1185 = vmatpush2.msra.mxu0 0.0
    %1186 = vmatprep.subr.mxu0 0.0
    %1187 = vmatpush2.msra.mxu0 0.0
    %1188 = vmatprep.subr.mxu0 0.0
    %1189 = vmatpush2.msra.mxu0 0.0
    %1190 = vmatprep.subr.mxu0 0.0
    %1191 = vmatpush2.msra.mxu0 0.0
    %1192 = vmatprep.mubr.f32.mxu0 0.0
    %1193 = vmatmul.mubr.f32.gmra.mxu0 %v1047
    %v1194 = vpop.f32.mrf.mxu0
    %v1195 = vadd.f32 0.0, %v1194
    %v1196 = vpop.f32.mrf.mxu0
    %v1197 = vadd.f32 0.0, %v1196
    %1198 = vdwg.mxu0
    %v1199 = vadd.f32 %v1053, %v1124
    %v1200 = vadd.f32 %v1054, %v1126
    %v1201 = vadd.f32 %v1055, %v1195
    %v1202 = vadd.f32 %v1056, %v1197
    %v1203 = vxor.u32 %v1199, 2147483648
    %v1204 = vmul.f32 %v1203, 1.442695
    %v1205 = vpow.pop %v1204
    %v1206 = vadd.f32 %v1205, 1.0
    %v1207 = vrcp.pop %v1206
    %v1208 = vmul.f32 1.0, %v1207
    %v1209 = vxor.u32 %v1200, 2147483648
    %v1210 = vmul.f32 %v1209, 1.442695
    %v1211 = vpow.pop %v1210
    %v1212 = vadd.f32 %v1211, 1.0
    %v1213 = vrcp.pop %v1212
    %v1214 = vmul.f32 1.0, %v1213
    %v1215 = vtanh.pop %v1201
    %v1216 = vxor.u32 %v1202, 2147483648
    %v1217 = vmul.f32 %v1216, 1.442695
    %v1218 = vpow.pop %v1217
    %v1219 = vadd.f32 %v1218, 1.0
    %v1220 = vrcp.pop %v1219
    %v1221 = vmul.f32 1.0, %v1220
    %v1222 = vmul.f32 %v1214, %v1045
    %v1223 = vmul.f32 %v1208, %v1215
    %v1224 = vadd.f32 %v1222, %v1223
    %v1225 = vtanh.pop %v1224
    %v1226 = vmul.f32 %v1221, %v1225
    %s1227 = scalar_lea.vmem [#allocation2], 24
    %1228 = vst [vmem:[%s1227] sm:$0xff] %v1226
    %s1229 = smul.u32 4, 4
    %s1230 = smul.addr %s1229, 8
    %s1231 = scalar_lea.vmem [#allocation3], %s1230
    %v1232 = vld [vmem:[%s1231] sm:$0xff]
    %v1233 = vld [vmem:[%s1231 + $0x8] sm:$0xff]
    %v1234 = vld [vmem:[%s1231 + $0x10] sm:$0xff]
    %v1235 = vld [vmem:[%s1231 + $0x18] sm:$0xff]
    %1236 = vmatprep.subr.mxu0 %v509
    %1237 = vmatpush1.msra.mxu0 %v508
    %1238 = vmatprep.subr.mxu0 %v505
    %1239 = vmatpush1.msra.mxu0 %v504
    %1240 = vmatprep.subr.mxu0 %v501
    %1241 = vmatpush1.msra.mxu0 %v500
    %1242 = vmatprep.subr.mxu0 %v497
    %1243 = vmatpush1.msra.mxu0 %v496
    %1244 = vmatprep.subr.mxu0 %v493
    %1245 = vmatpush1.msra.mxu0 %v492
    %1246 = vmatprep.subr.mxu0 %v489
    %1247 = vmatpush1.msra.mxu0 %v488
    %1248 = vmatprep.subr.mxu0 %v485
    %1249 = vmatpush1.msra.mxu0 %v484
    %1250 = vmatprep.subr.mxu0 %v481
    %1251 = vmatpush1.msra.mxu0 %v480
    %1252 = vmatprep.subr.mxu0 %v477
    %1253 = vmatpush1.msra.mxu0 %v476
    %1254 = vmatprep.subr.mxu0 %v473
    %1255 = vmatpush1.msra.mxu0 %v472
    %1256 = vmatprep.subr.mxu0 %v469
    %1257 = vmatpush1.msra.mxu0 %v468
    %1258 = vmatprep.subr.mxu0 %v465
    %1259 = vmatpush1.msra.mxu0 %v464
    %1260 = vmatprep.subr.mxu0 %v461
    %1261 = vmatpush1.msra.mxu0 %v460
    %1262 = vmatprep.subr.mxu0 %v457
    %1263 = vmatpush1.msra.mxu0 %v456
    %1264 = vmatprep.subr.mxu0 %v453
    %1265 = vmatpush1.msra.mxu0 %v452
    %1266 = vmatprep.subr.mxu0 %v449
    %1267 = vmatpush1.msra.mxu0 %v448
    %1268 = vmatprep.subr.mxu0 0.0
    %1269 = vmatpush2.msra.mxu0 0.0
    %1270 = vmatprep.subr.mxu0 0.0
    %1271 = vmatpush2.msra.mxu0 0.0
    %1272 = vmatprep.subr.mxu0 0.0
    %1273 = vmatpush2.msra.mxu0 0.0
    %1274 = vmatprep.subr.mxu0 0.0
    %1275 = vmatpush2.msra.mxu0 0.0
    %1276 = vmatprep.subr.mxu0 0.0
    %1277 = vmatpush2.msra.mxu0 0.0
    %1278 = vmatprep.subr.mxu0 0.0
    %1279 = vmatpush2.msra.mxu0 0.0
    %1280 = vmatprep.subr.mxu0 0.0
    %1281 = vmatpush2.msra.mxu0 0.0
    %1282 = vmatprep.subr.mxu0 0.0
    %1283 = vmatpush2.msra.mxu0 0.0
    %1284 = vmatprep.subr.mxu0 0.0
    %1285 = vmatpush2.msra.mxu0 0.0
    %1286 = vmatprep.subr.mxu0 0.0
    %1287 = vmatpush2.msra.mxu0 0.0
    %1288 = vmatprep.subr.mxu0 0.0
    %1289 = vmatpush2.msra.mxu0 0.0
    %1290 = vmatprep.subr.mxu0 0.0
    %1291 = vmatpush2.msra.mxu0 0.0
    %1292 = vmatprep.subr.mxu0 0.0
    %1293 = vmatpush2.msra.mxu0 0.0
    %1294 = vmatprep.subr.mxu0 0.0
    %1295 = vmatpush2.msra.mxu0 0.0
    %1296 = vmatprep.subr.mxu0 0.0
    %1297 = vmatpush2.msra.mxu0 0.0
    %1298 = vmatprep.subr.mxu0 0.0
    %1299 = vmatpush2.msra.mxu0 0.0
    %1300 = vmatprep.mubr.f32.mxu0 0.0
    %1301 = vmatmul.mubr.f32.gmra.mxu0 %v1226
    %v1302 = vpop.f32.mrf.mxu0
    %v1303 = vadd.f32 0.0, %v1302
    %v1304 = vpop.f32.mrf.mxu0
    %v1305 = vadd.f32 0.0, %v1304
    %1306 = vdwg.mxu0
    %1307 = vmatprep.subr.mxu0 %v511
    %1308 = vmatpush1.msra.mxu0 %v510
    %1309 = vmatprep.subr.mxu0 %v507
    %1310 = vmatpush1.msra.mxu0 %v506
    %1311 = vmatprep.subr.mxu0 %v503
    %1312 = vmatpush1.msra.mxu0 %v502
    %1313 = vmatprep.subr.mxu0 %v499
    %1314 = vmatpush1.msra.mxu0 %v498
    %1315 = vmatprep.subr.mxu0 %v495
    %1316 = vmatpush1.msra.mxu0 %v494
    %1317 = vmatprep.subr.mxu0 %v491
    %1318 = vmatpush1.msra.mxu0 %v490
    %1319 = vmatprep.subr.mxu0 %v487
    %1320 = vmatpush1.msra.mxu0 %v486
    %1321 = vmatprep.subr.mxu0 %v483
    %1322 = vmatpush1.msra.mxu0 %v482
    %1323 = vmatprep.subr.mxu0 %v479
    %1324 = vmatpush1.msra.mxu0 %v478
    %1325 = vmatprep.subr.mxu0 %v475
    %1326 = vmatpush1.msra.mxu0 %v474
    %1327 = vmatprep.subr.mxu0 %v471
    %1328 = vmatpush1.msra.mxu0 %v470
    %1329 = vmatprep.subr.mxu0 %v467
    %1330 = vmatpush1.msra.mxu0 %v466
    %1331 = vmatprep.subr.mxu0 %v463
    %1332 = vmatpush1.msra.mxu0 %v462
    %1333 = vmatprep.subr.mxu0 %v459
    %1334 = vmatpush1.msra.mxu0 %v458
    %1335 = vmatprep.subr.mxu0 %v455
    %1336 = vmatpush1.msra.mxu0 %v454
    %1337 = vmatprep.subr.mxu0 %v451
    %1338 = vmatpush1.msra.mxu0 %v450
    %1339 = vmatprep.subr.mxu0 0.0
    %1340 = vmatpush2.msra.mxu0 0.0
    %1341 = vmatprep.subr.mxu0 0.0
    %1342 = vmatpush2.msra.mxu0 0.0
    %1343 = vmatprep.subr.mxu0 0.0
    %1344 = vmatpush2.msra.mxu0 0.0
    %1345 = vmatprep.subr.mxu0 0.0
    %1346 = vmatpush2.msra.mxu0 0.0
    %1347 = vmatprep.subr.mxu0 0.0
    %1348 = vmatpush2.msra.mxu0 0.0
    %1349 = vmatprep.subr.mxu0 0.0
    %1350 = vmatpush2.msra.mxu0 0.0
    %1351 = vmatprep.subr.mxu0 0.0
    %1352 = vmatpush2.msra.mxu0 0.0
    %1353 = vmatprep.subr.mxu0 0.0
    %1354 = vmatpush2.msra.mxu0 0.0
    %1355 = vmatprep.subr.mxu0 0.0
    %1356 = vmatpush2.msra.mxu0 0.0
    %1357 = vmatprep.subr.mxu0 0.0
    %1358 = vmatpush2.msra.mxu0 0.0
    %1359 = vmatprep.subr.mxu0 0.0
    %1360 = vmatpush2.msra.mxu0 0.0
    %1361 = vmatprep.subr.mxu0 0.0
    %1362 = vmatpush2.msra.mxu0 0.0
    %1363 = vmatprep.subr.mxu0 0.0
    %1364 = vmatpush2.msra.mxu0 0.0
    %1365 = vmatprep.subr.mxu0 0.0
    %1366 = vmatpush2.msra.mxu0 0.0
    %1367 = vmatprep.subr.mxu0 0.0
    %1368 = vmatpush2.msra.mxu0 0.0
    %1369 = vmatprep.subr.mxu0 0.0
    %1370 = vmatpush2.msra.mxu0 0.0
    %1371 = vmatprep.mubr.f32.mxu0 0.0
    %1372 = vmatmul.mubr.f32.gmra.mxu0 %v1226
    %v1373 = vpop.f32.mrf.mxu0
    %v1374 = vadd.f32 0.0, %v1373
    %v1375 = vpop.f32.mrf.mxu0
    %v1376 = vadd.f32 0.0, %v1375
    %1377 = vdwg.mxu0
    %v1378 = vadd.f32 %v1232, %v1303
    %v1379 = vadd.f32 %v1233, %v1305
    %v1380 = vadd.f32 %v1234, %v1374
    %v1381 = vadd.f32 %v1235, %v1376
    %v1382 = vxor.u32 %v1378, 2147483648
    %v1383 = vmul.f32 %v1382, 1.442695
    %v1384 = vpow.pop %v1383
    %v1385 = vadd.f32 %v1384, 1.0
    %v1386 = vrcp.pop %v1385
    %v1387 = vmul.f32 1.0, %v1386
    %v1388 = vxor.u32 %v1379, 2147483648
    %v1389 = vmul.f32 %v1388, 1.442695
    %v1390 = vpow.pop %v1389
    %v1391 = vadd.f32 %v1390, 1.0
    %v1392 = vrcp.pop %v1391
    %v1393 = vmul.f32 1.0, %v1392
    %v1394 = vtanh.pop %v1380
    %v1395 = vxor.u32 %v1381, 2147483648
    %v1396 = vmul.f32 %v1395, 1.442695
    %v1397 = vpow.pop %v1396
    %v1398 = vadd.f32 %v1397, 1.0
    %v1399 = vrcp.pop %v1398
    %v1400 = vmul.f32 1.0, %v1399
    %v1401 = vmul.f32 %v1393, %v1224
    %v1402 = vmul.f32 %v1387, %v1394
    %v1403 = vadd.f32 %v1401, %v1402
    %v1404 = vtanh.pop %v1403
    %v1405 = vmul.f32 %v1400, %v1404
    %s1406 = scalar_lea.vmem [#allocation2], 32
    %1407 = vst [vmem:[%s1406] sm:$0xff] %v1405
    %s1408 = smul.u32 5, 4
    %s1409 = smul.addr %s1408, 8
    %s1410 = scalar_lea.vmem [#allocation3], %s1409
    %v1411 = vld [vmem:[%s1410] sm:$0xff]
    %v1412 = vld [vmem:[%s1410 + $0x8] sm:$0xff]
    %v1413 = vld [vmem:[%s1410 + $0x10] sm:$0xff]
    %v1414 = vld [vmem:[%s1410 + $0x18] sm:$0xff]
    %1415 = vmatprep.subr.mxu0 %v509
    %1416 = vmatpush1.msra.mxu0 %v508
    %1417 = vmatprep.subr.mxu0 %v505
    %1418 = vmatpush1.msra.mxu0 %v504
    %1419 = vmatprep.subr.mxu0 %v501
    %1420 = vmatpush1.msra.mxu0 %v500
    %1421 = vmatprep.subr.mxu0 %v497
    %1422 = vmatpush1.msra.mxu0 %v496
    %1423 = vmatprep.subr.mxu0 %v493
    %1424 = vmatpush1.msra.mxu0 %v492
    %1425 = vmatprep.subr.mxu0 %v489
    %1426 = vmatpush1.msra.mxu0 %v488
    %1427 = vmatprep.subr.mxu0 %v485
    %1428 = vmatpush1.msra.mxu0 %v484
    %1429 = vmatprep.subr.mxu0 %v481
    %1430 = vmatpush1.msra.mxu0 %v480
    %1431 = vmatprep.subr.mxu0 %v477
    %1432 = vmatpush1.msra.mxu0 %v476
    %1433 = vmatprep.subr.mxu0 %v473
    %1434 = vmatpush1.msra.mxu0 %v472
    %1435 = vmatprep.subr.mxu0 %v469
    %1436 = vmatpush1.msra.mxu0 %v468
    %1437 = vmatprep.subr.mxu0 %v465
    %1438 = vmatpush1.msra.mxu0 %v464
    %1439 = vmatprep.subr.mxu0 %v461
    %1440 = vmatpush1.msra.mxu0 %v460
    %1441 = vmatprep.subr.mxu0 %v457
    %1442 = vmatpush1.msra.mxu0 %v456
    %1443 = vmatprep.subr.mxu0 %v453
    %1444 = vmatpush1.msra.mxu0 %v452
    %1445 = vmatprep.subr.mxu0 %v449
    %1446 = vmatpush1.msra.mxu0 %v448
    %1447 = vmatprep.subr.mxu0 0.0
    %1448 = vmatpush2.msra.mxu0 0.0
    %1449 = vmatprep.subr.mxu0 0.0
    %1450 = vmatpush2.msra.mxu0 0.0
    %1451 = vmatprep.subr.mxu0 0.0
    %1452 = vmatpush2.msra.mxu0 0.0
    %1453 = vmatprep.subr.mxu0 0.0
    %1454 = vmatpush2.msra.mxu0 0.0
    %1455 = vmatprep.subr.mxu0 0.0
    %1456 = vmatpush2.msra.mxu0 0.0
    %1457 = vmatprep.subr.mxu0 0.0
    %1458 = vmatpush2.msra.mxu0 0.0
    %1459 = vmatprep.subr.mxu0 0.0
    %1460 = vmatpush2.msra.mxu0 0.0
    %1461 = vmatprep.subr.mxu0 0.0
    %1462 = vmatpush2.msra.mxu0 0.0
    %1463 = vmatprep.subr.mxu0 0.0
    %1464 = vmatpush2.msra.mxu0 0.0
    %1465 = vmatprep.subr.mxu0 0.0
    %1466 = vmatpush2.msra.mxu0 0.0
    %1467 = vmatprep.subr.mxu0 0.0
    %1468 = vmatpush2.msra.mxu0 0.0
    %1469 = vmatprep.subr.mxu0 0.0
    %1470 = vmatpush2.msra.mxu0 0.0
    %1471 = vmatprep.subr.mxu0 0.0
    %1472 = vmatpush2.msra.mxu0 0.0
    %1473 = vmatprep.subr.mxu0 0.0
    %1474 = vmatpush2.msra.mxu0 0.0
    %1475 = vmatprep.subr.mxu0 0.0
    %1476 = vmatpush2.msra.mxu0 0.0
    %1477 = vmatprep.subr.mxu0 0.0
    %1478 = vmatpush2.msra.mxu0 0.0
    %1479 = vmatprep.mubr.f32.mxu0 0.0
    %1480 = vmatmul.mubr.f32.gmra.mxu0 %v1405
    %v1481 = vpop.f32.mrf.mxu0
    %v1482 = vadd.f32 0.0, %v1481
    %v1483 = vpop.f32.mrf.mxu0
    %v1484 = vadd.f32 0.0, %v1483
    %1485 = vdwg.mxu0
    %1486 = vmatprep.subr.mxu0 %v511
    %1487 = vmatpush1.msra.mxu0 %v510
    %1488 = vmatprep.subr.mxu0 %v507
    %1489 = vmatpush1.msra.mxu0 %v506
    %1490 = vmatprep.subr.mxu0 %v503
    %1491 = vmatpush1.msra.mxu0 %v502
    %1492 = vmatprep.subr.mxu0 %v499
    %1493 = vmatpush1.msra.mxu0 %v498
    %1494 = vmatprep.subr.mxu0 %v495
    %1495 = vmatpush1.msra.mxu0 %v494
    %1496 = vmatprep.subr.mxu0 %v491
    %1497 = vmatpush1.msra.mxu0 %v490
    %1498 = vmatprep.subr.mxu0 %v487
    %1499 = vmatpush1.msra.mxu0 %v486
    %1500 = vmatprep.subr.mxu0 %v483
    %1501 = vmatpush1.msra.mxu0 %v482
    %1502 = vmatprep.subr.mxu0 %v479
    %1503 = vmatpush1.msra.mxu0 %v478
    %1504 = vmatprep.subr.mxu0 %v475
    %1505 = vmatpush1.msra.mxu0 %v474
    %1506 = vmatprep.subr.mxu0 %v471
    %1507 = vmatpush1.msra.mxu0 %v470
    %1508 = vmatprep.subr.mxu0 %v467
    %1509 = vmatpush1.msra.mxu0 %v466
    %1510 = vmatprep.subr.mxu0 %v463
    %1511 = vmatpush1.msra.mxu0 %v462
    %1512 = vmatprep.subr.mxu0 %v459
    %1513 = vmatpush1.msra.mxu0 %v458
    %1514 = vmatprep.subr.mxu0 %v455
    %1515 = vmatpush1.msra.mxu0 %v454
    %1516 = vmatprep.subr.mxu0 %v451
    %1517 = vmatpush1.msra.mxu0 %v450
    %1518 = vmatprep.subr.mxu0 0.0
    %1519 = vmatpush2.msra.mxu0 0.0
    %1520 = vmatprep.subr.mxu0 0.0
    %1521 = vmatpush2.msra.mxu0 0.0
    %1522 = vmatprep.subr.mxu0 0.0
    %1523 = vmatpush2.msra.mxu0 0.0
    %1524 = vmatprep.subr.mxu0 0.0
    %1525 = vmatpush2.msra.mxu0 0.0
    %1526 = vmatprep.subr.mxu0 0.0
    %1527 = vmatpush2.msra.mxu0 0.0
    %1528 = vmatprep.subr.mxu0 0.0
    %1529 = vmatpush2.msra.mxu0 0.0
    %1530 = vmatprep.subr.mxu0 0.0
    %1531 = vmatpush2.msra.mxu0 0.0
    %1532 = vmatprep.subr.mxu0 0.0
    %1533 = vmatpush2.msra.mxu0 0.0
    %1534 = vmatprep.subr.mxu0 0.0
    %1535 = vmatpush2.msra.mxu0 0.0
    %1536 = vmatprep.subr.mxu0 0.0
    %1537 = vmatpush2.msra.mxu0 0.0
    %1538 = vmatprep.subr.mxu0 0.0
    %1539 = vmatpush2.msra.mxu0 0.0
    %1540 = vmatprep.subr.mxu0 0.0
    %1541 = vmatpush2.msra.mxu0 0.0
    %1542 = vmatprep.subr.mxu0 0.0
    %1543 = vmatpush2.msra.mxu0 0.0
    %1544 = vmatprep.subr.mxu0 0.0
    %1545 = vmatpush2.msra.mxu0 0.0
    %1546 = vmatprep.subr.mxu0 0.0
    %1547 = vmatpush2.msra.mxu0 0.0
    %1548 = vmatprep.subr.mxu0 0.0
    %1549 = vmatpush2.msra.mxu0 0.0
    %1550 = vmatprep.mubr.f32.mxu0 0.0
    %1551 = vmatmul.mubr.f32.gmra.mxu0 %v1405
    %v1552 = vpop.f32.mrf.mxu0
    %v1553 = vadd.f32 0.0, %v1552
    %v1554 = vpop.f32.mrf.mxu0
    %v1555 = vadd.f32 0.0, %v1554
    %1556 = vdwg.mxu0
    %v1557 = vadd.f32 %v1411, %v1482
    %v1558 = vadd.f32 %v1412, %v1484
    %v1559 = vadd.f32 %v1413, %v1553
    %v1560 = vadd.f32 %v1414, %v1555
    %v1561 = vxor.u32 %v1557, 2147483648
    %v1562 = vmul.f32 %v1561, 1.442695
    %v1563 = vpow.pop %v1562
    %v1564 = vadd.f32 %v1563, 1.0
    %v1565 = vrcp.pop %v1564
    %v1566 = vmul.f32 1.0, %v1565
    %v1567 = vxor.u32 %v1558, 2147483648
    %v1568 = vmul.f32 %v1567, 1.442695
    %v1569 = vpow.pop %v1568
    %v1570 = vadd.f32 %v1569, 1.0
    %v1571 = vrcp.pop %v1570
    %v1572 = vmul.f32 1.0, %v1571
    %v1573 = vtanh.pop %v1559
    %v1574 = vxor.u32 %v1560, 2147483648
    %v1575 = vmul.f32 %v1574, 1.442695
    %v1576 = vpow.pop %v1575
    %v1577 = vadd.f32 %v1576, 1.0
    %v1578 = vrcp.pop %v1577
    %v1579 = vmul.f32 1.0, %v1578
    %v1580 = vmul.f32 %v1572, %v1403
    %v1581 = vmul.f32 %v1566, %v1573
    %v1582 = vadd.f32 %v1580, %v1581
    %v1583 = vtanh.pop %v1582
    %v1584 = vmul.f32 %v1579, %v1583
    %s1585 = scalar_lea.vmem [#allocation2], 40
    %1586 = vst [vmem:[%s1585] sm:$0xff] %v1584
    %s1587 = smul.u32 6, 4
    %s1588 = smul.addr %s1587, 8
    %s1589 = scalar_lea.vmem [#allocation3], %s1588
    %v1590 = vld [vmem:[%s1589] sm:$0xff]
    %v1591 = vld [vmem:[%s1589 + $0x8] sm:$0xff]
    %v1592 = vld [vmem:[%s1589 + $0x10] sm:$0xff]
    %v1593 = vld [vmem:[%s1589 + $0x18] sm:$0xff]
    %1594 = vmatprep.subr.mxu0 %v509
    %1595 = vmatpush1.msra.mxu0 %v508
    %1596 = vmatprep.subr.mxu0 %v505
    %1597 = vmatpush1.msra.mxu0 %v504
    %1598 = vmatprep.subr.mxu0 %v501
    %1599 = vmatpush1.msra.mxu0 %v500
    %1600 = vmatprep.subr.mxu0 %v497
    %1601 = vmatpush1.msra.mxu0 %v496
    %1602 = vmatprep.subr.mxu0 %v493
    %1603 = vmatpush1.msra.mxu0 %v492
    %1604 = vmatprep.subr.mxu0 %v489
    %1605 = vmatpush1.msra.mxu0 %v488
    %1606 = vmatprep.subr.mxu0 %v485
    %1607 = vmatpush1.msra.mxu0 %v484
    %1608 = vmatprep.subr.mxu0 %v481
    %1609 = vmatpush1.msra.mxu0 %v480
    %1610 = vmatprep.subr.mxu0 %v477
    %1611 = vmatpush1.msra.mxu0 %v476
    %1612 = vmatprep.subr.mxu0 %v473
    %1613 = vmatpush1.msra.mxu0 %v472
    %1614 = vmatprep.subr.mxu0 %v469
    %1615 = vmatpush1.msra.mxu0 %v468
    %1616 = vmatprep.subr.mxu0 %v465
    %1617 = vmatpush1.msra.mxu0 %v464
    %1618 = vmatprep.subr.mxu0 %v461
    %1619 = vmatpush1.msra.mxu0 %v460
    %1620 = vmatprep.subr.mxu0 %v457
    %1621 = vmatpush1.msra.mxu0 %v456
    %1622 = vmatprep.subr.mxu0 %v453
    %1623 = vmatpush1.msra.mxu0 %v452
    %1624 = vmatprep.subr.mxu0 %v449
    %1625 = vmatpush1.msra.mxu0 %v448
    %1626 = vmatprep.subr.mxu0 0.0
    %1627 = vmatpush2.msra.mxu0 0.0
    %1628 = vmatprep.subr.mxu0 0.0
    %1629 = vmatpush2.msra.mxu0 0.0
    %1630 = vmatprep.subr.mxu0 0.0
    %1631 = vmatpush2.msra.mxu0 0.0
    %1632 = vmatprep.subr.mxu0 0.0
    %1633 = vmatpush2.msra.mxu0 0.0
    %1634 = vmatprep.subr.mxu0 0.0
    %1635 = vmatpush2.msra.mxu0 0.0
    %1636 = vmatprep.subr.mxu0 0.0
    %1637 = vmatpush2.msra.mxu0 0.0
    %1638 = vmatprep.subr.mxu0 0.0
    %1639 = vmatpush2.msra.mxu0 0.0
    %1640 = vmatprep.subr.mxu0 0.0
    %1641 = vmatpush2.msra.mxu0 0.0
    %1642 = vmatprep.subr.mxu0 0.0
    %1643 = vmatpush2.msra.mxu0 0.0
    %1644 = vmatprep.subr.mxu0 0.0
    %1645 = vmatpush2.msra.mxu0 0.0
    %1646 = vmatprep.subr.mxu0 0.0
    %1647 = vmatpush2.msra.mxu0 0.0
    %1648 = vmatprep.subr.mxu0 0.0
    %1649 = vmatpush2.msra.mxu0 0.0
    %1650 = vmatprep.subr.mxu0 0.0
    %1651 = vmatpush2.msra.mxu0 0.0
    %1652 = vmatprep.subr.mxu0 0.0
    %1653 = vmatpush2.msra.mxu0 0.0
    %1654 = vmatprep.subr.mxu0 0.0
    %1655 = vmatpush2.msra.mxu0 0.0
    %1656 = vmatprep.subr.mxu0 0.0
    %1657 = vmatpush2.msra.mxu0 0.0
    %1658 = vmatprep.mubr.f32.mxu0 0.0
    %1659 = vmatmul.mubr.f32.gmra.mxu0 %v1584
    %v1660 = vpop.f32.mrf.mxu0
    %v1661 = vadd.f32 0.0, %v1660
    %v1662 = vpop.f32.mrf.mxu0
    %v1663 = vadd.f32 0.0, %v1662
    %1664 = vdwg.mxu0
    %1665 = vmatprep.subr.mxu0 %v511
    %1666 = vmatpush1.msra.mxu0 %v510
    %1667 = vmatprep.subr.mxu0 %v507
    %1668 = vmatpush1.msra.mxu0 %v506
    %1669 = vmatprep.subr.mxu0 %v503
    %1670 = vmatpush1.msra.mxu0 %v502
    %1671 = vmatprep.subr.mxu0 %v499
    %1672 = vmatpush1.msra.mxu0 %v498
    %1673 = vmatprep.subr.mxu0 %v495
    %1674 = vmatpush1.msra.mxu0 %v494
    %1675 = vmatprep.subr.mxu0 %v491
    %1676 = vmatpush1.msra.mxu0 %v490
    %1677 = vmatprep.subr.mxu0 %v487
    %1678 = vmatpush1.msra.mxu0 %v486
    %1679 = vmatprep.subr.mxu0 %v483
    %1680 = vmatpush1.msra.mxu0 %v482
    %1681 = vmatprep.subr.mxu0 %v479
    %1682 = vmatpush1.msra.mxu0 %v478
    %1683 = vmatprep.subr.mxu0 %v475
    %1684 = vmatpush1.msra.mxu0 %v474
    %1685 = vmatprep.subr.mxu0 %v471
    %1686 = vmatpush1.msra.mxu0 %v470
    %1687 = vmatprep.subr.mxu0 %v467
    %1688 = vmatpush1.msra.mxu0 %v466
    %1689 = vmatprep.subr.mxu0 %v463
    %1690 = vmatpush1.msra.mxu0 %v462
    %1691 = vmatprep.subr.mxu0 %v459
    %1692 = vmatpush1.msra.mxu0 %v458
    %1693 = vmatprep.subr.mxu0 %v455
    %1694 = vmatpush1.msra.mxu0 %v454
    %1695 = vmatprep.subr.mxu0 %v451
    %1696 = vmatpush1.msra.mxu0 %v450
    %1697 = vmatprep.subr.mxu0 0.0
    %1698 = vmatpush2.msra.mxu0 0.0
    %1699 = vmatprep.subr.mxu0 0.0
    %1700 = vmatpush2.msra.mxu0 0.0
    %1701 = vmatprep.subr.mxu0 0.0
    %1702 = vmatpush2.msra.mxu0 0.0
    %1703 = vmatprep.subr.mxu0 0.0
    %1704 = vmatpush2.msra.mxu0 0.0
    %1705 = vmatprep.subr.mxu0 0.0
    %1706 = vmatpush2.msra.mxu0 0.0
    %1707 = vmatprep.subr.mxu0 0.0
    %1708 = vmatpush2.msra.mxu0 0.0
    %1709 = vmatprep.subr.mxu0 0.0
    %1710 = vmatpush2.msra.mxu0 0.0
    %1711 = vmatprep.subr.mxu0 0.0
    %1712 = vmatpush2.msra.mxu0 0.0
    %1713 = vmatprep.subr.mxu0 0.0
    %1714 = vmatpush2.msra.mxu0 0.0
    %1715 = vmatprep.subr.mxu0 0.0
    %1716 = vmatpush2.msra.mxu0 0.0
    %1717 = vmatprep.subr.mxu0 0.0
    %1718 = vmatpush2.msra.mxu0 0.0
    %1719 = vmatprep.subr.mxu0 0.0
    %1720 = vmatpush2.msra.mxu0 0.0
    %1721 = vmatprep.subr.mxu0 0.0
    %1722 = vmatpush2.msra.mxu0 0.0
    %1723 = vmatprep.subr.mxu0 0.0
    %1724 = vmatpush2.msra.mxu0 0.0
    %1725 = vmatprep.subr.mxu0 0.0
    %1726 = vmatpush2.msra.mxu0 0.0
    %1727 = vmatprep.subr.mxu0 0.0
    %1728 = vmatpush2.msra.mxu0 0.0
    %1729 = vmatprep.mubr.f32.mxu0 0.0
    %1730 = vmatmul.mubr.f32.gmra.mxu0 %v1584
    %v1731 = vpop.f32.mrf.mxu0
    %v1732 = vadd.f32 0.0, %v1731
    %v1733 = vpop.f32.mrf.mxu0
    %v1734 = vadd.f32 0.0, %v1733
    %1735 = vdwg.mxu0
    %v1736 = vadd.f32 %v1590, %v1661
    %v1737 = vadd.f32 %v1591, %v1663
    %v1738 = vadd.f32 %v1592, %v1732
    %v1739 = vadd.f32 %v1593, %v1734
    %v1740 = vxor.u32 %v1736, 2147483648
    %v1741 = vmul.f32 %v1740, 1.442695
    %v1742 = vpow.pop %v1741
    %v1743 = vadd.f32 %v1742, 1.0
    %v1744 = vrcp.pop %v1743
    %v1745 = vmul.f32 1.0, %v1744
    %v1746 = vxor.u32 %v1737, 2147483648
    %v1747 = vmul.f32 %v1746, 1.442695
    %v1748 = vpow.pop %v1747
    %v1749 = vadd.f32 %v1748, 1.0
    %v1750 = vrcp.pop %v1749
    %v1751 = vmul.f32 1.0, %v1750
    %v1752 = vtanh.pop %v1738
    %v1753 = vxor.u32 %v1739, 2147483648
    %v1754 = vmul.f32 %v1753, 1.442695
    %v1755 = vpow.pop %v1754
    %v1756 = vadd.f32 %v1755, 1.0
    %v1757 = vrcp.pop %v1756
    %v1758 = vmul.f32 1.0, %v1757
    %v1759 = vmul.f32 %v1751, %v1582
    %v1760 = vmul.f32 %v1745, %v1752
    %v1761 = vadd.f32 %v1759, %v1760
    %v1762 = vtanh.pop %v1761
    %v1763 = vmul.f32 %v1758, %v1762
    %s1764 = scalar_lea.vmem [#allocation2], 48
    %1765 = vst [vmem:[%s1764] sm:$0xff] %v1763
    %s1766 = smul.u32 7, 4
    %s1767 = smul.addr %s1766, 8
    %s1768 = scalar_lea.vmem [#allocation3], %s1767
    %v1769 = vld [vmem:[%s1768] sm:$0xff]
    %v1770 = vld [vmem:[%s1768 + $0x8] sm:$0xff]
    %v1771 = vld [vmem:[%s1768 + $0x10] sm:$0xff]
    %v1772 = vld [vmem:[%s1768 + $0x18] sm:$0xff]
    %1773 = vmatprep.subr.mxu0 %v509
    %1774 = vmatpush1.msra.mxu0 %v508
    %1775 = vmatprep.subr.mxu0 %v505
    %1776 = vmatpush1.msra.mxu0 %v504
    %1777 = vmatprep.subr.mxu0 %v501
    %1778 = vmatpush1.msra.mxu0 %v500
    %1779 = vmatprep.subr.mxu0 %v497
    %1780 = vmatpush1.msra.mxu0 %v496
    %1781 = vmatprep.subr.mxu0 %v493
    %1782 = vmatpush1.msra.mxu0 %v492
    %1783 = vmatprep.subr.mxu0 %v489
    %1784 = vmatpush1.msra.mxu0 %v488
    %1785 = vmatprep.subr.mxu0 %v485
    %1786 = vmatpush1.msra.mxu0 %v484
    %1787 = vmatprep.subr.mxu0 %v481
    %1788 = vmatpush1.msra.mxu0 %v480
    %1789 = vmatprep.subr.mxu0 %v477
    %1790 = vmatpush1.msra.mxu0 %v476
    %1791 = vmatprep.subr.mxu0 %v473
    %1792 = vmatpush1.msra.mxu0 %v472
    %1793 = vmatprep.subr.mxu0 %v469
    %1794 = vmatpush1.msra.mxu0 %v468
    %1795 = vmatprep.subr.mxu0 %v465
    %1796 = vmatpush1.msra.mxu0 %v464
    %1797 = vmatprep.subr.mxu0 %v461
    %1798 = vmatpush1.msra.mxu0 %v460
    %1799 = vmatprep.subr.mxu0 %v457
    %1800 = vmatpush1.msra.mxu0 %v456
    %1801 = vmatprep.subr.mxu0 %v453
    %1802 = vmatpush1.msra.mxu0 %v452
    %1803 = vmatprep.subr.mxu0 %v449
    %1804 = vmatpush1.msra.mxu0 %v448
    %1805 = vmatprep.subr.mxu0 0.0
    %1806 = vmatpush2.msra.mxu0 0.0
    %1807 = vmatprep.subr.mxu0 0.0
    %1808 = vmatpush2.msra.mxu0 0.0
    %1809 = vmatprep.subr.mxu0 0.0
    %1810 = vmatpush2.msra.mxu0 0.0
    %1811 = vmatprep.subr.mxu0 0.0
    %1812 = vmatpush2.msra.mxu0 0.0
    %1813 = vmatprep.subr.mxu0 0.0
    %1814 = vmatpush2.msra.mxu0 0.0
    %1815 = vmatprep.subr.mxu0 0.0
    %1816 = vmatpush2.msra.mxu0 0.0
    %1817 = vmatprep.subr.mxu0 0.0
    %1818 = vmatpush2.msra.mxu0 0.0
    %1819 = vmatprep.subr.mxu0 0.0
    %1820 = vmatpush2.msra.mxu0 0.0
    %1821 = vmatprep.subr.mxu0 0.0
    %1822 = vmatpush2.msra.mxu0 0.0
    %1823 = vmatprep.subr.mxu0 0.0
    %1824 = vmatpush2.msra.mxu0 0.0
    %1825 = vmatprep.subr.mxu0 0.0
    %1826 = vmatpush2.msra.mxu0 0.0
    %1827 = vmatprep.subr.mxu0 0.0
    %1828 = vmatpush2.msra.mxu0 0.0
    %1829 = vmatprep.subr.mxu0 0.0
    %1830 = vmatpush2.msra.mxu0 0.0
    %1831 = vmatprep.subr.mxu0 0.0
    %1832 = vmatpush2.msra.mxu0 0.0
    %1833 = vmatprep.subr.mxu0 0.0
    %1834 = vmatpush2.msra.mxu0 0.0
    %1835 = vmatprep.subr.mxu0 0.0
    %1836 = vmatpush2.msra.mxu0 0.0
    %1837 = vmatprep.mubr.f32.mxu0 0.0
    %1838 = vmatmul.mubr.f32.gmra.mxu0 %v1763
    %v1839 = vpop.f32.mrf.mxu0
    %v1840 = vadd.f32 0.0, %v1839
    %v1841 = vpop.f32.mrf.mxu0
    %v1842 = vadd.f32 0.0, %v1841
    %1843 = vdwg.mxu0
    %1844 = vmatprep.subr.mxu0 %v511
    %1845 = vmatpush1.msra.mxu0 %v510
    %1846 = vmatprep.subr.mxu0 %v507
    %1847 = vmatpush1.msra.mxu0 %v506
    %1848 = vmatprep.subr.mxu0 %v503
    %1849 = vmatpush1.msra.mxu0 %v502
    %1850 = vmatprep.subr.mxu0 %v499
    %1851 = vmatpush1.msra.mxu0 %v498
    %1852 = vmatprep.subr.mxu0 %v495
    %1853 = vmatpush1.msra.mxu0 %v494
    %1854 = vmatprep.subr.mxu0 %v491
    %1855 = vmatpush1.msra.mxu0 %v490
    %1856 = vmatprep.subr.mxu0 %v487
    %1857 = vmatpush1.msra.mxu0 %v486
    %1858 = vmatprep.subr.mxu0 %v483
    %1859 = vmatpush1.msra.mxu0 %v482
    %1860 = vmatprep.subr.mxu0 %v479
    %1861 = vmatpush1.msra.mxu0 %v478
    %1862 = vmatprep.subr.mxu0 %v475
    %1863 = vmatpush1.msra.mxu0 %v474
    %1864 = vmatprep.subr.mxu0 %v471
    %1865 = vmatpush1.msra.mxu0 %v470
    %1866 = vmatprep.subr.mxu0 %v467
    %1867 = vmatpush1.msra.mxu0 %v466
    %1868 = vmatprep.subr.mxu0 %v463
    %1869 = vmatpush1.msra.mxu0 %v462
    %1870 = vmatprep.subr.mxu0 %v459
    %1871 = vmatpush1.msra.mxu0 %v458
    %1872 = vmatprep.subr.mxu0 %v455
    %1873 = vmatpush1.msra.mxu0 %v454
    %1874 = vmatprep.subr.mxu0 %v451
    %1875 = vmatpush1.msra.mxu0 %v450
    %1876 = vmatprep.subr.mxu0 0.0
    %1877 = vmatpush2.msra.mxu0 0.0
    %1878 = vmatprep.subr.mxu0 0.0
    %1879 = vmatpush2.msra.mxu0 0.0
    %1880 = vmatprep.subr.mxu0 0.0
    %1881 = vmatpush2.msra.mxu0 0.0
    %1882 = vmatprep.subr.mxu0 0.0
    %1883 = vmatpush2.msra.mxu0 0.0
    %1884 = vmatprep.subr.mxu0 0.0
    %1885 = vmatpush2.msra.mxu0 0.0
    %1886 = vmatprep.subr.mxu0 0.0
    %1887 = vmatpush2.msra.mxu0 0.0
    %1888 = vmatprep.subr.mxu0 0.0
    %1889 = vmatpush2.msra.mxu0 0.0
    %1890 = vmatprep.subr.mxu0 0.0
    %1891 = vmatpush2.msra.mxu0 0.0
    %1892 = vmatprep.subr.mxu0 0.0
    %1893 = vmatpush2.msra.mxu0 0.0
    %1894 = vmatprep.subr.mxu0 0.0
    %1895 = vmatpush2.msra.mxu0 0.0
    %1896 = vmatprep.subr.mxu0 0.0
    %1897 = vmatpush2.msra.mxu0 0.0
    %1898 = vmatprep.subr.mxu0 0.0
    %1899 = vmatpush2.msra.mxu0 0.0
    %1900 = vmatprep.subr.mxu0 0.0
    %1901 = vmatpush2.msra.mxu0 0.0
    %1902 = vmatprep.subr.mxu0 0.0
    %1903 = vmatpush2.msra.mxu0 0.0
    %1904 = vmatprep.subr.mxu0 0.0
    %1905 = vmatpush2.msra.mxu0 0.0
    %1906 = vmatprep.subr.mxu0 0.0
    %1907 = vmatpush2.msra.mxu0 0.0
    %1908 = vmatprep.mubr.f32.mxu0 0.0
    %1909 = vmatmul.mubr.f32.gmra.mxu0 %v1763
    %v1910 = vpop.f32.mrf.mxu0
    %v1911 = vadd.f32 0.0, %v1910
    %v1912 = vpop.f32.mrf.mxu0
    %v1913 = vadd.f32 0.0, %v1912
    %1914 = vdwg.mxu0
    %v1915 = vadd.f32 %v1769, %v1840
    %v1916 = vadd.f32 %v1770, %v1842
    %v1917 = vadd.f32 %v1771, %v1911
    %v1918 = vadd.f32 %v1772, %v1913
    %v1919 = vxor.u32 %v1915, 2147483648
    %v1920 = vmul.f32 %v1919, 1.442695
    %v1921 = vpow.pop %v1920
    %v1922 = vadd.f32 %v1921, 1.0
    %v1923 = vrcp.pop %v1922
    %v1924 = vmul.f32 1.0, %v1923
    %v1925 = vxor.u32 %v1916, 2147483648
    %v1926 = vmul.f32 %v1925, 1.442695
    %v1927 = vpow.pop %v1926
    %v1928 = vadd.f32 %v1927, 1.0
    %v1929 = vrcp.pop %v1928
    %v1930 = vmul.f32 1.0, %v1929
    %v1931 = vtanh.pop %v1917
    %v1932 = vxor.u32 %v1918, 2147483648
    %v1933 = vmul.f32 %v1932, 1.442695
    %v1934 = vpow.pop %v1933
    %v1935 = vadd.f32 %v1934, 1.0
    %v1936 = vrcp.pop %v1935
    %v1937 = vmul.f32 1.0, %v1936
    %v1938 = vmul.f32 %v1930, %v1761
    %v1939 = vmul.f32 %v1924, %v1931
    %v1940 = vadd.f32 %v1938, %v1939
    %v1941 = vtanh.pop %v1940
    %v1942 = vmul.f32 %v1937, %v1941
    %s1943 = scalar_lea.vmem [#allocation2], 56
    %1944 = vst [vmem:[%s1943] sm:$0xff] %v1942
    %1945 = vst [vmem:[%s12] sm:$0xff] %v1942
    %1946 = vst [vmem:[%s13] sm:$0xff] %v1940
    %v1947 = vld [vmem:[#allocation2] sm:$0xff]
    %v1948 = vld [vmem:[#allocation2 + $0x8] sm:$0xff]
    %v1949 = vld [vmem:[#allocation2 + $0x10] sm:$0xff]
    %v1950 = vld [vmem:[#allocation2 + $0x18] sm:$0xff]
    %v1951 = vld [vmem:[#allocation2 + $0x20] sm:$0xff]
    %v1952 = vld [vmem:[#allocation2 + $0x28] sm:$0xff]
    %v1953 = vld [vmem:[#allocation2 + $0x30] sm:$0xff]
    %v1954 = vld [vmem:[#allocation2 + $0x38] sm:$0xff]
    %v1955 = vld [vmem:[#allocation8] sm:$0xff]
    %v1956 = vld [vmem:[#allocation8 + $0x8] sm:$0xff]
    %v1957 = vld [vmem:[#allocation8 + $0x10] sm:$0xff]
    %v1958 = vld [vmem:[#allocation8 + $0x18] sm:$0xff]
    %v1959 = vld [vmem:[#allocation8 + $0x20] sm:$0xff]
    %v1960 = vld [vmem:[#allocation8 + $0x28] sm:$0xff]
    %v1961 = vld [vmem:[#allocation8 + $0x30] sm:$0xff]
    %v1962 = vld [vmem:[#allocation8 + $0x38] sm:$0xff]
    %v1963 = vld [vmem:[#allocation8 + $0x40] sm:$0xff]
    %v1964 = vld [vmem:[#allocation8 + $0x48] sm:$0xff]
    %v1965 = vld [vmem:[#allocation8 + $0x50] sm:$0xff]
    %v1966 = vld [vmem:[#allocation8 + $0x58] sm:$0xff]
    %v1967 = vld [vmem:[#allocation8 + $0x60] sm:$0xff]
    %v1968 = vld [vmem:[#allocation8 + $0x68] sm:$0xff]
    %v1969 = vld [vmem:[#allocation8 + $0x70] sm:$0xff]
    %v1970 = vld [vmem:[#allocation8 + $0x78] sm:$0xff]
    %v1971 = vld [vmem:[#allocation8 + $0x80] sm:$0xff]
    %v1972 = vld [vmem:[#allocation8 + $0x88] sm:$0xff]
    %v1973 = vld [vmem:[#allocation8 + $0x90] sm:$0xff]
    %v1974 = vld [vmem:[#allocation8 + $0x98] sm:$0xff]
    %v1975 = vld [vmem:[#allocation8 + $0xa0] sm:$0xff]
    %v1976 = vld [vmem:[#allocation8 + $0xa8] sm:$0xff]
    %v1977 = vld [vmem:[#allocation8 + $0xb0] sm:$0xff]
    %v1978 = vld [vmem:[#allocation8 + $0xb8] sm:$0xff]
    %v1979 = vld [vmem:[#allocation8 + $0xc0] sm:$0xff]
    %v1980 = vld [vmem:[#allocation8 + $0xc8] sm:$0xff]
    %v1981 = vld [vmem:[#allocation8 + $0xd0] sm:$0xff]
    %v1982 = vld [vmem:[#allocation8 + $0xd8] sm:$0xff]
    %v1983 = vld [vmem:[#allocation8 + $0xe0] sm:$0xff]
    %v1984 = vld [vmem:[#allocation8 + $0xe8] sm:$0xff]
    %v1985 = vld [vmem:[#allocation8 + $0xf0] sm:$0xff]
    %v1986 = vld [vmem:[#allocation8 + $0xf8] sm:$0xff]
    %v1987 = vld [vmem:[#allocation8 + $0x100] sm:$0xff]
    %v1988 = vld [vmem:[#allocation8 + $0x108] sm:$0xff]
    %v1989 = vld [vmem:[#allocation8 + $0x110] sm:$0xff]
    %v1990 = vld [vmem:[#allocation8 + $0x118] sm:$0xff]
    %v1991 = vld [vmem:[#allocation8 + $0x120] sm:$0xff]
    %v1992 = vld [vmem:[#allocation8 + $0x128] sm:$0xff]
    %v1993 = vld [vmem:[#allocation8 + $0x130] sm:$0xff]
    %v1994 = vld [vmem:[#allocation8 + $0x138] sm:$0xff]
    %v1995 = vld [vmem:[#allocation8 + $0x140] sm:$0xff]
    %v1996 = vld [vmem:[#allocation8 + $0x148] sm:$0xff]
    %v1997 = vld [vmem:[#allocation8 + $0x150] sm:$0xff]
    %v1998 = vld [vmem:[#allocation8 + $0x158] sm:$0xff]
    %v1999 = vld [vmem:[#allocation8 + $0x160] sm:$0xff]
    %v2000 = vld [vmem:[#allocation8 + $0x168] sm:$0xff]
    %v2001 = vld [vmem:[#allocation8 + $0x170] sm:$0xff]
    %v2002 = vld [vmem:[#allocation8 + $0x178] sm:$0xff]
    %v2003 = vld [vmem:[#allocation8 + $0x180] sm:$0xff]
    %v2004 = vld [vmem:[#allocation8 + $0x188] sm:$0xff]
    %v2005 = vld [vmem:[#allocation8 + $0x190] sm:$0xff]
    %v2006 = vld [vmem:[#allocation8 + $0x198] sm:$0xff]
    %v2007 = vld [vmem:[#allocation8 + $0x1a0] sm:$0xff]
    %v2008 = vld [vmem:[#allocation8 + $0x1a8] sm:$0xff]
    %v2009 = vld [vmem:[#allocation8 + $0x1b0] sm:$0xff]
    %v2010 = vld [vmem:[#allocation8 + $0x1b8] sm:$0xff]
    %v2011 = vld [vmem:[#allocation8 + $0x1c0] sm:$0xff]
    %v2012 = vld [vmem:[#allocation8 + $0x1c8] sm:$0xff]
    %v2013 = vld [vmem:[#allocation8 + $0x1d0] sm:$0xff]
    %v2014 = vld [vmem:[#allocation8 + $0x1d8] sm:$0xff]
    %v2015 = vld [vmem:[#allocation8 + $0x1e0] sm:$0xff]
    %v2016 = vld [vmem:[#allocation8 + $0x1e8] sm:$0xff]
    %v2017 = vld [vmem:[#allocation8 + $0x1f0] sm:$0xff]
    %v2018 = vld [vmem:[#allocation8 + $0x1f8] sm:$0xff]
    %v2019 = vld [vmem:[%s6] sm:$0xf]
    %v2021 = vlaneseq
    %v2022 = vshrl.u32 %v2021, 7
    %v2023 = vsub.s32 0, %v2022
    %v2024 = vrot.slane %v2019, %v2023
    %v2025 = vlaneseq
    %v2026 = vshrl.u32 %v2025, 7
    %v2027 = vsub.s32 1, %v2026
    %v2028 = vrot.slane %v2019, %v2027
    %v2029 = vlaneseq
    %v2030 = vshrl.u32 %v2029, 7
    %v2031 = vsub.s32 2, %v2030
    %v2032 = vrot.slane %v2019, %v2031
    %v2033 = vlaneseq
    %v2034 = vshrl.u32 %v2033, 7
    %v2035 = vsub.s32 3, %v2034
    %v2036 = vrot.slane %v2019, %v2035
    %2041 = vmatprep.subr.mxu0 %v2016
    %2042 = vmatpush1.msra.mxu0 %v2015
    %2043 = vmatprep.subr.mxu0 %v2012
    %2044 = vmatpush1.msra.mxu0 %v2011
    %2045 = vmatprep.subr.mxu0 %v2008
    %2046 = vmatpush1.msra.mxu0 %v2007
    %2047 = vmatprep.subr.mxu0 %v2004
    %2048 = vmatpush1.msra.mxu0 %v2003
    %2049 = vmatprep.subr.mxu0 %v2000
    %2050 = vmatpush1.msra.mxu0 %v1999
    %2051 = vmatprep.subr.mxu0 %v1996
    %2052 = vmatpush1.msra.mxu0 %v1995
    %2053 = vmatprep.subr.mxu0 %v1992
    %2054 = vmatpush1.msra.mxu0 %v1991
    %2055 = vmatprep.subr.mxu0 %v1988
    %2056 = vmatpush1.msra.mxu0 %v1987
    %2057 = vmatprep.subr.mxu0 %v1984
    %2058 = vmatpush1.msra.mxu0 %v1983
    %2059 = vmatprep.subr.mxu0 %v1980
    %2060 = vmatpush1.msra.mxu0 %v1979
    %2061 = vmatprep.subr.mxu0 %v1976
    %2062 = vmatpush1.msra.mxu0 %v1975
    %2063 = vmatprep.subr.mxu0 %v1972
    %2064 = vmatpush1.msra.mxu0 %v1971
    %2065 = vmatprep.subr.mxu0 %v1968
    %2066 = vmatpush1.msra.mxu0 %v1967
    %2067 = vmatprep.subr.mxu0 %v1964
    %2068 = vmatpush1.msra.mxu0 %v1963
    %2069 = vmatprep.subr.mxu0 %v1960
    %2070 = vmatpush1.msra.mxu0 %v1959
    %2071 = vmatprep.subr.mxu0 %v1956
    %2072 = vmatpush1.msra.mxu0 %v1955
    %2073 = vmatprep.subr.mxu0 0.0
    %2074 = vmatpush2.msra.mxu0 0.0
    %2075 = vmatprep.subr.mxu0 0.0
    %2076 = vmatpush2.msra.mxu0 0.0
    %2077 = vmatprep.subr.mxu0 0.0
    %2078 = vmatpush2.msra.mxu0 0.0
    %2079 = vmatprep.subr.mxu0 0.0
    %2080 = vmatpush2.msra.mxu0 0.0
    %2081 = vmatprep.subr.mxu0 0.0
    %2082 = vmatpush2.msra.mxu0 0.0
    %2083 = vmatprep.subr.mxu0 0.0
    %2084 = vmatpush2.msra.mxu0 0.0
    %2085 = vmatprep.subr.mxu0 0.0
    %2086 = vmatpush2.msra.mxu0 0.0
    %2087 = vmatprep.subr.mxu0 0.0
    %2088 = vmatpush2.msra.mxu0 0.0
    %2089 = vmatprep.subr.mxu0 0.0
    %2090 = vmatpush2.msra.mxu0 0.0
    %2091 = vmatprep.subr.mxu0 0.0
    %2092 = vmatpush2.msra.mxu0 0.0
    %2093 = vmatprep.subr.mxu0 0.0
    %2094 = vmatpush2.msra.mxu0 0.0
    %2095 = vmatprep.subr.mxu0 0.0
    %2096 = vmatpush2.msra.mxu0 0.0
    %2097 = vmatprep.subr.mxu0 0.0
    %2098 = vmatpush2.msra.mxu0 0.0
    %2099 = vmatprep.subr.mxu0 0.0
    %2100 = vmatpush2.msra.mxu0 0.0
    %2101 = vmatprep.subr.mxu0 0.0
    %2102 = vmatpush2.msra.mxu0 0.0
    %2103 = vmatprep.subr.mxu0 0.0
    %2104 = vmatpush2.msra.mxu0 0.0
    %2105 = vmatprep.mubr.f32.mxu0 0.0
    %2106 = vmatmul.mubr.f32.gmra.mxu0 %v1947
    %v2107 = vpop.f32.mrf.mxu0
    %v2108 = vadd.f32 %v2024, %v2107
    %v2109 = vpop.f32.mrf.mxu0
    %v2110 = vadd.f32 %v2028, %v2109
    %2111 = vmatprep.mubr.f32.mxu0 0.0
    %2112 = vmatmul.mubr.f32.gmra.mxu0 %v1948
    %v2113 = vpop.f32.mrf.mxu0
    %v2114 = vadd.f32 %v2024, %v2113
    %v2115 = vpop.f32.mrf.mxu0
    %v2116 = vadd.f32 %v2028, %v2115
    %2117 = vmatprep.mubr.f32.mxu0 0.0
    %2118 = vmatmul.mubr.f32.gmra.mxu0 %v1949
    %v2119 = vpop.f32.mrf.mxu0
    %v2120 = vadd.f32 %v2024, %v2119
    %v2121 = vpop.f32.mrf.mxu0
    %v2122 = vadd.f32 %v2028, %v2121
    %2123 = vmatprep.mubr.f32.mxu0 0.0
    %2124 = vmatmul.mubr.f32.gmra.mxu0 %v1950
    %v2125 = vpop.f32.mrf.mxu0
    %v2126 = vadd.f32 %v2024, %v2125
    %v2127 = vpop.f32.mrf.mxu0
    %v2128 = vadd.f32 %v2028, %v2127
    %2129 = vmatprep.mubr.f32.mxu0 0.0
    %2130 = vmatmul.mubr.f32.gmra.mxu0 %v1951
    %v2131 = vpop.f32.mrf.mxu0
    %v2132 = vadd.f32 %v2024, %v2131
    %v2133 = vpop.f32.mrf.mxu0
    %v2134 = vadd.f32 %v2028, %v2133
    %2135 = vmatprep.mubr.f32.mxu0 0.0
    %2136 = vmatmul.mubr.f32.gmra.mxu0 %v1952
    %v2137 = vpop.f32.mrf.mxu0
    %v2138 = vadd.f32 %v2024, %v2137
    %v2139 = vpop.f32.mrf.mxu0
    %v2140 = vadd.f32 %v2028, %v2139
    %2141 = vmatprep.mubr.f32.mxu0 0.0
    %2142 = vmatmul.mubr.f32.gmra.mxu0 %v1953
    %v2143 = vpop.f32.mrf.mxu0
    %v2144 = vadd.f32 %v2024, %v2143
    %v2145 = vpop.f32.mrf.mxu0
    %v2146 = vadd.f32 %v2028, %v2145
    %2147 = vmatprep.mubr.f32.mxu0 0.0
    %2148 = vmatmul.mubr.f32.gmra.mxu0 %v1954
    %v2149 = vpop.f32.mrf.mxu0
    %v2150 = vadd.f32 %v2024, %v2149
    %v2151 = vpop.f32.mrf.mxu0
    %v2152 = vadd.f32 %v2028, %v2151
    %2153 = vdwg.mxu0
    %2154 = vmatprep.subr.mxu0 %v2018
    %2155 = vmatpush1.msra.mxu0 %v2017
    %2156 = vmatprep.subr.mxu0 %v2014
    %2157 = vmatpush1.msra.mxu0 %v2013
    %2158 = vmatprep.subr.mxu0 %v2010
    %2159 = vmatpush1.msra.mxu0 %v2009
    %2160 = vmatprep.subr.mxu0 %v2006
    %2161 = vmatpush1.msra.mxu0 %v2005
    %2162 = vmatprep.subr.mxu0 %v2002
    %2163 = vmatpush1.msra.mxu0 %v2001
    %2164 = vmatprep.subr.mxu0 %v1998
    %2165 = vmatpush1.msra.mxu0 %v1997
    %2166 = vmatprep.subr.mxu0 %v1994
    %2167 = vmatpush1.msra.mxu0 %v1993
    %2168 = vmatprep.subr.mxu0 %v1990
    %2169 = vmatpush1.msra.mxu0 %v1989
    %2170 = vmatprep.subr.mxu0 %v1986
    %2171 = vmatpush1.msra.mxu0 %v1985
    %2172 = vmatprep.subr.mxu0 %v1982
    %2173 = vmatpush1.msra.mxu0 %v1981
    %2174 = vmatprep.subr.mxu0 %v1978
    %2175 = vmatpush1.msra.mxu0 %v1977
    %2176 = vmatprep.subr.mxu0 %v1974
    %2177 = vmatpush1.msra.mxu0 %v1973
    %2178 = vmatprep.subr.mxu0 %v1970
    %2179 = vmatpush1.msra.mxu0 %v1969
    %2180 = vmatprep.subr.mxu0 %v1966
    %2181 = vmatpush1.msra.mxu0 %v1965
    %2182 = vmatprep.subr.mxu0 %v1962
    %2183 = vmatpush1.msra.mxu0 %v1961
    %2184 = vmatprep.subr.mxu0 %v1958
    %2185 = vmatpush1.msra.mxu0 %v1957
    %2186 = vmatprep.subr.mxu0 0.0
    %2187 = vmatpush2.msra.mxu0 0.0
    %2188 = vmatprep.subr.mxu0 0.0
    %2189 = vmatpush2.msra.mxu0 0.0
    %2190 = vmatprep.subr.mxu0 0.0
    %2191 = vmatpush2.msra.mxu0 0.0
    %2192 = vmatprep.subr.mxu0 0.0
    %2193 = vmatpush2.msra.mxu0 0.0
    %2194 = vmatprep.subr.mxu0 0.0
    %2195 = vmatpush2.msra.mxu0 0.0
    %2196 = vmatprep.subr.mxu0 0.0
    %2197 = vmatpush2.msra.mxu0 0.0
    %2198 = vmatprep.subr.mxu0 0.0
    %2199 = vmatpush2.msra.mxu0 0.0
    %2200 = vmatprep.subr.mxu0 0.0
    %2201 = vmatpush2.msra.mxu0 0.0
    %2202 = vmatprep.subr.mxu0 0.0
    %2203 = vmatpush2.msra.mxu0 0.0
    %2204 = vmatprep.subr.mxu0 0.0
    %2205 = vmatpush2.msra.mxu0 0.0
    %2206 = vmatprep.subr.mxu0 0.0
    %2207 = vmatpush2.msra.mxu0 0.0
    %2208 = vmatprep.subr.mxu0 0.0
    %2209 = vmatpush2.msra.mxu0 0.0
    %2210 = vmatprep.subr.mxu0 0.0
    %2211 = vmatpush2.msra.mxu0 0.0
    %2212 = vmatprep.subr.mxu0 0.0
    %2213 = vmatpush2.msra.mxu0 0.0
    %2214 = vmatprep.subr.mxu0 0.0
    %2215 = vmatpush2.msra.mxu0 0.0
    %2216 = vmatprep.subr.mxu0 0.0
    %2217 = vmatpush2.msra.mxu0 0.0
    %2218 = vmatprep.mubr.f32.mxu0 0.0
    %2219 = vmatmul.mubr.f32.gmra.mxu0 %v1947
    %v2220 = vpop.f32.mrf.mxu0
    %v2221 = vadd.f32 %v2032, %v2220
    %v2222 = vpop.f32.mrf.mxu0
    %v2223 = vadd.f32 %v2036, %v2222
    %2224 = vmatprep.mubr.f32.mxu0 0.0
    %2225 = vmatmul.mubr.f32.gmra.mxu0 %v1948
    %v2226 = vpop.f32.mrf.mxu0
    %v2227 = vadd.f32 %v2032, %v2226
    %v2228 = vpop.f32.mrf.mxu0
    %v2229 = vadd.f32 %v2036, %v2228
    %2230 = vmatprep.mubr.f32.mxu0 0.0
    %2231 = vmatmul.mubr.f32.gmra.mxu0 %v1949
    %v2232 = vpop.f32.mrf.mxu0
    %v2233 = vadd.f32 %v2032, %v2232
    %v2234 = vpop.f32.mrf.mxu0
    %v2235 = vadd.f32 %v2036, %v2234
    %2236 = vmatprep.mubr.f32.mxu0 0.0
    %2237 = vmatmul.mubr.f32.gmra.mxu0 %v1950
    %v2238 = vpop.f32.mrf.mxu0
    %v2239 = vadd.f32 %v2032, %v2238
    %v2240 = vpop.f32.mrf.mxu0
    %v2241 = vadd.f32 %v2036, %v2240
    %2242 = vmatprep.mubr.f32.mxu0 0.0
    %2243 = vmatmul.mubr.f32.gmra.mxu0 %v1951
    %v2244 = vpop.f32.mrf.mxu0
    %v2245 = vadd.f32 %v2032, %v2244
    %v2246 = vpop.f32.mrf.mxu0
    %v2247 = vadd.f32 %v2036, %v2246
    %2248 = vmatprep.mubr.f32.mxu0 0.0
    %2249 = vmatmul.mubr.f32.gmra.mxu0 %v1952
    %v2250 = vpop.f32.mrf.mxu0
    %v2251 = vadd.f32 %v2032, %v2250
    %v2252 = vpop.f32.mrf.mxu0
    %v2253 = vadd.f32 %v2036, %v2252
    %2254 = vmatprep.mubr.f32.mxu0 0.0
    %2255 = vmatmul.mubr.f32.gmra.mxu0 %v1953
    %v2256 = vpop.f32.mrf.mxu0
    %v2257 = vadd.f32 %v2032, %v2256
    %v2258 = vpop.f32.mrf.mxu0
    %v2259 = vadd.f32 %v2036, %v2258
    %2260 = vmatprep.mubr.f32.mxu0 0.0
    %2261 = vmatmul.mubr.f32.gmra.mxu0 %v1954
    %v2262 = vpop.f32.mrf.mxu0
    %v2263 = vadd.f32 %v2032, %v2262
    %v2264 = vpop.f32.mrf.mxu0
    %v2265 = vadd.f32 %v2036, %v2264
    %2266 = vdwg.mxu0
    %2267 = vst [vmem:[#allocation3] sm:$0xff] %v2108
    %2268 = vst [vmem:[#allocation3 + $0x8] sm:$0xff] %v2110
    %2269 = vst [vmem:[#allocation3 + $0x10] sm:$0xff] %v2221
    %2270 = vst [vmem:[#allocation3 + $0x18] sm:$0xff] %v2223
    %2271 = vst [vmem:[#allocation3 + $0x20] sm:$0xff] %v2114
    %2272 = vst [vmem:[#allocation3 + $0x28] sm:$0xff] %v2116
    %2273 = vst [vmem:[#allocation3 + $0x30] sm:$0xff] %v2227
    %2274 = vst [vmem:[#allocation3 + $0x38] sm:$0xff] %v2229
    %2275 = vst [vmem:[#allocation3 + $0x40] sm:$0xff] %v2120
    %2276 = vst [vmem:[#allocation3 + $0x48] sm:$0xff] %v2122
    %2277 = vst [vmem:[#allocation3 + $0x50] sm:$0xff] %v2233
    %2278 = vst [vmem:[#allocation3 + $0x58] sm:$0xff] %v2235
    %2279 = vst [vmem:[#allocation3 + $0x60] sm:$0xff] %v2126
    %2280 = vst [vmem:[#allocation3 + $0x68] sm:$0xff] %v2128
    %2281 = vst [vmem:[#allocation3 + $0x70] sm:$0xff] %v2239
    %2282 = vst [vmem:[#allocation3 + $0x78] sm:$0xff] %v2241
    %2283 = vst [vmem:[#allocation3 + $0x80] sm:$0xff] %v2132
    %2284 = vst [vmem:[#allocation3 + $0x88] sm:$0xff] %v2134
    %2285 = vst [vmem:[#allocation3 + $0x90] sm:$0xff] %v2245
    %2286 = vst [vmem:[#allocation3 + $0x98] sm:$0xff] %v2247
    %2287 = vst [vmem:[#allocation3 + $0xa0] sm:$0xff] %v2138
    %2288 = vst [vmem:[#allocation3 + $0xa8] sm:$0xff] %v2140
    %2289 = vst [vmem:[#allocation3 + $0xb0] sm:$0xff] %v2251
    %2290 = vst [vmem:[#allocation3 + $0xb8] sm:$0xff] %v2253
    %2291 = vst [vmem:[#allocation3 + $0xc0] sm:$0xff] %v2144
    %2292 = vst [vmem:[#allocation3 + $0xc8] sm:$0xff] %v2146
    %2293 = vst [vmem:[#allocation3 + $0xd0] sm:$0xff] %v2257
    %2294 = vst [vmem:[#allocation3 + $0xd8] sm:$0xff] %v2259
    %2295 = vst [vmem:[#allocation3 + $0xe0] sm:$0xff] %v2150
    %2296 = vst [vmem:[#allocation3 + $0xe8] sm:$0xff] %v2152
    %2297 = vst [vmem:[#allocation3 + $0xf0] sm:$0xff] %v2263
    %2298 = vst [vmem:[#allocation3 + $0xf8] sm:$0xff] %v2265
    %v2299 = vld [vmem:[#allocation9] sm:$0xff]
    %v2300 = vld [vmem:[#allocation9 + $0x8] sm:$0xff]
    %v2301 = vld [vmem:[#allocation9 + $0x10] sm:$0xff]
    %v2302 = vld [vmem:[#allocation9 + $0x18] sm:$0xff]
    %v2303 = vld [vmem:[#allocation9 + $0x20] sm:$0xff]
    %v2304 = vld [vmem:[#allocation9 + $0x28] sm:$0xff]
    %v2305 = vld [vmem:[#allocation9 + $0x30] sm:$0xff]
    %v2306 = vld [vmem:[#allocation9 + $0x38] sm:$0xff]
    %v2307 = vld [vmem:[#allocation9 + $0x40] sm:$0xff]
    %v2308 = vld [vmem:[#allocation9 + $0x48] sm:$0xff]
    %v2309 = vld [vmem:[#allocation9 + $0x50] sm:$0xff]
    %v2310 = vld [vmem:[#allocation9 + $0x58] sm:$0xff]
    %v2311 = vld [vmem:[#allocation9 + $0x60] sm:$0xff]
    %v2312 = vld [vmem:[#allocation9 + $0x68] sm:$0xff]
    %v2313 = vld [vmem:[#allocation9 + $0x70] sm:$0xff]
    %v2314 = vld [vmem:[#allocation9 + $0x78] sm:$0xff]
    %v2315 = vld [vmem:[#allocation9 + $0x80] sm:$0xff]
    %v2316 = vld [vmem:[#allocation9 + $0x88] sm:$0xff]
    %v2317 = vld [vmem:[#allocation9 + $0x90] sm:$0xff]
    %v2318 = vld [vmem:[#allocation9 + $0x98] sm:$0xff]
    %v2319 = vld [vmem:[#allocation9 + $0xa0] sm:$0xff]
    %v2320 = vld [vmem:[#allocation9 + $0xa8] sm:$0xff]
    %v2321 = vld [vmem:[#allocation9 + $0xb0] sm:$0xff]
    %v2322 = vld [vmem:[#allocation9 + $0xb8] sm:$0xff]
    %v2323 = vld [vmem:[#allocation9 + $0xc0] sm:$0xff]
    %v2324 = vld [vmem:[#allocation9 + $0xc8] sm:$0xff]
    %v2325 = vld [vmem:[#allocation9 + $0xd0] sm:$0xff]
    %v2326 = vld [vmem:[#allocation9 + $0xd8] sm:$0xff]
    %v2327 = vld [vmem:[#allocation9 + $0xe0] sm:$0xff]
    %v2328 = vld [vmem:[#allocation9 + $0xe8] sm:$0xff]
    %v2329 = vld [vmem:[#allocation9 + $0xf0] sm:$0xff]
    %v2330 = vld [vmem:[#allocation9 + $0xf8] sm:$0xff]
    %v2331 = vld [vmem:[#allocation9 + $0x100] sm:$0xff]
    %v2332 = vld [vmem:[#allocation9 + $0x108] sm:$0xff]
    %v2333 = vld [vmem:[#allocation9 + $0x110] sm:$0xff]
    %v2334 = vld [vmem:[#allocation9 + $0x118] sm:$0xff]
    %v2335 = vld [vmem:[#allocation9 + $0x120] sm:$0xff]
    %v2336 = vld [vmem:[#allocation9 + $0x128] sm:$0xff]
    %v2337 = vld [vmem:[#allocation9 + $0x130] sm:$0xff]
    %v2338 = vld [vmem:[#allocation9 + $0x138] sm:$0xff]
    %v2339 = vld [vmem:[#allocation9 + $0x140] sm:$0xff]
    %v2340 = vld [vmem:[#allocation9 + $0x148] sm:$0xff]
    %v2341 = vld [vmem:[#allocation9 + $0x150] sm:$0xff]
    %v2342 = vld [vmem:[#allocation9 + $0x158] sm:$0xff]
    %v2343 = vld [vmem:[#allocation9 + $0x160] sm:$0xff]
    %v2344 = vld [vmem:[#allocation9 + $0x168] sm:$0xff]
    %v2345 = vld [vmem:[#allocation9 + $0x170] sm:$0xff]
    %v2346 = vld [vmem:[#allocation9 + $0x178] sm:$0xff]
    %v2347 = vld [vmem:[#allocation9 + $0x180] sm:$0xff]
    %v2348 = vld [vmem:[#allocation9 + $0x188] sm:$0xff]
    %v2349 = vld [vmem:[#allocation9 + $0x190] sm:$0xff]
    %v2350 = vld [vmem:[#allocation9 + $0x198] sm:$0xff]
    %v2351 = vld [vmem:[#allocation9 + $0x1a0] sm:$0xff]
    %v2352 = vld [vmem:[#allocation9 + $0x1a8] sm:$0xff]
    %v2353 = vld [vmem:[#allocation9 + $0x1b0] sm:$0xff]
    %v2354 = vld [vmem:[#allocation9 + $0x1b8] sm:$0xff]
    %v2355 = vld [vmem:[#allocation9 + $0x1c0] sm:$0xff]
    %v2356 = vld [vmem:[#allocation9 + $0x1c8] sm:$0xff]
    %v2357 = vld [vmem:[#allocation9 + $0x1d0] sm:$0xff]
    %v2358 = vld [vmem:[#allocation9 + $0x1d8] sm:$0xff]
    %v2359 = vld [vmem:[#allocation9 + $0x1e0] sm:$0xff]
    %v2360 = vld [vmem:[#allocation9 + $0x1e8] sm:$0xff]
    %v2361 = vld [vmem:[#allocation9 + $0x1f0] sm:$0xff]
    %v2362 = vld [vmem:[#allocation9 + $0x1f8] sm:$0xff]
    %s2363 = scalar_lea.vmem %s9, 8
    %v2364 = vld [vmem:[%s2363] sm:$0xff]
    %s2365 = scalar_lea.vmem %s10, 8
    %v2366 = vld [vmem:[%s2365] sm:$0xff]
    %v2367 = vld [vmem:[%s516] sm:$0xff]
    %v2368 = vld [vmem:[%s516 + $0x8] sm:$0xff]
    %v2369 = vld [vmem:[%s516 + $0x10] sm:$0xff]
    %v2370 = vld [vmem:[%s516 + $0x18] sm:$0xff]
    %2371 = vmatprep.subr.mxu0 %v2360
    %2372 = vmatpush1.msra.mxu0 %v2359
    %2373 = vmatprep.subr.mxu0 %v2356
    %2374 = vmatpush1.msra.mxu0 %v2355
    %2375 = vmatprep.subr.mxu0 %v2352
    %2376 = vmatpush1.msra.mxu0 %v2351
    %2377 = vmatprep.subr.mxu0 %v2348
    %2378 = vmatpush1.msra.mxu0 %v2347
    %2379 = vmatprep.subr.mxu0 %v2344
    %2380 = vmatpush1.msra.mxu0 %v2343
    %2381 = vmatprep.subr.mxu0 %v2340
    %2382 = vmatpush1.msra.mxu0 %v2339
    %2383 = vmatprep.subr.mxu0 %v2336
    %2384 = vmatpush1.msra.mxu0 %v2335
    %2385 = vmatprep.subr.mxu0 %v2332
    %2386 = vmatpush1.msra.mxu0 %v2331
    %2387 = vmatprep.subr.mxu0 %v2328
    %2388 = vmatpush1.msra.mxu0 %v2327
    %2389 = vmatprep.subr.mxu0 %v2324
    %2390 = vmatpush1.msra.mxu0 %v2323
    %2391 = vmatprep.subr.mxu0 %v2320
    %2392 = vmatpush1.msra.mxu0 %v2319
    %2393 = vmatprep.subr.mxu0 %v2316
    %2394 = vmatpush1.msra.mxu0 %v2315
    %2395 = vmatprep.subr.mxu0 %v2312
    %2396 = vmatpush1.msra.mxu0 %v2311
    %2397 = vmatprep.subr.mxu0 %v2308
    %2398 = vmatpush1.msra.mxu0 %v2307
    %2399 = vmatprep.subr.mxu0 %v2304
    %2400 = vmatpush1.msra.mxu0 %v2303
    %2401 = vmatprep.subr.mxu0 %v2300
    %2402 = vmatpush1.msra.mxu0 %v2299
    %2403 = vmatprep.subr.mxu0 0.0
    %2404 = vmatpush2.msra.mxu0 0.0
    %2405 = vmatprep.subr.mxu0 0.0
    %2406 = vmatpush2.msra.mxu0 0.0
    %2407 = vmatprep.subr.mxu0 0.0
    %2408 = vmatpush2.msra.mxu0 0.0
    %2409 = vmatprep.subr.mxu0 0.0
    %2410 = vmatpush2.msra.mxu0 0.0
    %2411 = vmatprep.subr.mxu0 0.0
    %2412 = vmatpush2.msra.mxu0 0.0
    %2413 = vmatprep.subr.mxu0 0.0
    %2414 = vmatpush2.msra.mxu0 0.0
    %2415 = vmatprep.subr.mxu0 0.0
    %2416 = vmatpush2.msra.mxu0 0.0
    %2417 = vmatprep.subr.mxu0 0.0
    %2418 = vmatpush2.msra.mxu0 0.0
    %2419 = vmatprep.subr.mxu0 0.0
    %2420 = vmatpush2.msra.mxu0 0.0
    %2421 = vmatprep.subr.mxu0 0.0
    %2422 = vmatpush2.msra.mxu0 0.0
    %2423 = vmatprep.subr.mxu0 0.0
    %2424 = vmatpush2.msra.mxu0 0.0
    %2425 = vmatprep.subr.mxu0 0.0
    %2426 = vmatpush2.msra.mxu0 0.0
    %2427 = vmatprep.subr.mxu0 0.0
    %2428 = vmatpush2.msra.mxu0 0.0
    %2429 = vmatprep.subr.mxu0 0.0
    %2430 = vmatpush2.msra.mxu0 0.0
    %2431 = vmatprep.subr.mxu0 0.0
    %2432 = vmatpush2.msra.mxu0 0.0
    %2433 = vmatprep.subr.mxu0 0.0
    %2434 = vmatpush2.msra.mxu0 0.0
    %2435 = vmatprep.mubr.f32.mxu0 0.0
    %2436 = vmatmul.mubr.f32.gmra.mxu0 %v2364
    %v2437 = vpop.f32.mrf.mxu0
    %v2438 = vadd.f32 0.0, %v2437
    %v2439 = vpop.f32.mrf.mxu0
    %v2440 = vadd.f32 0.0, %v2439
    %2441 = vdwg.mxu0
    %2442 = vmatprep.subr.mxu0 %v2362
    %2443 = vmatpush1.msra.mxu0 %v2361
    %2444 = vmatprep.subr.mxu0 %v2358
    %2445 = vmatpush1.msra.mxu0 %v2357
    %2446 = vmatprep.subr.mxu0 %v2354
    %2447 = vmatpush1.msra.mxu0 %v2353
    %2448 = vmatprep.subr.mxu0 %v2350
    %2449 = vmatpush1.msra.mxu0 %v2349
    %2450 = vmatprep.subr.mxu0 %v2346
    %2451 = vmatpush1.msra.mxu0 %v2345
    %2452 = vmatprep.subr.mxu0 %v2342
    %2453 = vmatpush1.msra.mxu0 %v2341
    %2454 = vmatprep.subr.mxu0 %v2338
    %2455 = vmatpush1.msra.mxu0 %v2337
    %2456 = vmatprep.subr.mxu0 %v2334
    %2457 = vmatpush1.msra.mxu0 %v2333
    %2458 = vmatprep.subr.mxu0 %v2330
    %2459 = vmatpush1.msra.mxu0 %v2329
    %2460 = vmatprep.subr.mxu0 %v2326
    %2461 = vmatpush1.msra.mxu0 %v2325
    %2462 = vmatprep.subr.mxu0 %v2322
    %2463 = vmatpush1.msra.mxu0 %v2321
    %2464 = vmatprep.subr.mxu0 %v2318
    %2465 = vmatpush1.msra.mxu0 %v2317
    %2466 = vmatprep.subr.mxu0 %v2314
    %2467 = vmatpush1.msra.mxu0 %v2313
    %2468 = vmatprep.subr.mxu0 %v2310
    %2469 = vmatpush1.msra.mxu0 %v2309
    %2470 = vmatprep.subr.mxu0 %v2306
    %2471 = vmatpush1.msra.mxu0 %v2305
    %2472 = vmatprep.subr.mxu0 %v2302
    %2473 = vmatpush1.msra.mxu0 %v2301
    %2474 = vmatprep.subr.mxu0 0.0
    %2475 = vmatpush2.msra.mxu0 0.0
    %2476 = vmatprep.subr.mxu0 0.0
    %2477 = vmatpush2.msra.mxu0 0.0
    %2478 = vmatprep.subr.mxu0 0.0
    %2479 = vmatpush2.msra.mxu0 0.0
    %2480 = vmatprep.subr.mxu0 0.0
    %2481 = vmatpush2.msra.mxu0 0.0
    %2482 = vmatprep.subr.mxu0 0.0
    %2483 = vmatpush2.msra.mxu0 0.0
    %2484 = vmatprep.subr.mxu0 0.0
    %2485 = vmatpush2.msra.mxu0 0.0
    %2486 = vmatprep.subr.mxu0 0.0
    %2487 = vmatpush2.msra.mxu0 0.0
    %2488 = vmatprep.subr.mxu0 0.0
    %2489 = vmatpush2.msra.mxu0 0.0
    %2490 = vmatprep.subr.mxu0 0.0
    %2491 = vmatpush2.msra.mxu0 0.0
    %2492 = vmatprep.subr.mxu0 0.0
    %2493 = vmatpush2.msra.mxu0 0.0
    %2494 = vmatprep.subr.mxu0 0.0
    %2495 = vmatpush2.msra.mxu0 0.0
    %2496 = vmatprep.subr.mxu0 0.0
    %2497 = vmatpush2.msra.mxu0 0.0
    %2498 = vmatprep.subr.mxu0 0.0
    %2499 = vmatpush2.msra.mxu0 0.0
    %2500 = vmatprep.subr.mxu0 0.0
    %2501 = vmatpush2.msra.mxu0 0.0
    %2502 = vmatprep.subr.mxu0 0.0
    %2503 = vmatpush2.msra.mxu0 0.0
    %2504 = vmatprep.subr.mxu0 0.0
    %2505 = vmatpush2.msra.mxu0 0.0
    %2506 = vmatprep.mubr.f32.mxu0 0.0
    %2507 = vmatmul.mubr.f32.gmra.mxu0 %v2364
    %v2508 = vpop.f32.mrf.mxu0
    %v2509 = vadd.f32 0.0, %v2508
    %v2510 = vpop.f32.mrf.mxu0
    %v2511 = vadd.f32 0.0, %v2510
    %2512 = vdwg.mxu0
    %v2513 = vadd.f32 %v2367, %v2438
    %v2514 = vadd.f32 %v2368, %v2440
    %v2515 = vadd.f32 %v2369, %v2509
    %v2516 = vadd.f32 %v2370, %v2511
    %v2517 = vxor.u32 %v2513, 2147483648
    %v2518 = vmul.f32 %v2517, 1.442695
    %v2519 = vpow.pop %v2518
    %v2520 = vadd.f32 %v2519, 1.0
    %v2521 = vrcp.pop %v2520
    %v2522 = vmul.f32 1.0, %v2521
    %v2523 = vxor.u32 %v2514, 2147483648
    %v2524 = vmul.f32 %v2523, 1.442695
    %v2525 = vpow.pop %v2524
    %v2526 = vadd.f32 %v2525, 1.0
    %v2527 = vrcp.pop %v2526
    %v2528 = vmul.f32 1.0, %v2527
    %v2529 = vtanh.pop %v2515
    %v2530 = vxor.u32 %v2516, 2147483648
    %v2531 = vmul.f32 %v2530, 1.442695
    %v2532 = vpow.pop %v2531
    %v2533 = vadd.f32 %v2532, 1.0
    %v2534 = vrcp.pop %v2533
    %v2535 = vmul.f32 1.0, %v2534
    %v2536 = vmul.f32 %v2528, %v2366
    %v2537 = vmul.f32 %v2522, %v2529
    %v2538 = vadd.f32 %v2536, %v2537
    %v2539 = vtanh.pop %v2538
    %v2540 = vmul.f32 %v2535, %v2539
    %v2541 = vld [vmem:[%s694] sm:$0xff]
    %v2542 = vld [vmem:[%s694 + $0x8] sm:$0xff]
    %v2543 = vld [vmem:[%s694 + $0x10] sm:$0xff]
    %v2544 = vld [vmem:[%s694 + $0x18] sm:$0xff]
    %2545 = vmatprep.subr.mxu0 %v2360
    %2546 = vmatpush1.msra.mxu0 %v2359
    %2547 = vmatprep.subr.mxu0 %v2356
    %2548 = vmatpush1.msra.mxu0 %v2355
    %2549 = vmatprep.subr.mxu0 %v2352
    %2550 = vmatpush1.msra.mxu0 %v2351
    %2551 = vmatprep.subr.mxu0 %v2348
    %2552 = vmatpush1.msra.mxu0 %v2347
    %2553 = vmatprep.subr.mxu0 %v2344
    %2554 = vmatpush1.msra.mxu0 %v2343
    %2555 = vmatprep.subr.mxu0 %v2340
    %2556 = vmatpush1.msra.mxu0 %v2339
    %2557 = vmatprep.subr.mxu0 %v2336
    %2558 = vmatpush1.msra.mxu0 %v2335
    %2559 = vmatprep.subr.mxu0 %v2332
    %2560 = vmatpush1.msra.mxu0 %v2331
    %2561 = vmatprep.subr.mxu0 %v2328
    %2562 = vmatpush1.msra.mxu0 %v2327
    %2563 = vmatprep.subr.mxu0 %v2324
    %2564 = vmatpush1.msra.mxu0 %v2323
    %2565 = vmatprep.subr.mxu0 %v2320
    %2566 = vmatpush1.msra.mxu0 %v2319
    %2567 = vmatprep.subr.mxu0 %v2316
    %2568 = vmatpush1.msra.mxu0 %v2315
    %2569 = vmatprep.subr.mxu0 %v2312
    %2570 = vmatpush1.msra.mxu0 %v2311
    %2571 = vmatprep.subr.mxu0 %v2308
    %2572 = vmatpush1.msra.mxu0 %v2307
    %2573 = vmatprep.subr.mxu0 %v2304
    %2574 = vmatpush1.msra.mxu0 %v2303
    %2575 = vmatprep.subr.mxu0 %v2300
    %2576 = vmatpush1.msra.mxu0 %v2299
    %2577 = vmatprep.subr.mxu0 0.0
    %2578 = vmatpush2.msra.mxu0 0.0
    %2579 = vmatprep.subr.mxu0 0.0
    %2580 = vmatpush2.msra.mxu0 0.0
    %2581 = vmatprep.subr.mxu0 0.0
    %2582 = vmatpush2.msra.mxu0 0.0
    %2583 = vmatprep.subr.mxu0 0.0
    %2584 = vmatpush2.msra.mxu0 0.0
    %2585 = vmatprep.subr.mxu0 0.0
    %2586 = vmatpush2.msra.mxu0 0.0
    %2587 = vmatprep.subr.mxu0 0.0
    %2588 = vmatpush2.msra.mxu0 0.0
    %2589 = vmatprep.subr.mxu0 0.0
    %2590 = vmatpush2.msra.mxu0 0.0
    %2591 = vmatprep.subr.mxu0 0.0
    %2592 = vmatpush2.msra.mxu0 0.0
    %2593 = vmatprep.subr.mxu0 0.0
    %2594 = vmatpush2.msra.mxu0 0.0
    %2595 = vmatprep.subr.mxu0 0.0
    %2596 = vmatpush2.msra.mxu0 0.0
    %2597 = vmatprep.subr.mxu0 0.0
    %2598 = vmatpush2.msra.mxu0 0.0
    %2599 = vmatprep.subr.mxu0 0.0
    %2600 = vmatpush2.msra.mxu0 0.0
    %2601 = vmatprep.subr.mxu0 0.0
    %2602 = vmatpush2.msra.mxu0 0.0
    %2603 = vmatprep.subr.mxu0 0.0
    %2604 = vmatpush2.msra.mxu0 0.0
    %2605 = vmatprep.subr.mxu0 0.0
    %2606 = vmatpush2.msra.mxu0 0.0
    %2607 = vmatprep.subr.mxu0 0.0
    %2608 = vmatpush2.msra.mxu0 0.0
    %2609 = vmatprep.mubr.f32.mxu0 0.0
    %2610 = vmatmul.mubr.f32.gmra.mxu0 %v2540
    %v2611 = vpop.f32.mrf.mxu0
    %v2612 = vadd.f32 0.0, %v2611
    %v2613 = vpop.f32.mrf.mxu0
    %v2614 = vadd.f32 0.0, %v2613
    %2615 = vdwg.mxu0
    %2616 = vmatprep.subr.mxu0 %v2362
    %2617 = vmatpush1.msra.mxu0 %v2361
    %2618 = vmatprep.subr.mxu0 %v2358
    %2619 = vmatpush1.msra.mxu0 %v2357
    %2620 = vmatprep.subr.mxu0 %v2354
    %2621 = vmatpush1.msra.mxu0 %v2353
    %2622 = vmatprep.subr.mxu0 %v2350
    %2623 = vmatpush1.msra.mxu0 %v2349
    %2624 = vmatprep.subr.mxu0 %v2346
    %2625 = vmatpush1.msra.mxu0 %v2345
    %2626 = vmatprep.subr.mxu0 %v2342
    %2627 = vmatpush1.msra.mxu0 %v2341
    %2628 = vmatprep.subr.mxu0 %v2338
    %2629 = vmatpush1.msra.mxu0 %v2337
    %2630 = vmatprep.subr.mxu0 %v2334
    %2631 = vmatpush1.msra.mxu0 %v2333
    %2632 = vmatprep.subr.mxu0 %v2330
    %2633 = vmatpush1.msra.mxu0 %v2329
    %2634 = vmatprep.subr.mxu0 %v2326
    %2635 = vmatpush1.msra.mxu0 %v2325
    %2636 = vmatprep.subr.mxu0 %v2322
    %2637 = vmatpush1.msra.mxu0 %v2321
    %2638 = vmatprep.subr.mxu0 %v2318
    %2639 = vmatpush1.msra.mxu0 %v2317
    %2640 = vmatprep.subr.mxu0 %v2314
    %2641 = vmatpush1.msra.mxu0 %v2313
    %2642 = vmatprep.subr.mxu0 %v2310
    %2643 = vmatpush1.msra.mxu0 %v2309
    %2644 = vmatprep.subr.mxu0 %v2306
    %2645 = vmatpush1.msra.mxu0 %v2305
    %2646 = vmatprep.subr.mxu0 %v2302
    %2647 = vmatpush1.msra.mxu0 %v2301
    %2648 = vmatprep.subr.mxu0 0.0
    %2649 = vmatpush2.msra.mxu0 0.0
    %2650 = vmatprep.subr.mxu0 0.0
    %2651 = vmatpush2.msra.mxu0 0.0
    %2652 = vmatprep.subr.mxu0 0.0
    %2653 = vmatpush2.msra.mxu0 0.0
    %2654 = vmatprep.subr.mxu0 0.0
    %2655 = vmatpush2.msra.mxu0 0.0
    %2656 = vmatprep.subr.mxu0 0.0
    %2657 = vmatpush2.msra.mxu0 0.0
    %2658 = vmatprep.subr.mxu0 0.0
    %2659 = vmatpush2.msra.mxu0 0.0
    %2660 = vmatprep.subr.mxu0 0.0
    %2661 = vmatpush2.msra.mxu0 0.0
    %2662 = vmatprep.subr.mxu0 0.0
    %2663 = vmatpush2.msra.mxu0 0.0
    %2664 = vmatprep.subr.mxu0 0.0
    %2665 = vmatpush2.msra.mxu0 0.0
    %2666 = vmatprep.subr.mxu0 0.0
    %2667 = vmatpush2.msra.mxu0 0.0
    %2668 = vmatprep.subr.mxu0 0.0
    %2669 = vmatpush2.msra.mxu0 0.0
    %2670 = vmatprep.subr.mxu0 0.0
    %2671 = vmatpush2.msra.mxu0 0.0
    %2672 = vmatprep.subr.mxu0 0.0
    %2673 = vmatpush2.msra.mxu0 0.0
    %2674 = vmatprep.subr.mxu0 0.0
    %2675 = vmatpush2.msra.mxu0 0.0
    %2676 = vmatprep.subr.mxu0 0.0
    %2677 = vmatpush2.msra.mxu0 0.0
    %2678 = vmatprep.subr.mxu0 0.0
    %2679 = vmatpush2.msra.mxu0 0.0
    %2680 = vmatprep.mubr.f32.mxu0 0.0
    %2681 = vmatmul.mubr.f32.gmra.mxu0 %v2540
    %v2682 = vpop.f32.mrf.mxu0
    %v2683 = vadd.f32 0.0, %v2682
    %v2684 = vpop.f32.mrf.mxu0
    %v2685 = vadd.f32 0.0, %v2684
    %2686 = vdwg.mxu0
    %v2687 = vadd.f32 %v2541, %v2612
    %v2688 = vadd.f32 %v2542, %v2614
    %v2689 = vadd.f32 %v2543, %v2683
    %v2690 = vadd.f32 %v2544, %v2685
    %v2691 = vxor.u32 %v2687, 2147483648
    %v2692 = vmul.f32 %v2691, 1.442695
    %v2693 = vpow.pop %v2692
    %v2694 = vadd.f32 %v2693, 1.0
    %v2695 = vrcp.pop %v2694
    %v2696 = vmul.f32 1.0, %v2695
    %v2697 = vxor.u32 %v2688, 2147483648
    %v2698 = vmul.f32 %v2697, 1.442695
    %v2699 = vpow.pop %v2698
    %v2700 = vadd.f32 %v2699, 1.0
    %v2701 = vrcp.pop %v2700
    %v2702 = vmul.f32 1.0, %v2701
    %v2703 = vtanh.pop %v2689
    %v2704 = vxor.u32 %v2690, 2147483648
    %v2705 = vmul.f32 %v2704, 1.442695
    %v2706 = vpow.pop %v2705
    %v2707 = vadd.f32 %v2706, 1.0
    %v2708 = vrcp.pop %v2707
    %v2709 = vmul.f32 1.0, %v2708
    %v2710 = vmul.f32 %v2702, %v2538
    %v2711 = vmul.f32 %v2696, %v2703
    %v2712 = vadd.f32 %v2710, %v2711
    %v2713 = vtanh.pop %v2712
    %v2714 = vmul.f32 %v2709, %v2713
    %v2715 = vld [vmem:[%s873] sm:$0xff]
    %v2716 = vld [vmem:[%s873 + $0x8] sm:$0xff]
    %v2717 = vld [vmem:[%s873 + $0x10] sm:$0xff]
    %v2718 = vld [vmem:[%s873 + $0x18] sm:$0xff]
    %2719 = vmatprep.subr.mxu0 %v2360
    %2720 = vmatpush1.msra.mxu0 %v2359
    %2721 = vmatprep.subr.mxu0 %v2356
    %2722 = vmatpush1.msra.mxu0 %v2355
    %2723 = vmatprep.subr.mxu0 %v2352
    %2724 = vmatpush1.msra.mxu0 %v2351
    %2725 = vmatprep.subr.mxu0 %v2348
    %2726 = vmatpush1.msra.mxu0 %v2347
    %2727 = vmatprep.subr.mxu0 %v2344
    %2728 = vmatpush1.msra.mxu0 %v2343
    %2729 = vmatprep.subr.mxu0 %v2340
    %2730 = vmatpush1.msra.mxu0 %v2339
    %2731 = vmatprep.subr.mxu0 %v2336
    %2732 = vmatpush1.msra.mxu0 %v2335
    %2733 = vmatprep.subr.mxu0 %v2332
    %2734 = vmatpush1.msra.mxu0 %v2331
    %2735 = vmatprep.subr.mxu0 %v2328
    %2736 = vmatpush1.msra.mxu0 %v2327
    %2737 = vmatprep.subr.mxu0 %v2324
    %2738 = vmatpush1.msra.mxu0 %v2323
    %2739 = vmatprep.subr.mxu0 %v2320
    %2740 = vmatpush1.msra.mxu0 %v2319
    %2741 = vmatprep.subr.mxu0 %v2316
    %2742 = vmatpush1.msra.mxu0 %v2315
    %2743 = vmatprep.subr.mxu0 %v2312
    %2744 = vmatpush1.msra.mxu0 %v2311
    %2745 = vmatprep.subr.mxu0 %v2308
    %2746 = vmatpush1.msra.mxu0 %v2307
    %2747 = vmatprep.subr.mxu0 %v2304
    %2748 = vmatpush1.msra.mxu0 %v2303
    %2749 = vmatprep.subr.mxu0 %v2300
    %2750 = vmatpush1.msra.mxu0 %v2299
    %2751 = vmatprep.subr.mxu0 0.0
    %2752 = vmatpush2.msra.mxu0 0.0
    %2753 = vmatprep.subr.mxu0 0.0
    %2754 = vmatpush2.msra.mxu0 0.0
    %2755 = vmatprep.subr.mxu0 0.0
    %2756 = vmatpush2.msra.mxu0 0.0
    %2757 = vmatprep.subr.mxu0 0.0
    %2758 = vmatpush2.msra.mxu0 0.0
    %2759 = vmatprep.subr.mxu0 0.0
    %2760 = vmatpush2.msra.mxu0 0.0
    %2761 = vmatprep.subr.mxu0 0.0
    %2762 = vmatpush2.msra.mxu0 0.0
    %2763 = vmatprep.subr.mxu0 0.0
    %2764 = vmatpush2.msra.mxu0 0.0
    %2765 = vmatprep.subr.mxu0 0.0
    %2766 = vmatpush2.msra.mxu0 0.0
    %2767 = vmatprep.subr.mxu0 0.0
    %2768 = vmatpush2.msra.mxu0 0.0
    %2769 = vmatprep.subr.mxu0 0.0
    %2770 = vmatpush2.msra.mxu0 0.0
    %2771 = vmatprep.subr.mxu0 0.0
    %2772 = vmatpush2.msra.mxu0 0.0
    %2773 = vmatprep.subr.mxu0 0.0
    %2774 = vmatpush2.msra.mxu0 0.0
    %2775 = vmatprep.subr.mxu0 0.0
    %2776 = vmatpush2.msra.mxu0 0.0
    %2777 = vmatprep.subr.mxu0 0.0
    %2778 = vmatpush2.msra.mxu0 0.0
    %2779 = vmatprep.subr.mxu0 0.0
    %2780 = vmatpush2.msra.mxu0 0.0
    %2781 = vmatprep.subr.mxu0 0.0
    %2782 = vmatpush2.msra.mxu0 0.0
    %2783 = vmatprep.mubr.f32.mxu0 0.0
    %2784 = vmatmul.mubr.f32.gmra.mxu0 %v2714
    %v2785 = vpop.f32.mrf.mxu0
    %v2786 = vadd.f32 0.0, %v2785
    %v2787 = vpop.f32.mrf.mxu0
    %v2788 = vadd.f32 0.0, %v2787
    %2789 = vdwg.mxu0
    %2790 = vmatprep.subr.mxu0 %v2362
    %2791 = vmatpush1.msra.mxu0 %v2361
    %2792 = vmatprep.subr.mxu0 %v2358
    %2793 = vmatpush1.msra.mxu0 %v2357
    %2794 = vmatprep.subr.mxu0 %v2354
    %2795 = vmatpush1.msra.mxu0 %v2353
    %2796 = vmatprep.subr.mxu0 %v2350
    %2797 = vmatpush1.msra.mxu0 %v2349
    %2798 = vmatprep.subr.mxu0 %v2346
    %2799 = vmatpush1.msra.mxu0 %v2345
    %2800 = vmatprep.subr.mxu0 %v2342
    %2801 = vmatpush1.msra.mxu0 %v2341
    %2802 = vmatprep.subr.mxu0 %v2338
    %2803 = vmatpush1.msra.mxu0 %v2337
    %2804 = vmatprep.subr.mxu0 %v2334
    %2805 = vmatpush1.msra.mxu0 %v2333
    %2806 = vmatprep.subr.mxu0 %v2330
    %2807 = vmatpush1.msra.mxu0 %v2329
    %2808 = vmatprep.subr.mxu0 %v2326
    %2809 = vmatpush1.msra.mxu0 %v2325
    %2810 = vmatprep.subr.mxu0 %v2322
    %2811 = vmatpush1.msra.mxu0 %v2321
    %2812 = vmatprep.subr.mxu0 %v2318
    %2813 = vmatpush1.msra.mxu0 %v2317
    %2814 = vmatprep.subr.mxu0 %v2314
    %2815 = vmatpush1.msra.mxu0 %v2313
    %2816 = vmatprep.subr.mxu0 %v2310
    %2817 = vmatpush1.msra.mxu0 %v2309
    %2818 = vmatprep.subr.mxu0 %v2306
    %2819 = vmatpush1.msra.mxu0 %v2305
    %2820 = vmatprep.subr.mxu0 %v2302
    %2821 = vmatpush1.msra.mxu0 %v2301
    %2822 = vmatprep.subr.mxu0 0.0
    %2823 = vmatpush2.msra.mxu0 0.0
    %2824 = vmatprep.subr.mxu0 0.0
    %2825 = vmatpush2.msra.mxu0 0.0
    %2826 = vmatprep.subr.mxu0 0.0
    %2827 = vmatpush2.msra.mxu0 0.0
    %2828 = vmatprep.subr.mxu0 0.0
    %2829 = vmatpush2.msra.mxu0 0.0
    %2830 = vmatprep.subr.mxu0 0.0
    %2831 = vmatpush2.msra.mxu0 0.0
    %2832 = vmatprep.subr.mxu0 0.0
    %2833 = vmatpush2.msra.mxu0 0.0
    %2834 = vmatprep.subr.mxu0 0.0
    %2835 = vmatpush2.msra.mxu0 0.0
    %2836 = vmatprep.subr.mxu0 0.0
    %2837 = vmatpush2.msra.mxu0 0.0
    %2838 = vmatprep.subr.mxu0 0.0
    %2839 = vmatpush2.msra.mxu0 0.0
    %2840 = vmatprep.subr.mxu0 0.0
    %2841 = vmatpush2.msra.mxu0 0.0
    %2842 = vmatprep.subr.mxu0 0.0
    %2843 = vmatpush2.msra.mxu0 0.0
    %2844 = vmatprep.subr.mxu0 0.0
    %2845 = vmatpush2.msra.mxu0 0.0
    %2846 = vmatprep.subr.mxu0 0.0
    %2847 = vmatpush2.msra.mxu0 0.0
    %2848 = vmatprep.subr.mxu0 0.0
    %2849 = vmatpush2.msra.mxu0 0.0
    %2850 = vmatprep.subr.mxu0 0.0
    %2851 = vmatpush2.msra.mxu0 0.0
    %2852 = vmatprep.subr.mxu0 0.0
    %2853 = vmatpush2.msra.mxu0 0.0
    %2854 = vmatprep.mubr.f32.mxu0 0.0
    %2855 = vmatmul.mubr.f32.gmra.mxu0 %v2714
    %v2856 = vpop.f32.mrf.mxu0
    %v2857 = vadd.f32 0.0, %v2856
    %v2858 = vpop.f32.mrf.mxu0
    %v2859 = vadd.f32 0.0, %v2858
    %2860 = vdwg.mxu0
    %v2861 = vadd.f32 %v2715, %v2786
    %v2862 = vadd.f32 %v2716, %v2788
    %v2863 = vadd.f32 %v2717, %v2857
    %v2864 = vadd.f32 %v2718, %v2859
    %v2865 = vxor.u32 %v2861, 2147483648
    %v2866 = vmul.f32 %v2865, 1.442695
    %v2867 = vpow.pop %v2866
    %v2868 = vadd.f32 %v2867, 1.0
    %v2869 = vrcp.pop %v2868
    %v2870 = vmul.f32 1.0, %v2869
    %v2871 = vxor.u32 %v2862, 2147483648
    %v2872 = vmul.f32 %v2871, 1.442695
    %v2873 = vpow.pop %v2872
    %v2874 = vadd.f32 %v2873, 1.0
    %v2875 = vrcp.pop %v2874
    %v2876 = vmul.f32 1.0, %v2875
    %v2877 = vtanh.pop %v2863
    %v2878 = vxor.u32 %v2864, 2147483648
    %v2879 = vmul.f32 %v2878, 1.442695
    %v2880 = vpow.pop %v2879
    %v2881 = vadd.f32 %v2880, 1.0
    %v2882 = vrcp.pop %v2881
    %v2883 = vmul.f32 1.0, %v2882
    %v2884 = vmul.f32 %v2876, %v2712
    %v2885 = vmul.f32 %v2870, %v2877
    %v2886 = vadd.f32 %v2884, %v2885
    %v2887 = vtanh.pop %v2886
    %v2888 = vmul.f32 %v2883, %v2887
    %v2889 = vld [vmem:[%s1052] sm:$0xff]
    %v2890 = vld [vmem:[%s1052 + $0x8] sm:$0xff]
    %v2891 = vld [vmem:[%s1052 + $0x10] sm:$0xff]
    %v2892 = vld [vmem:[%s1052 + $0x18] sm:$0xff]
    %2893 = vmatprep.subr.mxu0 %v2360
    %2894 = vmatpush1.msra.mxu0 %v2359
    %2895 = vmatprep.subr.mxu0 %v2356
    %2896 = vmatpush1.msra.mxu0 %v2355
    %2897 = vmatprep.subr.mxu0 %v2352
    %2898 = vmatpush1.msra.mxu0 %v2351
    %2899 = vmatprep.subr.mxu0 %v2348
    %2900 = vmatpush1.msra.mxu0 %v2347
    %2901 = vmatprep.subr.mxu0 %v2344
    %2902 = vmatpush1.msra.mxu0 %v2343
    %2903 = vmatprep.subr.mxu0 %v2340
    %2904 = vmatpush1.msra.mxu0 %v2339
    %2905 = vmatprep.subr.mxu0 %v2336
    %2906 = vmatpush1.msra.mxu0 %v2335
    %2907 = vmatprep.subr.mxu0 %v2332
    %2908 = vmatpush1.msra.mxu0 %v2331
    %2909 = vmatprep.subr.mxu0 %v2328
    %2910 = vmatpush1.msra.mxu0 %v2327
    %2911 = vmatprep.subr.mxu0 %v2324
    %2912 = vmatpush1.msra.mxu0 %v2323
    %2913 = vmatprep.subr.mxu0 %v2320
    %2914 = vmatpush1.msra.mxu0 %v2319
    %2915 = vmatprep.subr.mxu0 %v2316
    %2916 = vmatpush1.msra.mxu0 %v2315
    %2917 = vmatprep.subr.mxu0 %v2312
    %2918 = vmatpush1.msra.mxu0 %v2311
    %2919 = vmatprep.subr.mxu0 %v2308
    %2920 = vmatpush1.msra.mxu0 %v2307
    %2921 = vmatprep.subr.mxu0 %v2304
    %2922 = vmatpush1.msra.mxu0 %v2303
    %2923 = vmatprep.subr.mxu0 %v2300
    %2924 = vmatpush1.msra.mxu0 %v2299
    %2925 = vmatprep.subr.mxu0 0.0
    %2926 = vmatpush2.msra.mxu0 0.0
    %2927 = vmatprep.subr.mxu0 0.0
    %2928 = vmatpush2.msra.mxu0 0.0
    %2929 = vmatprep.subr.mxu0 0.0
    %2930 = vmatpush2.msra.mxu0 0.0
    %2931 = vmatprep.subr.mxu0 0.0
    %2932 = vmatpush2.msra.mxu0 0.0
    %2933 = vmatprep.subr.mxu0 0.0
    %2934 = vmatpush2.msra.mxu0 0.0
    %2935 = vmatprep.subr.mxu0 0.0
    %2936 = vmatpush2.msra.mxu0 0.0
    %2937 = vmatprep.subr.mxu0 0.0
    %2938 = vmatpush2.msra.mxu0 0.0
    %2939 = vmatprep.subr.mxu0 0.0
    %2940 = vmatpush2.msra.mxu0 0.0
    %2941 = vmatprep.subr.mxu0 0.0
    %2942 = vmatpush2.msra.mxu0 0.0
    %2943 = vmatprep.subr.mxu0 0.0
    %2944 = vmatpush2.msra.mxu0 0.0
    %2945 = vmatprep.subr.mxu0 0.0
    %2946 = vmatpush2.msra.mxu0 0.0
    %2947 = vmatprep.subr.mxu0 0.0
    %2948 = vmatpush2.msra.mxu0 0.0
    %2949 = vmatprep.subr.mxu0 0.0
    %2950 = vmatpush2.msra.mxu0 0.0
    %2951 = vmatprep.subr.mxu0 0.0
    %2952 = vmatpush2.msra.mxu0 0.0
    %2953 = vmatprep.subr.mxu0 0.0
    %2954 = vmatpush2.msra.mxu0 0.0
    %2955 = vmatprep.subr.mxu0 0.0
    %2956 = vmatpush2.msra.mxu0 0.0
    %2957 = vmatprep.mubr.f32.mxu0 0.0
    %2958 = vmatmul.mubr.f32.gmra.mxu0 %v2888
    %v2959 = vpop.f32.mrf.mxu0
    %v2960 = vadd.f32 0.0, %v2959
    %v2961 = vpop.f32.mrf.mxu0
    %v2962 = vadd.f32 0.0, %v2961
    %2963 = vdwg.mxu0
    %2964 = vmatprep.subr.mxu0 %v2362
    %2965 = vmatpush1.msra.mxu0 %v2361
    %2966 = vmatprep.subr.mxu0 %v2358
    %2967 = vmatpush1.msra.mxu0 %v2357
    %2968 = vmatprep.subr.mxu0 %v2354
    %2969 = vmatpush1.msra.mxu0 %v2353
    %2970 = vmatprep.subr.mxu0 %v2350
    %2971 = vmatpush1.msra.mxu0 %v2349
    %2972 = vmatprep.subr.mxu0 %v2346
    %2973 = vmatpush1.msra.mxu0 %v2345
    %2974 = vmatprep.subr.mxu0 %v2342
    %2975 = vmatpush1.msra.mxu0 %v2341
    %2976 = vmatprep.subr.mxu0 %v2338
    %2977 = vmatpush1.msra.mxu0 %v2337
    %2978 = vmatprep.subr.mxu0 %v2334
    %2979 = vmatpush1.msra.mxu0 %v2333
    %2980 = vmatprep.subr.mxu0 %v2330
    %2981 = vmatpush1.msra.mxu0 %v2329
    %2982 = vmatprep.subr.mxu0 %v2326
    %2983 = vmatpush1.msra.mxu0 %v2325
    %2984 = vmatprep.subr.mxu0 %v2322
    %2985 = vmatpush1.msra.mxu0 %v2321
    %2986 = vmatprep.subr.mxu0 %v2318
    %2987 = vmatpush1.msra.mxu0 %v2317
    %2988 = vmatprep.subr.mxu0 %v2314
    %2989 = vmatpush1.msra.mxu0 %v2313
    %2990 = vmatprep.subr.mxu0 %v2310
    %2991 = vmatpush1.msra.mxu0 %v2309
    %2992 = vmatprep.subr.mxu0 %v2306
    %2993 = vmatpush1.msra.mxu0 %v2305
    %2994 = vmatprep.subr.mxu0 %v2302
    %2995 = vmatpush1.msra.mxu0 %v2301
    %2996 = vmatprep.subr.mxu0 0.0
    %2997 = vmatpush2.msra.mxu0 0.0
    %2998 = vmatprep.subr.mxu0 0.0
    %2999 = vmatpush2.msra.mxu0 0.0
    %3000 = vmatprep.subr.mxu0 0.0
    %3001 = vmatpush2.msra.mxu0 0.0
    %3002 = vmatprep.subr.mxu0 0.0
    %3003 = vmatpush2.msra.mxu0 0.0
    %3004 = vmatprep.subr.mxu0 0.0
    %3005 = vmatpush2.msra.mxu0 0.0
    %3006 = vmatprep.subr.mxu0 0.0
    %3007 = vmatpush2.msra.mxu0 0.0
    %3008 = vmatprep.subr.mxu0 0.0
    %3009 = vmatpush2.msra.mxu0 0.0
    %3010 = vmatprep.subr.mxu0 0.0
    %3011 = vmatpush2.msra.mxu0 0.0
    %3012 = vmatprep.subr.mxu0 0.0
    %3013 = vmatpush2.msra.mxu0 0.0
    %3014 = vmatprep.subr.mxu0 0.0
    %3015 = vmatpush2.msra.mxu0 0.0
    %3016 = vmatprep.subr.mxu0 0.0
    %3017 = vmatpush2.msra.mxu0 0.0
    %3018 = vmatprep.subr.mxu0 0.0
    %3019 = vmatpush2.msra.mxu0 0.0
    %3020 = vmatprep.subr.mxu0 0.0
    %3021 = vmatpush2.msra.mxu0 0.0
    %3022 = vmatprep.subr.mxu0 0.0
    %3023 = vmatpush2.msra.mxu0 0.0
    %3024 = vmatprep.subr.mxu0 0.0
    %3025 = vmatpush2.msra.mxu0 0.0
    %3026 = vmatprep.subr.mxu0 0.0
    %3027 = vmatpush2.msra.mxu0 0.0
    %3028 = vmatprep.mubr.f32.mxu0 0.0
    %3029 = vmatmul.mubr.f32.gmra.mxu0 %v2888
    %v3030 = vpop.f32.mrf.mxu0
    %v3031 = vadd.f32 0.0, %v3030
    %v3032 = vpop.f32.mrf.mxu0
    %v3033 = vadd.f32 0.0, %v3032
    %3034 = vdwg.mxu0
    %v3035 = vadd.f32 %v2889, %v2960
    %v3036 = vadd.f32 %v2890, %v2962
    %v3037 = vadd.f32 %v2891, %v3031
    %v3038 = vadd.f32 %v2892, %v3033
    %v3039 = vxor.u32 %v3035, 2147483648
    %v3040 = vmul.f32 %v3039, 1.442695
    %v3041 = vpow.pop %v3040
    %v3042 = vadd.f32 %v3041, 1.0
    %v3043 = vrcp.pop %v3042
    %v3044 = vmul.f32 1.0, %v3043
    %v3045 = vxor.u32 %v3036, 2147483648
    %v3046 = vmul.f32 %v3045, 1.442695
    %v3047 = vpow.pop %v3046
    %v3048 = vadd.f32 %v3047, 1.0
    %v3049 = vrcp.pop %v3048
    %v3050 = vmul.f32 1.0, %v3049
    %v3051 = vtanh.pop %v3037
    %v3052 = vxor.u32 %v3038, 2147483648
    %v3053 = vmul.f32 %v3052, 1.442695
    %v3054 = vpow.pop %v3053
    %v3055 = vadd.f32 %v3054, 1.0
    %v3056 = vrcp.pop %v3055
    %v3057 = vmul.f32 1.0, %v3056
    %v3058 = vmul.f32 %v3050, %v2886
    %v3059 = vmul.f32 %v3044, %v3051
    %v3060 = vadd.f32 %v3058, %v3059
    %v3061 = vtanh.pop %v3060
    %v3062 = vmul.f32 %v3057, %v3061
    %v3063 = vld [vmem:[%s1231] sm:$0xff]
    %v3064 = vld [vmem:[%s1231 + $0x8] sm:$0xff]
    %v3065 = vld [vmem:[%s1231 + $0x10] sm:$0xff]
    %v3066 = vld [vmem:[%s1231 + $0x18] sm:$0xff]
    %3067 = vmatprep.subr.mxu0 %v2360
    %3068 = vmatpush1.msra.mxu0 %v2359
    %3069 = vmatprep.subr.mxu0 %v2356
    %3070 = vmatpush1.msra.mxu0 %v2355
    %3071 = vmatprep.subr.mxu0 %v2352
    %3072 = vmatpush1.msra.mxu0 %v2351
    %3073 = vmatprep.subr.mxu0 %v2348
    %3074 = vmatpush1.msra.mxu0 %v2347
    %3075 = vmatprep.subr.mxu0 %v2344
    %3076 = vmatpush1.msra.mxu0 %v2343
    %3077 = vmatprep.subr.mxu0 %v2340
    %3078 = vmatpush1.msra.mxu0 %v2339
    %3079 = vmatprep.subr.mxu0 %v2336
    %3080 = vmatpush1.msra.mxu0 %v2335
    %3081 = vmatprep.subr.mxu0 %v2332
    %3082 = vmatpush1.msra.mxu0 %v2331
    %3083 = vmatprep.subr.mxu0 %v2328
    %3084 = vmatpush1.msra.mxu0 %v2327
    %3085 = vmatprep.subr.mxu0 %v2324
    %3086 = vmatpush1.msra.mxu0 %v2323
    %3087 = vmatprep.subr.mxu0 %v2320
    %3088 = vmatpush1.msra.mxu0 %v2319
    %3089 = vmatprep.subr.mxu0 %v2316
    %3090 = vmatpush1.msra.mxu0 %v2315
    %3091 = vmatprep.subr.mxu0 %v2312
    %3092 = vmatpush1.msra.mxu0 %v2311
    %3093 = vmatprep.subr.mxu0 %v2308
    %3094 = vmatpush1.msra.mxu0 %v2307
    %3095 = vmatprep.subr.mxu0 %v2304
    %3096 = vmatpush1.msra.mxu0 %v2303
    %3097 = vmatprep.subr.mxu0 %v2300
    %3098 = vmatpush1.msra.mxu0 %v2299
    %3099 = vmatprep.subr.mxu0 0.0
    %3100 = vmatpush2.msra.mxu0 0.0
    %3101 = vmatprep.subr.mxu0 0.0
    %3102 = vmatpush2.msra.mxu0 0.0
    %3103 = vmatprep.subr.mxu0 0.0
    %3104 = vmatpush2.msra.mxu0 0.0
    %3105 = vmatprep.subr.mxu0 0.0
    %3106 = vmatpush2.msra.mxu0 0.0
    %3107 = vmatprep.subr.mxu0 0.0
    %3108 = vmatpush2.msra.mxu0 0.0
    %3109 = vmatprep.subr.mxu0 0.0
    %3110 = vmatpush2.msra.mxu0 0.0
    %3111 = vmatprep.subr.mxu0 0.0
    %3112 = vmatpush2.msra.mxu0 0.0
    %3113 = vmatprep.subr.mxu0 0.0
    %3114 = vmatpush2.msra.mxu0 0.0
    %3115 = vmatprep.subr.mxu0 0.0
    %3116 = vmatpush2.msra.mxu0 0.0
    %3117 = vmatprep.subr.mxu0 0.0
    %3118 = vmatpush2.msra.mxu0 0.0
    %3119 = vmatprep.subr.mxu0 0.0
    %3120 = vmatpush2.msra.mxu0 0.0
    %3121 = vmatprep.subr.mxu0 0.0
    %3122 = vmatpush2.msra.mxu0 0.0
    %3123 = vmatprep.subr.mxu0 0.0
    %3124 = vmatpush2.msra.mxu0 0.0
    %3125 = vmatprep.subr.mxu0 0.0
    %3126 = vmatpush2.msra.mxu0 0.0
    %3127 = vmatprep.subr.mxu0 0.0
    %3128 = vmatpush2.msra.mxu0 0.0
    %3129 = vmatprep.subr.mxu0 0.0
    %3130 = vmatpush2.msra.mxu0 0.0
    %3131 = vmatprep.mubr.f32.mxu0 0.0
    %3132 = vmatmul.mubr.f32.gmra.mxu0 %v3062
    %v3133 = vpop.f32.mrf.mxu0
    %v3134 = vadd.f32 0.0, %v3133
    %v3135 = vpop.f32.mrf.mxu0
    %v3136 = vadd.f32 0.0, %v3135
    %3137 = vdwg.mxu0
    %3138 = vmatprep.subr.mxu0 %v2362
    %3139 = vmatpush1.msra.mxu0 %v2361
    %3140 = vmatprep.subr.mxu0 %v2358
    %3141 = vmatpush1.msra.mxu0 %v2357
    %3142 = vmatprep.subr.mxu0 %v2354
    %3143 = vmatpush1.msra.mxu0 %v2353
    %3144 = vmatprep.subr.mxu0 %v2350
    %3145 = vmatpush1.msra.mxu0 %v2349
    %3146 = vmatprep.subr.mxu0 %v2346
    %3147 = vmatpush1.msra.mxu0 %v2345
    %3148 = vmatprep.subr.mxu0 %v2342
    %3149 = vmatpush1.msra.mxu0 %v2341
    %3150 = vmatprep.subr.mxu0 %v2338
    %3151 = vmatpush1.msra.mxu0 %v2337
    %3152 = vmatprep.subr.mxu0 %v2334
    %3153 = vmatpush1.msra.mxu0 %v2333
    %3154 = vmatprep.subr.mxu0 %v2330
    %3155 = vmatpush1.msra.mxu0 %v2329
    %3156 = vmatprep.subr.mxu0 %v2326
    %3157 = vmatpush1.msra.mxu0 %v2325
    %3158 = vmatprep.subr.mxu0 %v2322
    %3159 = vmatpush1.msra.mxu0 %v2321
    %3160 = vmatprep.subr.mxu0 %v2318
    %3161 = vmatpush1.msra.mxu0 %v2317
    %3162 = vmatprep.subr.mxu0 %v2314
    %3163 = vmatpush1.msra.mxu0 %v2313
    %3164 = vmatprep.subr.mxu0 %v2310
    %3165 = vmatpush1.msra.mxu0 %v2309
    %3166 = vmatprep.subr.mxu0 %v2306
    %3167 = vmatpush1.msra.mxu0 %v2305
    %3168 = vmatprep.subr.mxu0 %v2302
    %3169 = vmatpush1.msra.mxu0 %v2301
    %3170 = vmatprep.subr.mxu0 0.0
    %3171 = vmatpush2.msra.mxu0 0.0
    %3172 = vmatprep.subr.mxu0 0.0
    %3173 = vmatpush2.msra.mxu0 0.0
    %3174 = vmatprep.subr.mxu0 0.0
    %3175 = vmatpush2.msra.mxu0 0.0
    %3176 = vmatprep.subr.mxu0 0.0
    %3177 = vmatpush2.msra.mxu0 0.0
    %3178 = vmatprep.subr.mxu0 0.0
    %3179 = vmatpush2.msra.mxu0 0.0
    %3180 = vmatprep.subr.mxu0 0.0
    %3181 = vmatpush2.msra.mxu0 0.0
    %3182 = vmatprep.subr.mxu0 0.0
    %3183 = vmatpush2.msra.mxu0 0.0
    %3184 = vmatprep.subr.mxu0 0.0
    %3185 = vmatpush2.msra.mxu0 0.0
    %3186 = vmatprep.subr.mxu0 0.0
    %3187 = vmatpush2.msra.mxu0 0.0
    %3188 = vmatprep.subr.mxu0 0.0
    %3189 = vmatpush2.msra.mxu0 0.0
    %3190 = vmatprep.subr.mxu0 0.0
    %3191 = vmatpush2.msra.mxu0 0.0
    %3192 = vmatprep.subr.mxu0 0.0
    %3193 = vmatpush2.msra.mxu0 0.0
    %3194 = vmatprep.subr.mxu0 0.0
    %3195 = vmatpush2.msra.mxu0 0.0
    %3196 = vmatprep.subr.mxu0 0.0
    %3197 = vmatpush2.msra.mxu0 0.0
    %3198 = vmatprep.subr.mxu0 0.0
    %3199 = vmatpush2.msra.mxu0 0.0
    %3200 = vmatprep.subr.mxu0 0.0
    %3201 = vmatpush2.msra.mxu0 0.0
    %3202 = vmatprep.mubr.f32.mxu0 0.0
    %3203 = vmatmul.mubr.f32.gmra.mxu0 %v3062
    %v3204 = vpop.f32.mrf.mxu0
    %v3205 = vadd.f32 0.0, %v3204
    %v3206 = vpop.f32.mrf.mxu0
    %v3207 = vadd.f32 0.0, %v3206
    %3208 = vdwg.mxu0
    %v3209 = vadd.f32 %v3063, %v3134
    %v3210 = vadd.f32 %v3064, %v3136
    %v3211 = vadd.f32 %v3065, %v3205
    %v3212 = vadd.f32 %v3066, %v3207
    %v3213 = vxor.u32 %v3209, 2147483648
    %v3214 = vmul.f32 %v3213, 1.442695
    %v3215 = vpow.pop %v3214
    %v3216 = vadd.f32 %v3215, 1.0
    %v3217 = vrcp.pop %v3216
    %v3218 = vmul.f32 1.0, %v3217
    %v3219 = vxor.u32 %v3210, 2147483648
    %v3220 = vmul.f32 %v3219, 1.442695
    %v3221 = vpow.pop %v3220
    %v3222 = vadd.f32 %v3221, 1.0
    %v3223 = vrcp.pop %v3222
    %v3224 = vmul.f32 1.0, %v3223
    %v3225 = vtanh.pop %v3211
    %v3226 = vxor.u32 %v3212, 2147483648
    %v3227 = vmul.f32 %v3226, 1.442695
    %v3228 = vpow.pop %v3227
    %v3229 = vadd.f32 %v3228, 1.0
    %v3230 = vrcp.pop %v3229
    %v3231 = vmul.f32 1.0, %v3230
    %v3232 = vmul.f32 %v3224, %v3060
    %v3233 = vmul.f32 %v3218, %v3225
    %v3234 = vadd.f32 %v3232, %v3233
    %v3235 = vtanh.pop %v3234
    %v3236 = vmul.f32 %v3231, %v3235
    %v3237 = vld [vmem:[%s1410] sm:$0xff]
    %v3238 = vld [vmem:[%s1410 + $0x8] sm:$0xff]
    %v3239 = vld [vmem:[%s1410 + $0x10] sm:$0xff]
    %v3240 = vld [vmem:[%s1410 + $0x18] sm:$0xff]
    %3241 = vmatprep.subr.mxu0 %v2360
    %3242 = vmatpush1.msra.mxu0 %v2359
    %3243 = vmatprep.subr.mxu0 %v2356
    %3244 = vmatpush1.msra.mxu0 %v2355
    %3245 = vmatprep.subr.mxu0 %v2352
    %3246 = vmatpush1.msra.mxu0 %v2351
    %3247 = vmatprep.subr.mxu0 %v2348
    %3248 = vmatpush1.msra.mxu0 %v2347
    %3249 = vmatprep.subr.mxu0 %v2344
    %3250 = vmatpush1.msra.mxu0 %v2343
    %3251 = vmatprep.subr.mxu0 %v2340
    %3252 = vmatpush1.msra.mxu0 %v2339
    %3253 = vmatprep.subr.mxu0 %v2336
    %3254 = vmatpush1.msra.mxu0 %v2335
    %3255 = vmatprep.subr.mxu0 %v2332
    %3256 = vmatpush1.msra.mxu0 %v2331
    %3257 = vmatprep.subr.mxu0 %v2328
    %3258 = vmatpush1.msra.mxu0 %v2327
    %3259 = vmatprep.subr.mxu0 %v2324
    %3260 = vmatpush1.msra.mxu0 %v2323
    %3261 = vmatprep.subr.mxu0 %v2320
    %3262 = vmatpush1.msra.mxu0 %v2319
    %3263 = vmatprep.subr.mxu0 %v2316
    %3264 = vmatpush1.msra.mxu0 %v2315
    %3265 = vmatprep.subr.mxu0 %v2312
    %3266 = vmatpush1.msra.mxu0 %v2311
    %3267 = vmatprep.subr.mxu0 %v2308
    %3268 = vmatpush1.msra.mxu0 %v2307
    %3269 = vmatprep.subr.mxu0 %v2304
    %3270 = vmatpush1.msra.mxu0 %v2303
    %3271 = vmatprep.subr.mxu0 %v2300
    %3272 = vmatpush1.msra.mxu0 %v2299
    %3273 = vmatprep.subr.mxu0 0.0
    %3274 = vmatpush2.msra.mxu0 0.0
    %3275 = vmatprep.subr.mxu0 0.0
    %3276 = vmatpush2.msra.mxu0 0.0
    %3277 = vmatprep.subr.mxu0 0.0
    %3278 = vmatpush2.msra.mxu0 0.0
    %3279 = vmatprep.subr.mxu0 0.0
    %3280 = vmatpush2.msra.mxu0 0.0
    %3281 = vmatprep.subr.mxu0 0.0
    %3282 = vmatpush2.msra.mxu0 0.0
    %3283 = vmatprep.subr.mxu0 0.0
    %3284 = vmatpush2.msra.mxu0 0.0
    %3285 = vmatprep.subr.mxu0 0.0
    %3286 = vmatpush2.msra.mxu0 0.0
    %3287 = vmatprep.subr.mxu0 0.0
    %3288 = vmatpush2.msra.mxu0 0.0
    %3289 = vmatprep.subr.mxu0 0.0
    %3290 = vmatpush2.msra.mxu0 0.0
    %3291 = vmatprep.subr.mxu0 0.0
    %3292 = vmatpush2.msra.mxu0 0.0
    %3293 = vmatprep.subr.mxu0 0.0
    %3294 = vmatpush2.msra.mxu0 0.0
    %3295 = vmatprep.subr.mxu0 0.0
    %3296 = vmatpush2.msra.mxu0 0.0
    %3297 = vmatprep.subr.mxu0 0.0
    %3298 = vmatpush2.msra.mxu0 0.0
    %3299 = vmatprep.subr.mxu0 0.0
    %3300 = vmatpush2.msra.mxu0 0.0
    %3301 = vmatprep.subr.mxu0 0.0
    %3302 = vmatpush2.msra.mxu0 0.0
    %3303 = vmatprep.subr.mxu0 0.0
    %3304 = vmatpush2.msra.mxu0 0.0
    %3305 = vmatprep.mubr.f32.mxu0 0.0
    %3306 = vmatmul.mubr.f32.gmra.mxu0 %v3236
    %v3307 = vpop.f32.mrf.mxu0
    %v3308 = vadd.f32 0.0, %v3307
    %v3309 = vpop.f32.mrf.mxu0
    %v3310 = vadd.f32 0.0, %v3309
    %3311 = vdwg.mxu0
    %3312 = vmatprep.subr.mxu0 %v2362
    %3313 = vmatpush1.msra.mxu0 %v2361
    %3314 = vmatprep.subr.mxu0 %v2358
    %3315 = vmatpush1.msra.mxu0 %v2357
    %3316 = vmatprep.subr.mxu0 %v2354
    %3317 = vmatpush1.msra.mxu0 %v2353
    %3318 = vmatprep.subr.mxu0 %v2350
    %3319 = vmatpush1.msra.mxu0 %v2349
    %3320 = vmatprep.subr.mxu0 %v2346
    %3321 = vmatpush1.msra.mxu0 %v2345
    %3322 = vmatprep.subr.mxu0 %v2342
    %3323 = vmatpush1.msra.mxu0 %v2341
    %3324 = vmatprep.subr.mxu0 %v2338
    %3325 = vmatpush1.msra.mxu0 %v2337
    %3326 = vmatprep.subr.mxu0 %v2334
    %3327 = vmatpush1.msra.mxu0 %v2333
    %3328 = vmatprep.subr.mxu0 %v2330
    %3329 = vmatpush1.msra.mxu0 %v2329
    %3330 = vmatprep.subr.mxu0 %v2326
    %3331 = vmatpush1.msra.mxu0 %v2325
    %3332 = vmatprep.subr.mxu0 %v2322
    %3333 = vmatpush1.msra.mxu0 %v2321
    %3334 = vmatprep.subr.mxu0 %v2318
    %3335 = vmatpush1.msra.mxu0 %v2317
    %3336 = vmatprep.subr.mxu0 %v2314
    %3337 = vmatpush1.msra.mxu0 %v2313
    %3338 = vmatprep.subr.mxu0 %v2310
    %3339 = vmatpush1.msra.mxu0 %v2309
    %3340 = vmatprep.subr.mxu0 %v2306
    %3341 = vmatpush1.msra.mxu0 %v2305
    %3342 = vmatprep.subr.mxu0 %v2302
    %3343 = vmatpush1.msra.mxu0 %v2301
    %3344 = vmatprep.subr.mxu0 0.0
    %3345 = vmatpush2.msra.mxu0 0.0
    %3346 = vmatprep.subr.mxu0 0.0
    %3347 = vmatpush2.msra.mxu0 0.0
    %3348 = vmatprep.subr.mxu0 0.0
    %3349 = vmatpush2.msra.mxu0 0.0
    %3350 = vmatprep.subr.mxu0 0.0
    %3351 = vmatpush2.msra.mxu0 0.0
    %3352 = vmatprep.subr.mxu0 0.0
    %3353 = vmatpush2.msra.mxu0 0.0
    %3354 = vmatprep.subr.mxu0 0.0
    %3355 = vmatpush2.msra.mxu0 0.0
    %3356 = vmatprep.subr.mxu0 0.0
    %3357 = vmatpush2.msra.mxu0 0.0
    %3358 = vmatprep.subr.mxu0 0.0
    %3359 = vmatpush2.msra.mxu0 0.0
    %3360 = vmatprep.subr.mxu0 0.0
    %3361 = vmatpush2.msra.mxu0 0.0
    %3362 = vmatprep.subr.mxu0 0.0
    %3363 = vmatpush2.msra.mxu0 0.0
    %3364 = vmatprep.subr.mxu0 0.0
    %3365 = vmatpush2.msra.mxu0 0.0
    %3366 = vmatprep.subr.mxu0 0.0
    %3367 = vmatpush2.msra.mxu0 0.0
    %3368 = vmatprep.subr.mxu0 0.0
    %3369 = vmatpush2.msra.mxu0 0.0
    %3370 = vmatprep.subr.mxu0 0.0
    %3371 = vmatpush2.msra.mxu0 0.0
    %3372 = vmatprep.subr.mxu0 0.0
    %3373 = vmatpush2.msra.mxu0 0.0
    %3374 = vmatprep.subr.mxu0 0.0
    %3375 = vmatpush2.msra.mxu0 0.0
    %3376 = vmatprep.mubr.f32.mxu0 0.0
    %3377 = vmatmul.mubr.f32.gmra.mxu0 %v3236
    %v3378 = vpop.f32.mrf.mxu0
    %v3379 = vadd.f32 0.0, %v3378
    %v3380 = vpop.f32.mrf.mxu0
    %v3381 = vadd.f32 0.0, %v3380
    %3382 = vdwg.mxu0
    %v3383 = vadd.f32 %v3237, %v3308
    %v3384 = vadd.f32 %v3238, %v3310
    %v3385 = vadd.f32 %v3239, %v3379
    %v3386 = vadd.f32 %v3240, %v3381
    %v3387 = vxor.u32 %v3383, 2147483648
    %v3388 = vmul.f32 %v3387, 1.442695
    %v3389 = vpow.pop %v3388
    %v3390 = vadd.f32 %v3389, 1.0
    %v3391 = vrcp.pop %v3390
    %v3392 = vmul.f32 1.0, %v3391
    %v3393 = vxor.u32 %v3384, 2147483648
    %v3394 = vmul.f32 %v3393, 1.442695
    %v3395 = vpow.pop %v3394
    %v3396 = vadd.f32 %v3395, 1.0
    %v3397 = vrcp.pop %v3396
    %v3398 = vmul.f32 1.0, %v3397
    %v3399 = vtanh.pop %v3385
    %v3400 = vxor.u32 %v3386, 2147483648
    %v3401 = vmul.f32 %v3400, 1.442695
    %v3402 = vpow.pop %v3401
    %v3403 = vadd.f32 %v3402, 1.0
    %v3404 = vrcp.pop %v3403
    %v3405 = vmul.f32 1.0, %v3404
    %v3406 = vmul.f32 %v3398, %v3234
    %v3407 = vmul.f32 %v3392, %v3399
    %v3408 = vadd.f32 %v3406, %v3407
    %v3409 = vtanh.pop %v3408
    %v3410 = vmul.f32 %v3405, %v3409
    %v3411 = vld [vmem:[%s1589] sm:$0xff]
    %v3412 = vld [vmem:[%s1589 + $0x8] sm:$0xff]
    %v3413 = vld [vmem:[%s1589 + $0x10] sm:$0xff]
    %v3414 = vld [vmem:[%s1589 + $0x18] sm:$0xff]
    %3415 = vmatprep.subr.mxu0 %v2360
    %3416 = vmatpush1.msra.mxu0 %v2359
    %3417 = vmatprep.subr.mxu0 %v2356
    %3418 = vmatpush1.msra.mxu0 %v2355
    %3419 = vmatprep.subr.mxu0 %v2352
    %3420 = vmatpush1.msra.mxu0 %v2351
    %3421 = vmatprep.subr.mxu0 %v2348
    %3422 = vmatpush1.msra.mxu0 %v2347
    %3423 = vmatprep.subr.mxu0 %v2344
    %3424 = vmatpush1.msra.mxu0 %v2343
    %3425 = vmatprep.subr.mxu0 %v2340
    %3426 = vmatpush1.msra.mxu0 %v2339
    %3427 = vmatprep.subr.mxu0 %v2336
    %3428 = vmatpush1.msra.mxu0 %v2335
    %3429 = vmatprep.subr.mxu0 %v2332
    %3430 = vmatpush1.msra.mxu0 %v2331
    %3431 = vmatprep.subr.mxu0 %v2328
    %3432 = vmatpush1.msra.mxu0 %v2327
    %3433 = vmatprep.subr.mxu0 %v2324
    %3434 = vmatpush1.msra.mxu0 %v2323
    %3435 = vmatprep.subr.mxu0 %v2320
    %3436 = vmatpush1.msra.mxu0 %v2319
    %3437 = vmatprep.subr.mxu0 %v2316
    %3438 = vmatpush1.msra.mxu0 %v2315
    %3439 = vmatprep.subr.mxu0 %v2312
    %3440 = vmatpush1.msra.mxu0 %v2311
    %3441 = vmatprep.subr.mxu0 %v2308
    %3442 = vmatpush1.msra.mxu0 %v2307
    %3443 = vmatprep.subr.mxu0 %v2304
    %3444 = vmatpush1.msra.mxu0 %v2303
    %3445 = vmatprep.subr.mxu0 %v2300
    %3446 = vmatpush1.msra.mxu0 %v2299
    %3447 = vmatprep.subr.mxu0 0.0
    %3448 = vmatpush2.msra.mxu0 0.0
    %3449 = vmatprep.subr.mxu0 0.0
    %3450 = vmatpush2.msra.mxu0 0.0
    %3451 = vmatprep.subr.mxu0 0.0
    %3452 = vmatpush2.msra.mxu0 0.0
    %3453 = vmatprep.subr.mxu0 0.0
    %3454 = vmatpush2.msra.mxu0 0.0
    %3455 = vmatprep.subr.mxu0 0.0
    %3456 = vmatpush2.msra.mxu0 0.0
    %3457 = vmatprep.subr.mxu0 0.0
    %3458 = vmatpush2.msra.mxu0 0.0
    %3459 = vmatprep.subr.mxu0 0.0
    %3460 = vmatpush2.msra.mxu0 0.0
    %3461 = vmatprep.subr.mxu0 0.0
    %3462 = vmatpush2.msra.mxu0 0.0
    %3463 = vmatprep.subr.mxu0 0.0
    %3464 = vmatpush2.msra.mxu0 0.0
    %3465 = vmatprep.subr.mxu0 0.0
    %3466 = vmatpush2.msra.mxu0 0.0
    %3467 = vmatprep.subr.mxu0 0.0
    %3468 = vmatpush2.msra.mxu0 0.0
    %3469 = vmatprep.subr.mxu0 0.0
    %3470 = vmatpush2.msra.mxu0 0.0
    %3471 = vmatprep.subr.mxu0 0.0
    %3472 = vmatpush2.msra.mxu0 0.0
    %3473 = vmatprep.subr.mxu0 0.0
    %3474 = vmatpush2.msra.mxu0 0.0
    %3475 = vmatprep.subr.mxu0 0.0
    %3476 = vmatpush2.msra.mxu0 0.0
    %3477 = vmatprep.subr.mxu0 0.0
    %3478 = vmatpush2.msra.mxu0 0.0
    %3479 = vmatprep.mubr.f32.mxu0 0.0
    %3480 = vmatmul.mubr.f32.gmra.mxu0 %v3410
    %v3481 = vpop.f32.mrf.mxu0
    %v3482 = vadd.f32 0.0, %v3481
    %v3483 = vpop.f32.mrf.mxu0
    %v3484 = vadd.f32 0.0, %v3483
    %3485 = vdwg.mxu0
    %3486 = vmatprep.subr.mxu0 %v2362
    %3487 = vmatpush1.msra.mxu0 %v2361
    %3488 = vmatprep.subr.mxu0 %v2358
    %3489 = vmatpush1.msra.mxu0 %v2357
    %3490 = vmatprep.subr.mxu0 %v2354
    %3491 = vmatpush1.msra.mxu0 %v2353
    %3492 = vmatprep.subr.mxu0 %v2350
    %3493 = vmatpush1.msra.mxu0 %v2349
    %3494 = vmatprep.subr.mxu0 %v2346
    %3495 = vmatpush1.msra.mxu0 %v2345
    %3496 = vmatprep.subr.mxu0 %v2342
    %3497 = vmatpush1.msra.mxu0 %v2341
    %3498 = vmatprep.subr.mxu0 %v2338
    %3499 = vmatpush1.msra.mxu0 %v2337
    %3500 = vmatprep.subr.mxu0 %v2334
    %3501 = vmatpush1.msra.mxu0 %v2333
    %3502 = vmatprep.subr.mxu0 %v2330
    %3503 = vmatpush1.msra.mxu0 %v2329
    %3504 = vmatprep.subr.mxu0 %v2326
    %3505 = vmatpush1.msra.mxu0 %v2325
    %3506 = vmatprep.subr.mxu0 %v2322
    %3507 = vmatpush1.msra.mxu0 %v2321
    %3508 = vmatprep.subr.mxu0 %v2318
    %3509 = vmatpush1.msra.mxu0 %v2317
    %3510 = vmatprep.subr.mxu0 %v2314
    %3511 = vmatpush1.msra.mxu0 %v2313
    %3512 = vmatprep.subr.mxu0 %v2310
    %3513 = vmatpush1.msra.mxu0 %v2309
    %3514 = vmatprep.subr.mxu0 %v2306
    %3515 = vmatpush1.msra.mxu0 %v2305
    %3516 = vmatprep.subr.mxu0 %v2302
    %3517 = vmatpush1.msra.mxu0 %v2301
    %3518 = vmatprep.subr.mxu0 0.0
    %3519 = vmatpush2.msra.mxu0 0.0
    %3520 = vmatprep.subr.mxu0 0.0
    %3521 = vmatpush2.msra.mxu0 0.0
    %3522 = vmatprep.subr.mxu0 0.0
    %3523 = vmatpush2.msra.mxu0 0.0
    %3524 = vmatprep.subr.mxu0 0.0
    %3525 = vmatpush2.msra.mxu0 0.0
    %3526 = vmatprep.subr.mxu0 0.0
    %3527 = vmatpush2.msra.mxu0 0.0
    %3528 = vmatprep.subr.mxu0 0.0
    %3529 = vmatpush2.msra.mxu0 0.0
    %3530 = vmatprep.subr.mxu0 0.0
    %3531 = vmatpush2.msra.mxu0 0.0
    %3532 = vmatprep.subr.mxu0 0.0
    %3533 = vmatpush2.msra.mxu0 0.0
    %3534 = vmatprep.subr.mxu0 0.0
    %3535 = vmatpush2.msra.mxu0 0.0
    %3536 = vmatprep.subr.mxu0 0.0
    %3537 = vmatpush2.msra.mxu0 0.0
    %3538 = vmatprep.subr.mxu0 0.0
    %3539 = vmatpush2.msra.mxu0 0.0
    %3540 = vmatprep.subr.mxu0 0.0
    %3541 = vmatpush2.msra.mxu0 0.0
    %3542 = vmatprep.subr.mxu0 0.0
    %3543 = vmatpush2.msra.mxu0 0.0
    %3544 = vmatprep.subr.mxu0 0.0
    %3545 = vmatpush2.msra.mxu0 0.0
    %3546 = vmatprep.subr.mxu0 0.0
    %3547 = vmatpush2.msra.mxu0 0.0
    %3548 = vmatprep.subr.mxu0 0.0
    %3549 = vmatpush2.msra.mxu0 0.0
    %3550 = vmatprep.mubr.f32.mxu0 0.0
    %3551 = vmatmul.mubr.f32.gmra.mxu0 %v3410
    %v3552 = vpop.f32.mrf.mxu0
    %v3553 = vadd.f32 0.0, %v3552
    %v3554 = vpop.f32.mrf.mxu0
    %v3555 = vadd.f32 0.0, %v3554
    %3556 = vdwg.mxu0
    %v3557 = vadd.f32 %v3411, %v3482
    %v3558 = vadd.f32 %v3412, %v3484
    %v3559 = vadd.f32 %v3413, %v3553
    %v3560 = vadd.f32 %v3414, %v3555
    %v3561 = vxor.u32 %v3557, 2147483648
    %v3562 = vmul.f32 %v3561, 1.442695
    %v3563 = vpow.pop %v3562
    %v3564 = vadd.f32 %v3563, 1.0
    %v3565 = vrcp.pop %v3564
    %v3566 = vmul.f32 1.0, %v3565
    %v3567 = vxor.u32 %v3558, 2147483648
    %v3568 = vmul.f32 %v3567, 1.442695
    %v3569 = vpow.pop %v3568
    %v3570 = vadd.f32 %v3569, 1.0
    %v3571 = vrcp.pop %v3570
    %v3572 = vmul.f32 1.0, %v3571
    %v3573 = vtanh.pop %v3559
    %v3574 = vxor.u32 %v3560, 2147483648
    %v3575 = vmul.f32 %v3574, 1.442695
    %v3576 = vpow.pop %v3575
    %v3577 = vadd.f32 %v3576, 1.0
    %v3578 = vrcp.pop %v3577
    %v3579 = vmul.f32 1.0, %v3578
    %v3580 = vmul.f32 %v3572, %v3408
    %v3581 = vmul.f32 %v3566, %v3573
    %v3582 = vadd.f32 %v3580, %v3581
    %v3583 = vtanh.pop %v3582
    %v3584 = vmul.f32 %v3579, %v3583
    %v3585 = vld [vmem:[%s1768] sm:$0xff]
    %v3586 = vld [vmem:[%s1768 + $0x8] sm:$0xff]
    %v3587 = vld [vmem:[%s1768 + $0x10] sm:$0xff]
    %v3588 = vld [vmem:[%s1768 + $0x18] sm:$0xff]
    %3589 = vmatprep.subr.mxu0 %v2360
    %3590 = vmatpush1.msra.mxu0 %v2359
    %3591 = vmatprep.subr.mxu0 %v2356
    %3592 = vmatpush1.msra.mxu0 %v2355
    %3593 = vmatprep.subr.mxu0 %v2352
    %3594 = vmatpush1.msra.mxu0 %v2351
    %3595 = vmatprep.subr.mxu0 %v2348
    %3596 = vmatpush1.msra.mxu0 %v2347
    %3597 = vmatprep.subr.mxu0 %v2344
    %3598 = vmatpush1.msra.mxu0 %v2343
    %3599 = vmatprep.subr.mxu0 %v2340
    %3600 = vmatpush1.msra.mxu0 %v2339
    %3601 = vmatprep.subr.mxu0 %v2336
    %3602 = vmatpush1.msra.mxu0 %v2335
    %3603 = vmatprep.subr.mxu0 %v2332
    %3604 = vmatpush1.msra.mxu0 %v2331
    %3605 = vmatprep.subr.mxu0 %v2328
    %3606 = vmatpush1.msra.mxu0 %v2327
    %3607 = vmatprep.subr.mxu0 %v2324
    %3608 = vmatpush1.msra.mxu0 %v2323
    %3609 = vmatprep.subr.mxu0 %v2320
    %3610 = vmatpush1.msra.mxu0 %v2319
    %3611 = vmatprep.subr.mxu0 %v2316
    %3612 = vmatpush1.msra.mxu0 %v2315
    %3613 = vmatprep.subr.mxu0 %v2312
    %3614 = vmatpush1.msra.mxu0 %v2311
    %3615 = vmatprep.subr.mxu0 %v2308
    %3616 = vmatpush1.msra.mxu0 %v2307
    %3617 = vmatprep.subr.mxu0 %v2304
    %3618 = vmatpush1.msra.mxu0 %v2303
    %3619 = vmatprep.subr.mxu0 %v2300
    %3620 = vmatpush1.msra.mxu0 %v2299
    %3621 = vmatprep.subr.mxu0 0.0
    %3622 = vmatpush2.msra.mxu0 0.0
    %3623 = vmatprep.subr.mxu0 0.0
    %3624 = vmatpush2.msra.mxu0 0.0
    %3625 = vmatprep.subr.mxu0 0.0
    %3626 = vmatpush2.msra.mxu0 0.0
    %3627 = vmatprep.subr.mxu0 0.0
    %3628 = vmatpush2.msra.mxu0 0.0
    %3629 = vmatprep.subr.mxu0 0.0
    %3630 = vmatpush2.msra.mxu0 0.0
    %3631 = vmatprep.subr.mxu0 0.0
    %3632 = vmatpush2.msra.mxu0 0.0
    %3633 = vmatprep.subr.mxu0 0.0
    %3634 = vmatpush2.msra.mxu0 0.0
    %3635 = vmatprep.subr.mxu0 0.0
    %3636 = vmatpush2.msra.mxu0 0.0
    %3637 = vmatprep.subr.mxu0 0.0
    %3638 = vmatpush2.msra.mxu0 0.0
    %3639 = vmatprep.subr.mxu0 0.0
    %3640 = vmatpush2.msra.mxu0 0.0
    %3641 = vmatprep.subr.mxu0 0.0
    %3642 = vmatpush2.msra.mxu0 0.0
    %3643 = vmatprep.subr.mxu0 0.0
    %3644 = vmatpush2.msra.mxu0 0.0
    %3645 = vmatprep.subr.mxu0 0.0
    %3646 = vmatpush2.msra.mxu0 0.0
    %3647 = vmatprep.subr.mxu0 0.0
    %3648 = vmatpush2.msra.mxu0 0.0
    %3649 = vmatprep.subr.mxu0 0.0
    %3650 = vmatpush2.msra.mxu0 0.0
    %3651 = vmatprep.subr.mxu0 0.0
    %3652 = vmatpush2.msra.mxu0 0.0
    %3653 = vmatprep.mubr.f32.mxu0 0.0
    %3654 = vmatmul.mubr.f32.gmra.mxu0 %v3584
    %v3655 = vpop.f32.mrf.mxu0
    %v3656 = vadd.f32 0.0, %v3655
    %v3657 = vpop.f32.mrf.mxu0
    %v3658 = vadd.f32 0.0, %v3657
    %3659 = vdwg.mxu0
    %3660 = vmatprep.subr.mxu0 %v2362
    %3661 = vmatpush1.msra.mxu0 %v2361
    %3662 = vmatprep.subr.mxu0 %v2358
    %3663 = vmatpush1.msra.mxu0 %v2357
    %3664 = vmatprep.subr.mxu0 %v2354
    %3665 = vmatpush1.msra.mxu0 %v2353
    %3666 = vmatprep.subr.mxu0 %v2350
    %3667 = vmatpush1.msra.mxu0 %v2349
    %3668 = vmatprep.subr.mxu0 %v2346
    %3669 = vmatpush1.msra.mxu0 %v2345
    %3670 = vmatprep.subr.mxu0 %v2342
    %3671 = vmatpush1.msra.mxu0 %v2341
    %3672 = vmatprep.subr.mxu0 %v2338
    %3673 = vmatpush1.msra.mxu0 %v2337
    %3674 = vmatprep.subr.mxu0 %v2334
    %3675 = vmatpush1.msra.mxu0 %v2333
    %3676 = vmatprep.subr.mxu0 %v2330
    %3677 = vmatpush1.msra.mxu0 %v2329
    %3678 = vmatprep.subr.mxu0 %v2326
    %3679 = vmatpush1.msra.mxu0 %v2325
    %3680 = vmatprep.subr.mxu0 %v2322
    %3681 = vmatpush1.msra.mxu0 %v2321
    %3682 = vmatprep.subr.mxu0 %v2318
    %3683 = vmatpush1.msra.mxu0 %v2317
    %3684 = vmatprep.subr.mxu0 %v2314
    %3685 = vmatpush1.msra.mxu0 %v2313
    %3686 = vmatprep.subr.mxu0 %v2310
    %3687 = vmatpush1.msra.mxu0 %v2309
    %3688 = vmatprep.subr.mxu0 %v2306
    %3689 = vmatpush1.msra.mxu0 %v2305
    %3690 = vmatprep.subr.mxu0 %v2302
    %3691 = vmatpush1.msra.mxu0 %v2301
    %3692 = vmatprep.subr.mxu0 0.0
    %3693 = vmatpush2.msra.mxu0 0.0
    %3694 = vmatprep.subr.mxu0 0.0
    %3695 = vmatpush2.msra.mxu0 0.0
    %3696 = vmatprep.subr.mxu0 0.0
    %3697 = vmatpush2.msra.mxu0 0.0
    %3698 = vmatprep.subr.mxu0 0.0
    %3699 = vmatpush2.msra.mxu0 0.0
    %3700 = vmatprep.subr.mxu0 0.0
    %3701 = vmatpush2.msra.mxu0 0.0
    %3702 = vmatprep.subr.mxu0 0.0
    %3703 = vmatpush2.msra.mxu0 0.0
    %3704 = vmatprep.subr.mxu0 0.0
    %3705 = vmatpush2.msra.mxu0 0.0
    %3706 = vmatprep.subr.mxu0 0.0
    %3707 = vmatpush2.msra.mxu0 0.0
    %3708 = vmatprep.subr.mxu0 0.0
    %3709 = vmatpush2.msra.mxu0 0.0
    %3710 = vmatprep.subr.mxu0 0.0
    %3711 = vmatpush2.msra.mxu0 0.0
    %3712 = vmatprep.subr.mxu0 0.0
    %3713 = vmatpush2.msra.mxu0 0.0
    %3714 = vmatprep.subr.mxu0 0.0
    %3715 = vmatpush2.msra.mxu0 0.0
    %3716 = vmatprep.subr.mxu0 0.0
    %3717 = vmatpush2.msra.mxu0 0.0
    %3718 = vmatprep.subr.mxu0 0.0
    %3719 = vmatpush2.msra.mxu0 0.0
    %3720 = vmatprep.subr.mxu0 0.0
    %3721 = vmatpush2.msra.mxu0 0.0
    %3722 = vmatprep.subr.mxu0 0.0
    %3723 = vmatpush2.msra.mxu0 0.0
    %3724 = vmatprep.mubr.f32.mxu0 0.0
    %3725 = vmatmul.mubr.f32.gmra.mxu0 %v3584
    %v3726 = vpop.f32.mrf.mxu0
    %v3727 = vadd.f32 0.0, %v3726
    %v3728 = vpop.f32.mrf.mxu0
    %v3729 = vadd.f32 0.0, %v3728
    %3730 = vdwg.mxu0
    %v3731 = vadd.f32 %v3585, %v3656
    %v3732 = vadd.f32 %v3586, %v3658
    %v3733 = vadd.f32 %v3587, %v3727
    %v3734 = vadd.f32 %v3588, %v3729
    %v3735 = vxor.u32 %v3731, 2147483648
    %v3736 = vmul.f32 %v3735, 1.442695
    %v3737 = vpow.pop %v3736
    %v3738 = vadd.f32 %v3737, 1.0
    %v3739 = vrcp.pop %v3738
    %v3740 = vmul.f32 1.0, %v3739
    %v3741 = vxor.u32 %v3732, 2147483648
    %v3742 = vmul.f32 %v3741, 1.442695
    %v3743 = vpow.pop %v3742
    %v3744 = vadd.f32 %v3743, 1.0
    %v3745 = vrcp.pop %v3744
    %v3746 = vmul.f32 1.0, %v3745
    %v3747 = vtanh.pop %v3733
    %v3748 = vxor.u32 %v3734, 2147483648
    %v3749 = vmul.f32 %v3748, 1.442695
    %v3750 = vpow.pop %v3749
    %v3751 = vadd.f32 %v3750, 1.0
    %v3752 = vrcp.pop %v3751
    %v3753 = vmul.f32 1.0, %v3752
    %v3754 = vmul.f32 %v3746, %v3582
    %v3755 = vmul.f32 %v3740, %v3747
    %v3756 = vadd.f32 %v3754, %v3755
    %v3757 = vtanh.pop %v3756
    %v3758 = vmul.f32 %v3753, %v3757
    %s3759 = scalar_lea.vmem %s12, 8
    %3760 = vst [vmem:[%s3759] sm:$0xff] %v3758
    %s3761 = scalar_lea.vmem %s13, 8
    %3762 = vst [vmem:[%s3761] sm:$0xff] %v3756
    %v3763 = vld [vmem:[%s7] sm:$0xff]
    %v3764 = vld [vmem:[%s7 + $0x8] sm:$0xff]
    %v3765 = vld [vmem:[%s7 + $0x10] sm:$0xff]
    %v3766 = vld [vmem:[%s7 + $0x18] sm:$0xff]
    %v3767 = vld [vmem:[%s7 + $0x20] sm:$0xff]
    %v3768 = vld [vmem:[%s7 + $0x28] sm:$0xff]
    %v3769 = vld [vmem:[%s7 + $0x30] sm:$0xff]
    %v3770 = vld [vmem:[%s7 + $0x38] sm:$0xff]
    %v3771 = vld [vmem:[%s7 + $0x40] sm:$0xff]
    %v3772 = vld [vmem:[%s7 + $0x48] sm:$0xff]
    %v3773 = vld [vmem:[%s7 + $0x50] sm:$0xff]
    %v3774 = vld [vmem:[%s7 + $0x58] sm:$0xff]
    %v3775 = vld [vmem:[%s7 + $0x60] sm:$0xff]
    %v3776 = vld [vmem:[%s7 + $0x68] sm:$0xff]
    %v3777 = vld [vmem:[%s7 + $0x70] sm:$0xff]
    %v3778 = vld [vmem:[%s7 + $0x78] sm:$0xff]
    %v3779 = vld [vmem:[%s8] sm:$0x1]
    %v3781 = vlaneseq
    %v3782 = vshrl.u32 %v3781, 7
    %v3783 = vsub.s32 0, %v3782
    %v3784 = vrot.slane %v3779, %v3783
    %3786 = vmatprep.subr.mxu0 0.0
    %3787 = vmatpush1.msra.mxu0 %v3778
    %3788 = vmatprep.subr.mxu0 0.0
    %3789 = vmatpush1.msra.mxu0 %v3777
    %3790 = vmatprep.subr.mxu0 0.0
    %3791 = vmatpush1.msra.mxu0 %v3776
    %3792 = vmatprep.subr.mxu0 0.0
    %3793 = vmatpush1.msra.mxu0 %v3775
    %3794 = vmatprep.subr.mxu0 0.0
    %3795 = vmatpush1.msra.mxu0 %v3774
    %3796 = vmatprep.subr.mxu0 0.0
    %3797 = vmatpush1.msra.mxu0 %v3773
    %3798 = vmatprep.subr.mxu0 0.0
    %3799 = vmatpush1.msra.mxu0 %v3772
    %3800 = vmatprep.subr.mxu0 0.0
    %3801 = vmatpush1.msra.mxu0 %v3771
    %3802 = vmatprep.subr.mxu0 0.0
    %3803 = vmatpush1.msra.mxu0 %v3770
    %3804 = vmatprep.subr.mxu0 0.0
    %3805 = vmatpush1.msra.mxu0 %v3769
    %3806 = vmatprep.subr.mxu0 0.0
    %3807 = vmatpush1.msra.mxu0 %v3768
    %3808 = vmatprep.subr.mxu0 0.0
    %3809 = vmatpush1.msra.mxu0 %v3767
    %3810 = vmatprep.subr.mxu0 0.0
    %3811 = vmatpush1.msra.mxu0 %v3766
    %3812 = vmatprep.subr.mxu0 0.0
    %3813 = vmatpush1.msra.mxu0 %v3765
    %3814 = vmatprep.subr.mxu0 0.0
    %3815 = vmatpush1.msra.mxu0 %v3764
    %3816 = vmatprep.subr.mxu0 0.0
    %3817 = vmatpush1.msra.mxu0 %v3763
    %3818 = vmatprep.subr.mxu0 0.0
    %3819 = vmatpush2.msra.mxu0 0.0
    %3820 = vmatprep.subr.mxu0 0.0
    %3821 = vmatpush2.msra.mxu0 0.0
    %3822 = vmatprep.subr.mxu0 0.0
    %3823 = vmatpush2.msra.mxu0 0.0
    %3824 = vmatprep.subr.mxu0 0.0
    %3825 = vmatpush2.msra.mxu0 0.0
    %3826 = vmatprep.subr.mxu0 0.0
    %3827 = vmatpush2.msra.mxu0 0.0
    %3828 = vmatprep.subr.mxu0 0.0
    %3829 = vmatpush2.msra.mxu0 0.0
    %3830 = vmatprep.subr.mxu0 0.0
    %3831 = vmatpush2.msra.mxu0 0.0
    %3832 = vmatprep.subr.mxu0 0.0
    %3833 = vmatpush2.msra.mxu0 0.0
    %3834 = vmatprep.subr.mxu0 0.0
    %3835 = vmatpush2.msra.mxu0 0.0
    %3836 = vmatprep.subr.mxu0 0.0
    %3837 = vmatpush2.msra.mxu0 0.0
    %3838 = vmatprep.subr.mxu0 0.0
    %3839 = vmatpush2.msra.mxu0 0.0
    %3840 = vmatprep.subr.mxu0 0.0
    %3841 = vmatpush2.msra.mxu0 0.0
    %3842 = vmatprep.subr.mxu0 0.0
    %3843 = vmatpush2.msra.mxu0 0.0
    %3844 = vmatprep.subr.mxu0 0.0
    %3845 = vmatpush2.msra.mxu0 0.0
    %3846 = vmatprep.subr.mxu0 0.0
    %3847 = vmatpush2.msra.mxu0 0.0
    %3848 = vmatprep.subr.mxu0 0.0
    %3849 = vmatpush2.msra.mxu0 0.0
    %3850 = vmatprep.mubr.f32.mxu0 0.0
    %3851 = vmatmul.mubr.f32.gmra.mxu0 %v3758
    %v3852 = vpop.f32.mrf.mxu0
    %v3853 = vadd.f32 %v3784, %v3852
    %v3854 = vpop.f32.mrf.mxu0
    %3855 = vdwg.mxu0
    %v3856 = vxor.u32 %v3853, 2147483648
    %v3857 = vmul.f32 %v3856, 1.442695
    %v3858 = vpow.pop %v3857
    %v3859 = vadd.f32 %v3858, 1.0
    %v3860 = vrcp.pop %v3859
    %v3861 = vmul.f32 1.0, %v3860
    %3862 = vst [vmem:[%s11] sm:$0xff] %v3861
    // Predicated region
    $region62: #{sentiment_rnn_forward.1} parent=1 // pred_check
      _
    $region63: #{sentiment_rnn_forward.1} parent=1 // pred_check_branch
      %3864 = sbr.rel (0) target = $region65
    $region64: #{sentiment_rnn_forward.1} parent=1 // pred_region
      _
    $region65: #{sentiment_rnn_forward.1} parent=1 // pred_fallthru
      _
    // Predicated region
    $region66: #{sentiment_rnn_forward.1} parent=1 // pred_check
      _
    $region67: #{sentiment_rnn_forward.1} parent=1 // pred_check_branch
      %3866 = sbr.rel (0) target = $region69
    $region68: #{sentiment_rnn_forward.1} parent=1 // pred_region
      _
    $region69: #{sentiment_rnn_forward.1} parent=1 // pred_fallthru
      _
    // Predicated region
    $region70: #{sentiment_rnn_forward.1} parent=1 // pred_check
      _
    $region71: #{sentiment_rnn_forward.1} parent=1 // pred_check_branch
      %3868 = sbr.rel (0) target = $region73
    $region72: #{sentiment_rnn_forward.1} parent=1 // pred_region
      _
    $region73: #{sentiment_rnn_forward.1} parent=1 // pred_fallthru
      _
    // Predicated region
    $region74: #{sentiment_rnn_forward.1} parent=1 // pred_check
      _
    $region75: #{sentiment_rnn_forward.1} parent=1 // pred_check_branch
      %3870 = sbr.rel (0) target = $region77
    $region76: #{sentiment_rnn_forward.1} parent=1 // pred_region
      _
    $region77: #{sentiment_rnn_forward.1} parent=1 // pred_fallthru
      _
    // Predicated region
    $region78: #{sentiment_rnn_forward.1} parent=1 // pred_check
      _
    $region79: #{sentiment_rnn_forward.1} parent=1 // pred_check_branch
      %3872 = sbr.rel (0) target = $region81
    $region80: #{sentiment_rnn_forward.1} parent=1 // pred_region
      _
    $region81: #{sentiment_rnn_forward.1} parent=1 // pred_fallthru
      _
    // Predicated region
    $region82: #{sentiment_rnn_forward.1} parent=1 // pred_check
      _
    $region83: #{sentiment_rnn_forward.1} parent=1 // pred_check_branch
      %3874 = sbr.rel (0) target = $region85
    $region84: #{sentiment_rnn_forward.1} parent=1 // pred_region
      _
    $region85: #{sentiment_rnn_forward.1} parent=1 // pred_fallthru
      _
    %3875 = vsyncpa [#allocation5], 1
    %3876 = vsyncpa [#allocation7], 1
    %3877 = vsyncpa [#allocation10], 1

</llo_original>
